<compile_context>
chip_gen: v5e
topology: v5e:2x2
jax: 0.10.0
libtpu: 0.0.40
codegen_flags: <defaults>
</compile_context>

<pallas_src>
import math

import jax
import jax.numpy as jnp
from jax.experimental import pallas as pl
from jax.experimental.pallas import tpu as pltpu

_MIB = 1024 * 1024


# ------------------------------ small helpers -------------------------------

def _compiler_params(block_bytes, semantics):
    # Cover double-buffered blocks with headroom; cap at 64 MiB (v7x physical VMEM).
    limit = int(min(64 * _MIB, max(16 * _MIB, 4 * block_bytes)))
    return pltpu.CompilerParams(dimension_semantics=semantics,
                                vmem_limit_bytes=limit)


def _channel_tile(C):
    # lane tile: multiples of 128 when possible, otherwise the full (small) C dim
    return 128 if C % 128 == 0 else C


def _fold_factor(M, C):
    # fold rows into lanes so BN kernels see a lane-dense (~128-lane) last dim
    if C >= 128:
        return 1
    return max(1, math.gcd(M, max(1, 128 // C)))


def _row_tile(Mf):
    for t in (1024, 512, 256, 128, 64, 32, 16, 8):
        if Mf % t == 0:
            return t
    return Mf


# ----------------------------- Pallas kernels ------------------------------

def _conv3x3_kernel(x_ref, w_ref, b_ref, o_ref):
    # x_ref: (1, H+2, W+2, Ci)  w_ref: (9*Ci, TCo)  b_ref: (1, TCo)
    # o_ref: (1, H*W, TCo)
    x = x_ref[0].astype(jnp.float32)                      # (H+2, W+2, Ci)
    Hp, Wp, Ci = x.shape
    H, W = Hp - 2, Wp - 2
    # im2col: one (H*W, 9*Ci) x (9*Ci, TCo) matmul instead of 9 K=Ci dots.
    taps = [x[ky:ky + H, kx:kx + W, :] for ky in range(3) for kx in range(3)]
    patch = jnp.concatenate(taps, axis=-1).reshape(H * W, 9 * Ci)
    acc = jnp.dot(patch, w_ref[...].astype(jnp.float32),
                  preferred_element_type=jnp.float32)
    acc = acc + b_ref[...].astype(jnp.float32)
    o_ref[...] = acc[None].astype(o_ref.dtype)


def _dwconv3x3_kernel(x_ref, w_ref, b_ref, o_ref):
    # depthwise 3x3 conv + bias (scale already folded into w/b by the wrapper)
    # x_ref: (1, H+2, W+2, TC)  w_ref: (9, TC)  b_ref: (1, TC)  o_ref: (1, H, W, TC)
    x = x_ref[0].astype(jnp.float32)
    Hp, Wp, C = x.shape
    H, W = Hp - 2, Wp - 2
    w = w_ref[...].astype(jnp.float32)
    acc = jnp.zeros((H, W, C), jnp.float32)
    for ky in range(3):
        for kx in range(3):
            acc = acc + x[ky:ky + H, kx:kx + W, :] * w[ky * 3 + kx]
    acc = acc + b_ref[...].astype(jnp.float32)
    o_ref[...] = acc[None].astype(o_ref.dtype)


def _make_bn_stats_kernel(n_in):
    # per-lane sum / sum-of-squares of sum(xs), accumulated across row tiles
    def kernel(*refs):
        o_ref = refs[-1]

        @pl.when(pl.program_id(0) == 0)
        def _():
            o_ref[...] = jnp.zeros_like(o_ref)

        s = refs[0][...].astype(jnp.float32)
        for r in refs[1:n_in]:
            s = s + r[...].astype(jnp.float32)
        part = jnp.concatenate(
            [jnp.sum(s, axis=0, keepdims=True),
             jnp.sum(s * s, axis=0, keepdims=True)], axis=0)
        o_ref[...] += part
    return kernel


def _make_bn_apply_kernel(n_in, with_res):
    # relu( sum(xs) * scale + shift [+ res] )    (BN affine folded into scale/shift)
    def kernel(*refs):
        s = refs[0][...].astype(jnp.float32)
        for r in refs[1:n_in]:
            s = s + r[...].astype(jnp.float32)
        idx = n_in
        res = None
        if with_res:
            res = refs[idx][...]
            idx += 1
        sc_ref, sh_ref, o_ref = refs[idx], refs[idx + 1], refs[idx + 2]
        y = s * sc_ref[...] + sh_ref[...]
        if with_res:
            y = y + res.astype(jnp.float32)
        o_ref[...] = jnp.maximum(y, 0.0).astype(o_ref.dtype)
    return kernel


# ------------------------------ kernel wrappers -----------------------------

def conv3x3(x, w_hwio, b_1c):
    N, H, W, Ci = x.shape
    Co = w_hwio.shape[-1]
    # TODO(synk): 1-px halo is still materialized with jnp.pad; overlapping
    # row-tile halos (pl.Element indexing) would remove this extra HBM pass.
    xp = jnp.pad(x, ((0, 0), (1, 1), (1, 1), (0, 0)))
    w_flat = w_hwio.reshape(9 * Ci, Co)                   # row = (ky*3+kx)*Ci + ci
    TCo = _channel_tile(Co)
    grid = (N, Co // TCo)
    block_bytes = 4 * ((H + 2) * (W + 2) * Ci + 9 * Ci * TCo + TCo + H * W * TCo)
    out = pl.pallas_call(
        _conv3x3_kernel,
        out_shape=jax.ShapeDtypeStruct((N, H * W, Co), x.dtype),
        grid=grid,
        in_specs=[
            pl.BlockSpec((1, H + 2, W + 2, Ci), lambda n, c: (n, 0, 0, 0)),
            pl.BlockSpec((9 * Ci, TCo), lambda n, c: (0, c)),
            pl.BlockSpec((1, TCo), lambda n, c: (0, c)),
        ],
        out_specs=pl.BlockSpec((1, H * W, TCo), lambda n, c: (n, 0, c)),
        compiler_params=_compiler_params(block_bytes, ("parallel", "parallel")),
        cost_estimate=pl.CostEstimate(
            flops=int(2 * N * H * W * Co * 9 * Ci),
            transcendentals=0,
            bytes_accessed=int(4 * (xp.size + w_flat.size + b_1c.size
                                    + N * H * W * Co))),
    )(xp, w_flat, b_1c)
    return out.reshape(N, H, W, Co)


def dwconv3x3(x, w_9c, b_1c):
    N, H, W, C = x.shape
    xp = jnp.pad(x, ((0, 0), (1, 1), (1, 1), (0, 0)))
    TC = _channel_tile(C)
    grid = (N, C // TC)
    block_bytes = 4 * ((H + 2) * (W + 2) * TC + 9 * TC + TC + H * W * TC)
    return pl.pallas_call(
        _dwconv3x3_kernel,
        out_shape=jax.ShapeDtypeStruct((N, H, W, C), x.dtype),
        grid=grid,
        in_specs=[
            pl.BlockSpec((1, H + 2, W + 2, TC), lambda n, c: (n, 0, 0, c)),
            pl.BlockSpec((9, TC), lambda n, c: (0, c)),
            pl.BlockSpec((1, TC), lambda n, c: (0, c)),
        ],
        out_specs=pl.BlockSpec((1, H, W, TC), lambda n, c: (n, 0, 0, c)),
        compiler_params=_compiler_params(block_bytes, ("parallel", "parallel")),
        cost_estimate=pl.CostEstimate(
            flops=int(2 * 9 * N * H * W * C),
            transcendentals=0,
            bytes_accessed=int(4 * (xp.size + w_9c.size + b_1c.size + x.size))),
    )(xp, w_9c, b_1c)


def batchnorm_relu(xs, res, gamma, beta, eps=1e-5):
    """Training-mode BatchNorm2d applied to sum(xs), + optional residual, ReLU.

    Two tiled passes: (1) accumulate per-lane sum / sumsq, (2) apply folded
    scale/shift + residual + ReLU. Inputs are lane-folded so the last dim is
    ~128 lanes even for tiny channel counts.
    """
    N, H, W, C = xs[0].shape
    M = N * H * W
    R = _fold_factor(M, C)
    L = R * C
    Mf = M // R
    TM = _row_tile(Mf)
    grid = (Mf // TM,)

    xs_f = [t.reshape(Mf, L) for t in xs]
    n_in = len(xs_f)

    row_spec = pl.BlockSpec((TM, L), lambda i: (i, 0))
    vec_spec = pl.BlockSpec((1, L), lambda i: (0, 0))

    # pass 1: accumulate per-lane sum / sum-of-squares across row tiles
    stats = pl.pallas_call(
        _make_bn_stats_kernel(n_in),
        out_shape=jax.ShapeDtypeStruct((2, L), jnp.float32),
        grid=grid,
        in_specs=[row_spec] * n_in,
        out_specs=pl.BlockSpec((2, L), lambda i: (0, 0)),
        compiler_params=_compiler_params(4 * (n_in * TM * L + 2 * L),
                                         ("arbitrary",)),
    )(*xs_f)

    ssum = stats[0].reshape(R, C).sum(axis=0)
    ssq = stats[1].reshape(R, C).sum(axis=0)
    mean = ssum / M
    var = ssq / M - mean * mean               # biased variance (training-mode BN)
    inv = jax.lax.rsqrt(var + eps)
    scale = gamma.astype(jnp.float32) * inv
    shift = beta.astype(jnp.float32) - mean * scale
    scale_l = jnp.tile(scale, R).reshape(1, L)
    shift_l = jnp.tile(shift, R).reshape(1, L)

    with_res = res is not None
    ops = list(xs_f)
    if with_res:
        ops.append(res.reshape(Mf, L))
    ops += [scale_l, shift_l]

    y = pl.pallas_call(
        _make_bn_apply_kernel(n_in, with_res),
        out_shape=jax.ShapeDtypeStruct((Mf, L), xs[0].dtype),
        grid=grid,
        in_specs=[row_spec] * (n_in + int(with_res)) + [vec_spec, vec_spec],
        out_specs=row_spec,
        compiler_params=_compiler_params(
            4 * ((n_in + int(with_res) + 1) * TM * L + 2 * L), ("parallel",)),
    )(*ops)
    return y.reshape(N, H, W, C)


# --------------------------- Haar wavelet glue ------------------------------
# TODO(synk): WT/IWT are 2x2 shuffles + adds kept in plain JAX; fusing them into
# the wavelet depthwise kernel's load/store path (strided pl.ds / pltpu.roll)
# would remove the remaining inter-kernel HBM traffic of the WTConv path.

def haar_wt(x):  # (N,H,W,C) -> (N,H/2,W/2,C,4), bands ordered [LL, LH, HL, HH]
    N, H, W, C = x.shape
    x = x.reshape(N, H // 2, 2, W // 2, 2, C)
    a = x[:, :, 0, :, 0, :]
    b = x[:, :, 0, :, 1, :]
    c = x[:, :, 1, :, 0, :]
    d = x[:, :, 1, :, 1, :]
    ll = 0.5 * (a + b + c + d)
    lh = 0.5 * (a + b - c - d)
    hl = 0.5 * (a - b + c - d)
    hh = 0.5 * (a - b - c + d)
    return jnp.stack([ll, lh, hl, hh], axis=-1)


def haar_iwt(bands):  # (N,Hh,Wh,C,4) -> (N,2*Hh,2*Wh,C)
    ll, lh, hl, hh = bands[..., 0], bands[..., 1], bands[..., 2], bands[..., 3]
    o00 = 0.5 * (ll + lh + hl + hh)
    o01 = 0.5 * (ll + lh - hl - hh)
    o10 = 0.5 * (ll - lh + hl - hh)
    o11 = 0.5 * (ll - lh - hl + hh)
    N, Hh, Wh, C = ll.shape
    top = jnp.stack([o00, o01], axis=3)      # (N, Hh, Wh, 2, C)
    bot = jnp.stack([o10, o11], axis=3)
    rows = jnp.stack([top, bot], axis=2)     # (N, Hh, 2, Wh, 2, C)
    return rows.reshape(N, 2 * Hh, 2 * Wh, C)


# ------------------------------- module forward -----------------------------

def wtconv2d_parts(x, p):
    """WTConv2d(C, C, kernel_size=3, wt_levels=1, 'db1').

    Returns (base, x_tag); the final `base + x_tag` add is fused into the
    following BN kernel instead of being a separate XLA elementwise pass.
    """
    N, H, W, C = x.shape
    # fold _ScaleModule scales into the depthwise weights / bias
    base_w = p['base_w'] * p['base_scale']
    base_b = p['base_b'] * p['base_scale']
    base = dwconv3x3(x, base_w, base_b)

    bands = haar_wt(x)                                   # (N, H/2, W/2, C, 4)
    bands4c = bands.reshape(N, H // 2, W // 2, 4 * C)    # channel = 4*c + band
    wav_w = p['wav_w'] * p['wav_scale']
    zeros_b = jnp.zeros((1, 4 * C), x.dtype)             # wavelet conv has no bias
    bands4c = dwconv3x3(bands4c, wav_w, zeros_b)
    bands = bands4c.reshape(N, H // 2, W // 2, C, 4)
    x_tag = haar_iwt(bands)
    return base, x_tag


def residual_block_forward(x_nchw, p):
    x = jnp.transpose(x_nchw, (0, 2, 3, 1))              # NCHW -> NHWC
    identity = x                                         # shortcut = Identity
    out = conv3x3(x, p['conv1_w'], p['conv1_b'])
    out = batchnorm_relu((out,), None, p['bn1_g'], p['bn1_b'])
    base, x_tag = wtconv2d_parts(out, p)
    out = batchnorm_relu((base, x_tag), identity, p['bn2_g'], p['bn2_b'])
    return jnp.transpose(out, (0, 3, 1, 2))              # NHWC -> NCHW


def init_params(key, C):
    ks = jax.random.split(key, 6)
    p = {
        'conv1_w': jax.random.normal(ks[0], (3, 3, C, C), jnp.float32) * 0.1,
        'conv1_b': jax.random.normal(ks[1], (1, C), jnp.float32) * 0.1,
        'bn1_g': jnp.ones((C,), jnp.float32),
        'bn1_b': jnp.zeros((C,), jnp.float32),
        'base_w': jax.random.normal(ks[2], (9, C), jnp.float32) * 0.1,
        'base_b': jax.random.normal(ks[3], (1, C), jnp.float32) * 0.1,
        'base_scale': jnp.ones((1, C), jnp.float32),            # _ScaleModule init 1.0
        'wav_w': jax.random.normal(ks[4], (9, 4 * C), jnp.float32) * 0.1,
        'wav_scale': jnp.full((1, 4 * C), 0.1, jnp.float32),    # _ScaleModule init 0.1
        'bn2_g': jnp.ones((C,), jnp.float32),
        'bn2_b': jnp.zeros((C,), jnp.float32),
    }
    return p


if __name__ == "__main__":
    key = jax.random.PRNGKey(0)
    kx, kp = jax.random.split(key)
    N, C, H, W = 2, 4, 16, 16
    x = jax.random.normal(kx, (N, C, H, W), jnp.float32)   # NCHW, like PyTorch
    params = init_params(kp, C)

    out = jax.jit(residual_block_forward)(x, params)
    out = jax.block_until_ready(out)
    assert out.shape == (N, C, H, W)
    assert bool(jnp.all(out >= 0.0))   # final ReLU
    print("KERNEL_OK")
</pallas_src>

<mosaic_0001>
module attributes {stable_mosaic.version = 11 : i64} {
  func.func @_conv3x3_kernel(%arg0: i32, %arg1: i32, %arg2: memref<1x18x18x4xf32, #tpu.memory_space<vmem>>, %arg3: memref<36x4xf32, #tpu.memory_space<vmem>>, %arg4: memref<1x4xf32, #tpu.memory_space<vmem>>, %arg5: memref<1x256x4xf32, #tpu.memory_space<vmem>>) attributes {dimension_semantics = [#tpu.dimension_semantics<parallel>, #tpu.dimension_semantics<parallel>], iteration_bounds = array<i64: 2, 1>, scalar_prefetch = 0 : i64, scratch_operands = 0 : i64, tpu.core_type = #tpu.core_type<tc>, window_params = [{transform_indices = @transform_0, window_bounds = array<i64: 1, 18, 18, 4>}, {transform_indices = @transform_1, window_bounds = array<i64: 36, 4>}, {transform_indices = @transform_2, window_bounds = array<i64: 1, 4>}, {transform_indices = @transform_3, window_bounds = array<i64: 1, 256, 4>}]} {
    %c0 = arith.constant 0 : index
    %c0_0 = arith.constant 0 : index
    %c0_1 = arith.constant 0 : index
    %c0_2 = arith.constant 0 : index
    %0 = vector.load %arg2[%c0, %c0_0, %c0_1, %c0_2] : memref<1x18x18x4xf32, #tpu.memory_space<vmem>>, vector<1x18x18x4xf32>
    %1 = vector.shape_cast %0 : vector<1x18x18x4xf32> to vector<18x18x4xf32>
    %2 = vector.extract_strided_slice %1 {offsets = [0, 0, 0], sizes = [16, 16, 4], strides = [1, 1, 1]} : vector<18x18x4xf32> to vector<16x16x4xf32>
    %3 = vector.extract_strided_slice %1 {offsets = [0, 1, 0], sizes = [16, 16, 4], strides = [1, 1, 1]} : vector<18x18x4xf32> to vector<16x16x4xf32>
    %4 = vector.extract_strided_slice %1 {offsets = [0, 2, 0], sizes = [16, 16, 4], strides = [1, 1, 1]} : vector<18x18x4xf32> to vector<16x16x4xf32>
    %5 = vector.extract_strided_slice %1 {offsets = [1, 0, 0], sizes = [16, 16, 4], strides = [1, 1, 1]} : vector<18x18x4xf32> to vector<16x16x4xf32>
    %6 = vector.extract_strided_slice %1 {offsets = [1, 1, 0], sizes = [16, 16, 4], strides = [1, 1, 1]} : vector<18x18x4xf32> to vector<16x16x4xf32>
    %7 = vector.extract_strided_slice %1 {offsets = [1, 2, 0], sizes = [16, 16, 4], strides = [1, 1, 1]} : vector<18x18x4xf32> to vector<16x16x4xf32>
    %8 = vector.extract_strided_slice %1 {offsets = [2, 0, 0], sizes = [16, 16, 4], strides = [1, 1, 1]} : vector<18x18x4xf32> to vector<16x16x4xf32>
    %9 = vector.extract_strided_slice %1 {offsets = [2, 1, 0], sizes = [16, 16, 4], strides = [1, 1, 1]} : vector<18x18x4xf32> to vector<16x16x4xf32>
    %10 = vector.extract_strided_slice %1 {offsets = [2, 2, 0], sizes = [16, 16, 4], strides = [1, 1, 1]} : vector<18x18x4xf32> to vector<16x16x4xf32>
    %11 = tpu.concatenate %2, %3, %4, %5, %6, %7, %8, %9, %10 in 2 : vector<16x16x4xf32>, vector<16x16x4xf32>, vector<16x16x4xf32>, vector<16x16x4xf32>, vector<16x16x4xf32>, vector<16x16x4xf32>, vector<16x16x4xf32>, vector<16x16x4xf32>, vector<16x16x4xf32> -> vector<16x16x36xf32>
    %12 = vector.shape_cast %11 : vector<16x16x36xf32> to vector<256x36xf32>
    %c0_3 = arith.constant 0 : index
    %c0_4 = arith.constant 0 : index
    %13 = vector.load %arg3[%c0_3, %c0_4] : memref<36x4xf32, #tpu.memory_space<vmem>>, vector<36x4xf32>
    %cst = arith.constant dense<0.000000e+00> : vector<256x4xf32>
    %14 = tpu.matmul %12, %13, %cst {dimension_numbers = #tpu.dot_dimension_numbers<[1], [0], [0], [1], [0, 0, 1, 1], [], []>} : vector<256x36xf32>, vector<36x4xf32>, vector<256x4xf32> -> vector<256x4xf32>
    %c0_5 = arith.constant 0 : index
    %c0_6 = arith.constant 0 : index
    %15 = vector.load %arg4[%c0_5, %c0_6] : memref<1x4xf32, #tpu.memory_space<vmem>>, vector<1x4xf32>
    %16 = vector.broadcast %15 : vector<1x4xf32> to vector<256x4xf32>
    %17 = arith.addf %14, %16 : vector<256x4xf32>
    %18 = vector.shape_cast %17 : vector<256x4xf32> to vector<1x256x4xf32>
    %c0_7 = arith.constant 0 : index
    %c0_8 = arith.constant 0 : index
    %c0_9 = arith.constant 0 : index
    %19 = vector.load %arg5[%c0_7, %c0_8, %c0_9] : memref<1x256x4xf32, #tpu.memory_space<vmem>>, vector<1x256x4xf32>
    tpu.vector_store %arg5[%c0_7, %c0_8, %c0_9], %18 {strides = array<i32>} : memref<1x256x4xf32, #tpu.memory_space<vmem>>, vector<1x256x4xf32>,
    return
  }
  func.func @transform_0(%arg0: i32, %arg1: i32) -> (i32, i32, i32, i32) {
    %c0_i32 = arith.constant 0 : i32
    %c0_i32_0 = arith.constant 0 : i32
    %c0_i32_1 = arith.constant 0 : i32
    %c0_i32_2 = arith.constant 0 : i32
    return %arg0, %c0_i32, %c0_i32_0, %c0_i32_1 : i32, i32, i32, i32
  }
  func.func @transform_1(%arg0: i32, %arg1: i32) -> (i32, i32) {
    %c0_i32 = arith.constant 0 : i32
    %c0_i32_0 = arith.constant 0 : i32
    return %c0_i32, %arg1 : i32, i32
  }
  func.func @transform_2(%arg0: i32, %arg1: i32) -> (i32, i32) {
    %c0_i32 = arith.constant 0 : i32
    %c0_i32_0 = arith.constant 0 : i32
    return %c0_i32, %arg1 : i32, i32
  }
  func.func @transform_3(%arg0: i32, %arg1: i32) -> (i32, i32, i32) {
    %c0_i32 = arith.constant 0 : i32
    %c0_i32_0 = arith.constant 0 : i32
    return %arg0, %c0_i32, %arg1 : i32, i32, i32
  }
}

module attributes {stable_mosaic.version = 11 : i64} {
  func.func @kernel(%arg0: i32, %arg1: memref<16x128xf32, #tpu.memory_space<vmem>>, %arg2: memref<2x128xf32, #tpu.memory_space<vmem>>) attributes {dimension_semantics = [#tpu.dimension_semantics<arbitrary>], iteration_bounds = array<i64: 1>, scalar_prefetch = 0 : i64, scratch_operands = 0 : i64, tpu.core_type = #tpu.core_type<tc>, window_params = [{transform_indices = @transform_0, window_bounds = array<i64: 16, 128>}, {pipeline_mode = #tpu.pipeline_mode<synchronous>, transform_indices = @transform_1, window_bounds = array<i64: 2, 128>}]} {
    %c0_i32 = arith.constant 0 : i32
    %0 = arith.cmpi eq, %arg0, %c0_i32 : i32
    %1 = arith.extui %0 : i1 to i32
    %c0_i32_0 = arith.constant 0 : i32
    %2 = arith.cmpi ne, %1, %c0_i32_0 : i32
    scf.if %2 {
      %cst_7 = arith.constant 0.000000e+00 : f32
      %13 = vector.broadcast %cst_7 : f32 to vector<2x128xf32>
      %c0_8 = arith.constant 0 : index
      %c0_9 = arith.constant 0 : index
      %14 = vector.load %arg2[%c0_8, %c0_9] : memref<2x128xf32, #tpu.memory_space<vmem>>, vector<2x128xf32>
      tpu.vector_store %arg2[%c0_8, %c0_9], %13 {strides = array<i32>} : memref<2x128xf32, #tpu.memory_space<vmem>>, vector<2x128xf32>,
    } else {
    }
    %c0 = arith.constant 0 : index
    %c0_1 = arith.constant 0 : index
    %3 = vector.load %arg1[%c0, %c0_1] : memref<16x128xf32, #tpu.memory_space<vmem>>, vector<16x128xf32>
    %cst = arith.constant dense<0.000000e+00> : vector<128xf32>
    %4 = vector.multi_reduction <add>, %3, %cst [0] : vector<16x128xf32> to vector<128xf32>
    %5 = vector.shape_cast %4 : vector<128xf32> to vector<1x128xf32>
    %6 = arith.mulf %3, %3 : vector<16x128xf32>
    %cst_2 = arith.constant dense<0.000000e+00> : vector<128xf32>
    %7 = vector.multi_reduction <add>, %6, %cst_2 [0] : vector<16x128xf32> to vector<128xf32>
    %8 = vector.shape_cast %7 : vector<128xf32> to vector<1x128xf32>
    %9 = tpu.concatenate %5, %8 in 0 : vector<1x128xf32>, vector<1x128xf32> -> vector<2x128xf32>
    %c0_3 = arith.constant 0 : index
    %c0_4 = arith.constant 0 : index
    %10 = vector.load %arg2[%c0_3, %c0_4] : memref<2x128xf32, #tpu.memory_space<vmem>>, vector<2x128xf32>
    %11 = arith.addf %10, %9 : vector<2x128xf32>
    %c0_5 = arith.constant 0 : index
    %c0_6 = arith.constant 0 : index
    %12 = vector.load %arg2[%c0_5, %c0_6] : memref<2x128xf32, #tpu.memory_space<vmem>>, vector<2x128xf32>
    tpu.vector_store %arg2[%c0_5, %c0_6], %11 {strides = array<i32>} : memref<2x128xf32, #tpu.memory_space<vmem>>, vector<2x128xf32>,
    return
  }
  func.func @transform_0(%arg0: i32) -> (i32, i32) {
    %c0_i32 = arith.constant 0 : i32
    %c0_i32_0 = arith.constant 0 : i32
    return %arg0, %c0_i32 : i32, i32
  }
  func.func @transform_1(%arg0: i32) -> (i32, i32) {
    %c0_i32 = arith.constant 0 : i32
    %c0_i32_0 = arith.constant 0 : i32
    %c0_i32_1 = arith.constant 0 : i32
    return %c0_i32, %c0_i32_0 : i32, i32
  }
}

module attributes {stable_mosaic.version = 11 : i64} {
  func.func @kernel(%arg0: i32, %arg1: memref<16x128xf32, #tpu.memory_space<vmem>>, %arg2: memref<1x128xf32, #tpu.memory_space<vmem>>, %arg3: memref<1x128xf32, #tpu.memory_space<vmem>>, %arg4: memref<16x128xf32, #tpu.memory_space<vmem>>) attributes {dimension_semantics = [#tpu.dimension_semantics<parallel>], iteration_bounds = array<i64: 1>, scalar_prefetch = 0 : i64, scratch_operands = 0 : i64, tpu.core_type = #tpu.core_type<tc>, window_params = [{transform_indices = @transform_0, window_bounds = array<i64: 16, 128>}, {pipeline_mode = #tpu.pipeline_mode<synchronous>, transform_indices = @transform_1, window_bounds = array<i64: 1, 128>}, {pipeline_mode = #tpu.pipeline_mode<synchronous>, transform_indices = @transform_2, window_bounds = array<i64: 1, 128>}, {transform_indices = @transform_3, window_bounds = array<i64: 16, 128>}]} {
    %c0 = arith.constant 0 : index
    %c0_0 = arith.constant 0 : index
    %0 = vector.load %arg1[%c0, %c0_0] : memref<16x128xf32, #tpu.memory_space<vmem>>, vector<16x128xf32>
    %c0_1 = arith.constant 0 : index
    %c0_2 = arith.constant 0 : index
    %1 = vector.load %arg2[%c0_1, %c0_2] : memref<1x128xf32, #tpu.memory_space<vmem>>, vector<1x128xf32>
    %2 = vector.broadcast %1 : vector<1x128xf32> to vector<16x128xf32>
    %3 = arith.mulf %0, %2 : vector<16x128xf32>
    %c0_3 = arith.constant 0 : index
    %c0_4 = arith.constant 0 : index
    %4 = vector.load %arg3[%c0_3, %c0_4] : memref<1x128xf32, #tpu.memory_space<vmem>>, vector<1x128xf32>
    %5 = vector.broadcast %4 : vector<1x128xf32> to vector<16x128xf32>
    %6 = arith.addf %3, %5 : vector<16x128xf32>
    %cst = arith.constant 0.000000e+00 : f32
    %7 = vector.broadcast %cst : f32 to vector<16x128xf32>
    %8 = arith.maximumf %6, %7 : vector<16x128xf32>
    %c0_5 = arith.constant 0 : index
    %c0_6 = arith.constant 0 : index
    %9 = vector.load %arg4[%c0_5, %c0_6] : memref<16x128xf32, #tpu.memory_space<vmem>>, vector<16x128xf32>
    tpu.vector_store %arg4[%c0_5, %c0_6], %8 {strides = array<i32>} : memref<16x128xf32, #tpu.memory_space<vmem>>, vector<16x128xf32>,
    return
  }
  func.func @transform_0(%arg0: i32) -> (i32, i32) {
    %c0_i32 = arith.constant 0 : i32
    %c0_i32_0 = arith.constant 0 : i32
    return %arg0, %c0_i32 : i32, i32
  }
  func.func @transform_1(%arg0: i32) -> (i32, i32) {
    %c0_i32 = arith.constant 0 : i32
    %c0_i32_0 = arith.constant 0 : i32
    %c0_i32_1 = arith.constant 0 : i32
    return %c0_i32, %c0_i32_0 : i32, i32
  }
  func.func @transform_2(%arg0: i32) -> (i32, i32) {
    %c0_i32 = arith.constant 0 : i32
    %c0_i32_0 = arith.constant 0 : i32
    %c0_i32_1 = arith.constant 0 : i32
    return %c0_i32, %c0_i32_0 : i32, i32
  }
  func.func @transform_3(%arg0: i32) -> (i32, i32) {
    %c0_i32 = arith.constant 0 : i32
    %c0_i32_0 = arith.constant 0 : i32
    return %arg0, %c0_i32 : i32, i32
  }
}

module attributes {stable_mosaic.version = 11 : i64} {
  func.func @_dwconv3x3_kernel(%arg0: i32, %arg1: i32, %arg2: memref<1x10x10x16xf32, #tpu.memory_space<vmem>>, %arg3: memref<9x16xf32, #tpu.memory_space<vmem>>, %arg4: memref<1x16xf32, #tpu.memory_space<vmem>>, %arg5: memref<1x8x8x16xf32, #tpu.memory_space<vmem>>) attributes {dimension_semantics = [#tpu.dimension_semantics<parallel>, #tpu.dimension_semantics<parallel>], iteration_bounds = array<i64: 2, 1>, scalar_prefetch = 0 : i64, scratch_operands = 0 : i64, tpu.core_type = #tpu.core_type<tc>, window_params = [{transform_indices = @transform_0, window_bounds = array<i64: 1, 10, 10, 16>}, {transform_indices = @transform_1, window_bounds = array<i64: 9, 16>}, {transform_indices = @transform_2, window_bounds = array<i64: 1, 16>}, {transform_indices = @transform_3, window_bounds = array<i64: 1, 8, 8, 16>}]} {
    %c0 = arith.constant 0 : index
    %c0_0 = arith.constant 0 : index
    %c0_1 = arith.constant 0 : index
    %c0_2 = arith.constant 0 : index
    %0 = vector.load %arg2[%c0, %c0_0, %c0_1, %c0_2] : memref<1x10x10x16xf32, #tpu.memory_space<vmem>>, vector<1x10x10x16xf32>
    %1 = vector.shape_cast %0 : vector<1x10x10x16xf32> to vector<10x10x16xf32>
    %c0_3 = arith.constant 0 : index
    %c0_4 = arith.constant 0 : index
    %2 = vector.load %arg3[%c0_3, %c0_4] : memref<9x16xf32, #tpu.memory_space<vmem>>, vector<9x16xf32>
    %cst = arith.constant 0.000000e+00 : f32
    %3 = vector.broadcast %cst : f32 to vector<8x8x16xf32>
    %4 = vector.extract_strided_slice %1 {offsets = [0, 0, 0], sizes = [8, 8, 16], strides = [1, 1, 1]} : vector<10x10x16xf32> to vector<8x8x16xf32>
    %5 = vector.extract_strided_slice %2 {offsets = [0, 0], sizes = [1, 16], strides = [1, 1]} : vector<9x16xf32> to vector<1x16xf32>
    %6 = vector.shape_cast %5 : vector<1x16xf32> to vector<16xf32>
    %7 = vector.shape_cast %6 : vector<16xf32> to vector<1x1x16xf32>
    %8 = vector.broadcast %7 : vector<1x1x16xf32> to vector<8x8x16xf32>
    %9 = arith.mulf %4, %8 : vector<8x8x16xf32>
    %10 = arith.addf %3, %9 : vector<8x8x16xf32>
    %11 = vector.extract_strided_slice %1 {offsets = [0, 1, 0], sizes = [8, 8, 16], strides = [1, 1, 1]} : vector<10x10x16xf32> to vector<8x8x16xf32>
    %12 = vector.extract_strided_slice %2 {offsets = [1, 0], sizes = [1, 16], strides = [1, 1]} : vector<9x16xf32> to vector<1x16xf32>
    %13 = vector.shape_cast %12 : vector<1x16xf32> to vector<16xf32>
    %14 = vector.shape_cast %13 : vector<16xf32> to vector<1x1x16xf32>
    %15 = vector.broadcast %14 : vector<1x1x16xf32> to vector<8x8x16xf32>
    %16 = arith.mulf %11, %15 : vector<8x8x16xf32>
    %17 = arith.addf %10, %16 : vector<8x8x16xf32>
    %18 = vector.extract_strided_slice %1 {offsets = [0, 2, 0], sizes = [8, 8, 16], strides = [1, 1, 1]} : vector<10x10x16xf32> to vector<8x8x16xf32>
    %19 = vector.extract_strided_slice %2 {offsets = [2, 0], sizes = [1, 16], strides = [1, 1]} : vector<9x16xf32> to vector<1x16xf32>
    %20 = vector.shape_cast %19 : vector<1x16xf32> to vector<16xf32>
    %21 = vector.shape_cast %20 : vector<16xf32> to vector<1x1x16xf32>
    %22 = vector.broadcast %21 : vector<1x1x16xf32> to vector<8x8x16xf32>
    %23 = arith.mulf %18, %22 : vector<8x8x16xf32>
    %24 = arith.addf %17, %23 : vector<8x8x16xf32>
    %25 = vector.extract_strided_slice %1 {offsets = [1, 0, 0], sizes = [8, 8, 16], strides = [1, 1, 1]} : vector<10x10x16xf32> to vector<8x8x16xf32>
    %26 = vector.extract_strided_slice %2 {offsets = [3, 0], sizes = [1, 16], strides = [1, 1]} : vector<9x16xf32> to vector<1x16xf32>
    %27 = vector.shape_cast %26 : vector<1x16xf32> to vector<16xf32>
    %28 = vector.shape_cast %27 : vector<16xf32> to vector<1x1x16xf32>
    %29 = vector.broadcast %28 : vector<1x1x16xf32> to vector<8x8x16xf32>
    %30 = arith.mulf %25, %29 : vector<8x8x16xf32>
    %31 = arith.addf %24, %30 : vector<8x8x16xf32>
    %32 = vector.extract_strided_slice %1 {offsets = [1, 1, 0], sizes = [8, 8, 16], strides = [1, 1, 1]} : vector<10x10x16xf32> to vector<8x8x16xf32>
    %33 = vector.extract_strided_slice %2 {offsets = [4, 0], sizes = [1, 16], strides = [1, 1]} : vector<9x16xf32> to vector<1x16xf32>
    %34 = vector.shape_cast %33 : vector<1x16xf32> to vector<16xf32>
    %35 = vector.shape_cast %34 : vector<16xf32> to vector<1x1x16xf32>
    %36 = vector.broadcast %35 : vector<1x1x16xf32> to vector<8x8x16xf32>
    %37 = arith.mulf %32, %36 : vector<8x8x16xf32>
    %38 = arith.addf %31, %37 : vector<8x8x16xf32>
    %39 = vector.extract_strided_slice %1 {offsets = [1, 2, 0], sizes = [8, 8, 16], strides = [1, 1, 1]} : vector<10x10x16xf32> to vector<8x8x16xf32>
    %40 = vector.extract_strided_slice %2 {offsets = [5, 0], sizes = [1, 16], strides = [1, 1]} : vector<9x16xf32> to vector<1x16xf32>
    %41 = vector.shape_cast %40 : vector<1x16xf32> to vector<16xf32>
    %42 = vector.shape_cast %41 : vector<16xf32> to vector<1x1x16xf32>
    %43 = vector.broadcast %42 : vector<1x1x16xf32> to vector<8x8x16xf32>
    %44 = arith.mulf %39, %43 : vector<8x8x16xf32>
    %45 = arith.addf %38, %44 : vector<8x8x16xf32>
    %46 = vector.extract_strided_slice %1 {offsets = [2, 0, 0], sizes = [8, 8, 16], strides = [1, 1, 1]} : vector<10x10x16xf32> to vector<8x8x16xf32>
    %47 = vector.extract_strided_slice %2 {offsets = [6, 0], sizes = [1, 16], strides = [1, 1]} : vector<9x16xf32> to vector<1x16xf32>
    %48 = vector.shape_cast %47 : vector<1x16xf32> to vector<16xf32>
    %49 = vector.shape_cast %48 : vector<16xf32> to vector<1x1x16xf32>
    %50 = vector.broadcast %49 : vector<1x1x16xf32> to vector<8x8x16xf32>
    %51 = arith.mulf %46, %50 : vector<8x8x16xf32>
    %52 = arith.addf %45, %51 : vector<8x8x16xf32>
    %53 = vector.extract_strided_slice %1 {offsets = [2, 1, 0], sizes = [8, 8, 16], strides = [1, 1, 1]} : vector<10x10x16xf32> to vector<8x8x16xf32>
    %54 = vector.extract_strided_slice %2 {offsets = [7, 0], sizes = [1, 16], strides = [1, 1]} : vector<9x16xf32> to vector<1x16xf32>
    %55 = vector.shape_cast %54 : vector<1x16xf32> to vector<16xf32>
    %56 = vector.shape_cast %55 : vector<16xf32> to vector<1x1x16xf32>
    %57 = vector.broadcast %56 : vector<1x1x16xf32> to vector<8x8x16xf32>
    %58 = arith.mulf %53, %57 : vector<8x8x16xf32>
    %59 = arith.addf %52, %58 : vector<8x8x16xf32>
    %60 = vector.extract_strided_slice %1 {offsets = [2, 2, 0], sizes = [8, 8, 16], strides = [1, 1, 1]} : vector<10x10x16xf32> to vector<8x8x16xf32>
    %61 = vector.extract_strided_slice %2 {offsets = [8, 0], sizes = [1, 16], strides = [1, 1]} : vector<9x16xf32> to vector<1x16xf32>
    %62 = vector.shape_cast %61 : vector<1x16xf32> to vector<16xf32>
    %63 = vector.shape_cast %62 : vector<16xf32> to vector<1x1x16xf32>
    %64 = vector.broadcast %63 : vector<1x1x16xf32> to vector<8x8x16xf32>
    %65 = arith.mulf %60, %64 : vector<8x8x16xf32>
    %66 = arith.addf %59, %65 : vector<8x8x16xf32>
    %c0_5 = arith.constant 0 : index
    %c0_6 = arith.constant 0 : index
    %67 = vector.load %arg4[%c0_5, %c0_6] : memref<1x16xf32, #tpu.memory_space<vmem>>, vector<1x16xf32>
    %68 = vector.shape_cast %67 : vector<1x16xf32> to vector<1x1x16xf32>
    %69 = vector.broadcast %68 : vector<1x1x16xf32> to vector<8x8x16xf32>
    %70 = arith.addf %66, %69 : vector<8x8x16xf32>
    %71 = vector.shape_cast %70 : vector<8x8x16xf32> to vector<1x8x8x16xf32>
    %c0_7 = arith.constant 0 : index
    %c0_8 = arith.constant 0 : index
    %c0_9 = arith.constant 0 : index
    %c0_10 = arith.constant 0 : index
    %72 = vector.load %arg5[%c0_7, %c0_8, %c0_9, %c0_10] : memref<1x8x8x16xf32, #tpu.memory_space<vmem>>, vector<1x8x8x16xf32>
    tpu.vector_store %arg5[%c0_7, %c0_8, %c0_9, %c0_10], %71 {strides = array<i32>} : memref<1x8x8x16xf32, #tpu.memory_space<vmem>>, vector<1x8x8x16xf32>,
    return
  }
  func.func @transform_0(%arg0: i32, %arg1: i32) -> (i32, i32, i32, i32) {
    %c0_i32 = arith.constant 0 : i32
    %c0_i32_0 = arith.constant 0 : i32
    %c0_i32_1 = arith.constant 0 : i32
    return %arg0, %c0_i32, %c0_i32_0, %arg1 : i32, i32, i32, i32
  }
  func.func @transform_1(%arg0: i32, %arg1: i32) -> (i32, i32) {
    %c0_i32 = arith.constant 0 : i32
    %c0_i32_0 = arith.constant 0 : i32
    return %c0_i32, %arg1 : i32, i32
  }
  func.func @transform_2(%arg0: i32, %arg1: i32) -> (i32, i32) {
    %c0_i32 = arith.constant 0 : i32
    %c0_i32_0 = arith.constant 0 : i32
    return %c0_i32, %arg1 : i32, i32
  }
  func.func @transform_3(%arg0: i32, %arg1: i32) -> (i32, i32, i32, i32) {
    %c0_i32 = arith.constant 0 : i32
    %c0_i32_0 = arith.constant 0 : i32
    %c0_i32_1 = arith.constant 0 : i32
    return %arg0, %c0_i32, %c0_i32_0, %arg1 : i32, i32, i32, i32
  }
}

module attributes {stable_mosaic.version = 11 : i64} {
  func.func @_dwconv3x3_kernel(%arg0: i32, %arg1: i32, %arg2: memref<1x18x18x4xf32, #tpu.memory_space<vmem>>, %arg3: memref<9x4xf32, #tpu.memory_space<vmem>>, %arg4: memref<1x4xf32, #tpu.memory_space<vmem>>, %arg5: memref<1x16x16x4xf32, #tpu.memory_space<vmem>>) attributes {dimension_semantics = [#tpu.dimension_semantics<parallel>, #tpu.dimension_semantics<parallel>], iteration_bounds = array<i64: 2, 1>, scalar_prefetch = 0 : i64, scratch_operands = 0 : i64, tpu.core_type = #tpu.core_type<tc>, window_params = [{transform_indices = @transform_0, window_bounds = array<i64: 1, 18, 18, 4>}, {transform_indices = @transform_1, window_bounds = array<i64: 9, 4>}, {transform_indices = @transform_2, window_bounds = array<i64: 1, 4>}, {transform_indices = @transform_3, window_bounds = array<i64: 1, 16, 16, 4>}]} {
    %c0 = arith.constant 0 : index
    %c0_0 = arith.constant 0 : index
    %c0_1 = arith.constant 0 : index
    %c0_2 = arith.constant 0 : index
    %0 = vector.load %arg2[%c0, %c0_0, %c0_1, %c0_2] : memref<1x18x18x4xf32, #tpu.memory_space<vmem>>, vector<1x18x18x4xf32>
    %1 = vector.shape_cast %0 : vector<1x18x18x4xf32> to vector<18x18x4xf32>
    %c0_3 = arith.constant 0 : index
    %c0_4 = arith.constant 0 : index
    %2 = vector.load %arg3[%c0_3, %c0_4] : memref<9x4xf32, #tpu.memory_space<vmem>>, vector<9x4xf32>
    %cst = arith.constant 0.000000e+00 : f32
    %3 = vector.broadcast %cst : f32 to vector<16x16x4xf32>
    %4 = vector.extract_strided_slice %1 {offsets = [0, 0, 0], sizes = [16, 16, 4], strides = [1, 1, 1]} : vector<18x18x4xf32> to vector<16x16x4xf32>
    %5 = vector.extract_strided_slice %2 {offsets = [0, 0], sizes = [1, 4], strides = [1, 1]} : vector<9x4xf32> to vector<1x4xf32>
    %6 = vector.shape_cast %5 : vector<1x4xf32> to vector<4xf32>
    %7 = vector.shape_cast %6 : vector<4xf32> to vector<1x1x4xf32>
    %8 = vector.broadcast %7 : vector<1x1x4xf32> to vector<16x16x4xf32>
    %9 = arith.mulf %4, %8 : vector<16x16x4xf32>
    %10 = arith.addf %3, %9 : vector<16x16x4xf32>
    %11 = vector.extract_strided_slice %1 {offsets = [0, 1, 0], sizes = [16, 16, 4], strides = [1, 1, 1]} : vector<18x18x4xf32> to vector<16x16x4xf32>
    %12 = vector.extract_strided_slice %2 {offsets = [1, 0], sizes = [1, 4], strides = [1, 1]} : vector<9x4xf32> to vector<1x4xf32>
    %13 = vector.shape_cast %12 : vector<1x4xf32> to vector<4xf32>
    %14 = vector.shape_cast %13 : vector<4xf32> to vector<1x1x4xf32>
    %15 = vector.broadcast %14 : vector<1x1x4xf32> to vector<16x16x4xf32>
    %16 = arith.mulf %11, %15 : vector<16x16x4xf32>
    %17 = arith.addf %10, %16 : vector<16x16x4xf32>
    %18 = vector.extract_strided_slice %1 {offsets = [0, 2, 0], sizes = [16, 16, 4], strides = [1, 1, 1]} : vector<18x18x4xf32> to vector<16x16x4xf32>
    %19 = vector.extract_strided_slice %2 {offsets = [2, 0], sizes = [1, 4], strides = [1, 1]} : vector<9x4xf32> to vector<1x4xf32>
    %20 = vector.shape_cast %19 : vector<1x4xf32> to vector<4xf32>
    %21 = vector.shape_cast %20 : vector<4xf32> to vector<1x1x4xf32>
    %22 = vector.broadcast %21 : vector<1x1x4xf32> to vector<16x16x4xf32>
    %23 = arith.mulf %18, %22 : vector<16x16x4xf32>
    %24 = arith.addf %17, %23 : vector<16x16x4xf32>
    %25 = vector.extract_strided_slice %1 {offsets = [1, 0, 0], sizes = [16, 16, 4], strides = [1, 1, 1]} : vector<18x18x4xf32> to vector<16x16x4xf32>
    %26 = vector.extract_strided_slice %2 {offsets = [3, 0], sizes = [1, 4], strides = [1, 1]} : vector<9x4xf32> to vector<1x4xf32>
    %27 = vector.shape_cast %26 : vector<1x4xf32> to vector<4xf32>
    %28 = vector.shape_cast %27 : vector<4xf32> to vector<1x1x4xf32>
    %29 = vector.broadcast %28 : vector<1x1x4xf32> to vector<16x16x4xf32>
    %30 = arith.mulf %25, %29 : vector<16x16x4xf32>
    %31 = arith.addf %24, %30 : vector<16x16x4xf32>
    %32 = vector.extract_strided_slice %1 {offsets = [1, 1, 0], sizes = [16, 16, 4], strides = [1, 1, 1]} : vector<18x18x4xf32> to vector<16x16x4xf32>
    %33 = vector.extract_strided_slice %2 {offsets = [4, 0], sizes = [1, 4], strides = [1, 1]} : vector<9x4xf32> to vector<1x4xf32>
    %34 = vector.shape_cast %33 : vector<1x4xf32> to vector<4xf32>
    %35 = vector.shape_cast %34 : vector<4xf32> to vector<1x1x4xf32>
    %36 = vector.broadcast %35 : vector<1x1x4xf32> to vector<16x16x4xf32>
    %37 = arith.mulf %32, %36 : vector<16x16x4xf32>
    %38 = arith.addf %31, %37 : vector<16x16x4xf32>
    %39 = vector.extract_strided_slice %1 {offsets = [1, 2, 0], sizes = [16, 16, 4], strides = [1, 1, 1]} : vector<18x18x4xf32> to vector<16x16x4xf32>
    %40 = vector.extract_strided_slice %2 {offsets = [5, 0], sizes = [1, 4], strides = [1, 1]} : vector<9x4xf32> to vector<1x4xf32>
    %41 = vector.shape_cast %40 : vector<1x4xf32> to vector<4xf32>
    %42 = vector.shape_cast %41 : vector<4xf32> to vector<1x1x4xf32>
    %43 = vector.broadcast %42 : vector<1x1x4xf32> to vector<16x16x4xf32>
    %44 = arith.mulf %39, %43 : vector<16x16x4xf32>
    %45 = arith.addf %38, %44 : vector<16x16x4xf32>
    %46 = vector.extract_strided_slice %1 {offsets = [2, 0, 0], sizes = [16, 16, 4], strides = [1, 1, 1]} : vector<18x18x4xf32> to vector<16x16x4xf32>
    %47 = vector.extract_strided_slice %2 {offsets = [6, 0], sizes = [1, 4], strides = [1, 1]} : vector<9x4xf32> to vector<1x4xf32>
    %48 = vector.shape_cast %47 : vector<1x4xf32> to vector<4xf32>
    %49 = vector.shape_cast %48 : vector<4xf32> to vector<1x1x4xf32>
    %50 = vector.broadcast %49 : vector<1x1x4xf32> to vector<16x16x4xf32>
    %51 = arith.mulf %46, %50 : vector<16x16x4xf32>
    %52 = arith.addf %45, %51 : vector<16x16x4xf32>
    %53 = vector.extract_strided_slice %1 {offsets = [2, 1, 0], sizes = [16, 16, 4], strides = [1, 1, 1]} : vector<18x18x4xf32> to vector<16x16x4xf32>
    %54 = vector.extract_strided_slice %2 {offsets = [7, 0], sizes = [1, 4], strides = [1, 1]} : vector<9x4xf32> to vector<1x4xf32>
    %55 = vector.shape_cast %54 : vector<1x4xf32> to vector<4xf32>
    %56 = vector.shape_cast %55 : vector<4xf32> to vector<1x1x4xf32>
    %57 = vector.broadcast %56 : vector<1x1x4xf32> to vector<16x16x4xf32>
    %58 = arith.mulf %53, %57 : vector<16x16x4xf32>
    %59 = arith.addf %52, %58 : vector<16x16x4xf32>
    %60 = vector.extract_strided_slice %1 {offsets = [2, 2, 0], sizes = [16, 16, 4], strides = [1, 1, 1]} : vector<18x18x4xf32> to vector<16x16x4xf32>
    %61 = vector.extract_strided_slice %2 {offsets = [8, 0], sizes = [1, 4], strides = [1, 1]} : vector<9x4xf32> to vector<1x4xf32>
    %62 = vector.shape_cast %61 : vector<1x4xf32> to vector<4xf32>
    %63 = vector.shape_cast %62 : vector<4xf32> to vector<1x1x4xf32>
    %64 = vector.broadcast %63 : vector<1x1x4xf32> to vector<16x16x4xf32>
    %65 = arith.mulf %60, %64 : vector<16x16x4xf32>
    %66 = arith.addf %59, %65 : vector<16x16x4xf32>
    %c0_5 = arith.constant 0 : index
    %c0_6 = arith.constant 0 : index
    %67 = vector.load %arg4[%c0_5, %c0_6] : memref<1x4xf32, #tpu.memory_space<vmem>>, vector<1x4xf32>
    %68 = vector.shape_cast %67 : vector<1x4xf32> to vector<1x1x4xf32>
    %69 = vector.broadcast %68 : vector<1x1x4xf32> to vector<16x16x4xf32>
    %70 = arith.addf %66, %69 : vector<16x16x4xf32>
    %71 = vector.shape_cast %70 : vector<16x16x4xf32> to vector<1x16x16x4xf32>
    %c0_7 = arith.constant 0 : index
    %c0_8 = arith.constant 0 : index
    %c0_9 = arith.constant 0 : index
    %c0_10 = arith.constant 0 : index
    %72 = vector.load %arg5[%c0_7, %c0_8, %c0_9, %c0_10] : memref<1x16x16x4xf32, #tpu.memory_space<vmem>>, vector<1x16x16x4xf32>
    tpu.vector_store %arg5[%c0_7, %c0_8, %c0_9, %c0_10], %71 {strides = array<i32>} : memref<1x16x16x4xf32, #tpu.memory_space<vmem>>, vector<1x16x16x4xf32>,
    return
  }
  func.func @transform_0(%arg0: i32, %arg1: i32) -> (i32, i32, i32, i32) {
    %c0_i32 = arith.constant 0 : i32
    %c0_i32_0 = arith.constant 0 : i32
    %c0_i32_1 = arith.constant 0 : i32
    return %arg0, %c0_i32, %c0_i32_0, %arg1 : i32, i32, i32, i32
  }
  func.func @transform_1(%arg0: i32, %arg1: i32) -> (i32, i32) {
    %c0_i32 = arith.constant 0 : i32
    %c0_i32_0 = arith.constant 0 : i32
    return %c0_i32, %arg1 : i32, i32
  }
  func.func @transform_2(%arg0: i32, %arg1: i32) -> (i32, i32) {
    %c0_i32 = arith.constant 0 : i32
    %c0_i32_0 = arith.constant 0 : i32
    return %c0_i32, %arg1 : i32, i32
  }
  func.func @transform_3(%arg0: i32, %arg1: i32) -> (i32, i32, i32, i32) {
    %c0_i32 = arith.constant 0 : i32
    %c0_i32_0 = arith.constant 0 : i32
    %c0_i32_1 = arith.constant 0 : i32
    return %arg0, %c0_i32, %c0_i32_0, %arg1 : i32, i32, i32, i32
  }
}

module attributes {stable_mosaic.version = 11 : i64} {
  func.func @kernel(%arg0: i32, %arg1: memref<16x128xf32, #tpu.memory_space<vmem>>, %arg2: memref<16x128xf32, #tpu.memory_space<vmem>>, %arg3: memref<16x128xf32, #tpu.memory_space<vmem>>, %arg4: memref<1x128xf32, #tpu.memory_space<vmem>>, %arg5: memref<1x128xf32, #tpu.memory_space<vmem>>, %arg6: memref<16x128xf32, #tpu.memory_space<vmem>>) attributes {dimension_semantics = [#tpu.dimension_semantics<parallel>], iteration_bounds = array<i64: 1>, scalar_prefetch = 0 : i64, scratch_operands = 0 : i64, tpu.core_type = #tpu.core_type<tc>, window_params = [{transform_indices = @transform_0, window_bounds = array<i64: 16, 128>}, {transform_indices = @transform_1, window_bounds = array<i64: 16, 128>}, {transform_indices = @transform_2, window_bounds = array<i64: 16, 128>}, {pipeline_mode = #tpu.pipeline_mode<synchronous>, transform_indices = @transform_3, window_bounds = array<i64: 1, 128>}, {pipeline_mode = #tpu.pipeline_mode<synchronous>, transform_indices = @transform_4, window_bounds = array<i64: 1, 128>}, {transform_indices = @transform_5, window_bounds = array<i64: 16, 128>}]} {
    %c0 = arith.constant 0 : index
    %c0_0 = arith.constant 0 : index
    %0 = vector.load %arg1[%c0, %c0_0] : memref<16x128xf32, #tpu.memory_space<vmem>>, vector<16x128xf32>
    %c0_1 = arith.constant 0 : index
    %c0_2 = arith.constant 0 : index
    %1 = vector.load %arg2[%c0_1, %c0_2] : memref<16x128xf32, #tpu.memory_space<vmem>>, vector<16x128xf32>
    %2 = arith.addf %0, %1 : vector<16x128xf32>
    %c0_3 = arith.constant 0 : index
    %c0_4 = arith.constant 0 : index
    %3 = vector.load %arg3[%c0_3, %c0_4] : memref<16x128xf32, #tpu.memory_space<vmem>>, vector<16x128xf32>
    %c0_5 = arith.constant 0 : index
    %c0_6 = arith.constant 0 : index
    %4 = vector.load %arg4[%c0_5, %c0_6] : memref<1x128xf32, #tpu.memory_space<vmem>>, vector<1x128xf32>
    %5 = vector.broadcast %4 : vector<1x128xf32> to vector<16x128xf32>
    %6 = arith.mulf %2, %5 : vector<16x128xf32>
    %c0_7 = arith.constant 0 : index
    %c0_8 = arith.constant 0 : index
    %7 = vector.load %arg5[%c0_7, %c0_8] : memref<1x128xf32, #tpu.memory_space<vmem>>, vector<1x128xf32>
    %8 = vector.broadcast %7 : vector<1x128xf32> to vector<16x128xf32>
    %9 = arith.addf %6, %8 : vector<16x128xf32>
    %10 = arith.addf %9, %3 : vector<16x128xf32>
    %cst = arith.constant 0.000000e+00 : f32
    %11 = vector.broadcast %cst : f32 to vector<16x128xf32>
    %12 = arith.maximumf %10, %11 : vector<16x128xf32>
    %c0_9 = arith.constant 0 : index
    %c0_10 = arith.constant 0 : index
    %13 = vector.load %arg6[%c0_9, %c0_10] : memref<16x128xf32, #tpu.memory_space<vmem>>, vector<16x128xf32>
    tpu.vector_store %arg6[%c0_9, %c0_10], %12 {strides = array<i32>} : memref<16x128xf32, #tpu.memory_space<vmem>>, vector<16x128xf32>,
    return
  }
  func.func @transform_0(%arg0: i32) -> (i32, i32) {
    %c0_i32 = arith.constant 0 : i32
    %c0_i32_0 = arith.constant 0 : i32
    return %arg0, %c0_i32 : i32, i32
  }
  func.func @transform_1(%arg0: i32) -> (i32, i32) {
    %c0_i32 = arith.constant 0 : i32
    %c0_i32_0 = arith.constant 0 : i32
    return %arg0, %c0_i32 : i32, i32
  }
  func.func @transform_2(%arg0: i32) -> (i32, i32) {
    %c0_i32 = arith.constant 0 : i32
    %c0_i32_0 = arith.constant 0 : i32
    return %arg0, %c0_i32 : i32, i32
  }
  func.func @transform_3(%arg0: i32) -> (i32, i32) {
    %c0_i32 = arith.constant 0 : i32
    %c0_i32_0 = arith.constant 0 : i32
    %c0_i32_1 = arith.constant 0 : i32
    return %c0_i32, %c0_i32_0 : i32, i32
  }
  func.func @transform_4(%arg0: i32) -> (i32, i32) {
    %c0_i32 = arith.constant 0 : i32
    %c0_i32_0 = arith.constant 0 : i32
    %c0_i32_1 = arith.constant 0 : i32
    return %c0_i32, %c0_i32_0 : i32, i32
  }
  func.func @transform_5(%arg0: i32) -> (i32, i32) {
    %c0_i32 = arith.constant 0 : i32
    %c0_i32_0 = arith.constant 0 : i32
    return %arg0, %c0_i32 : i32, i32
  }
}

module attributes {stable_mosaic.version = 11 : i64} {
  func.func @kernel(%arg0: i32, %arg1: memref<16x128xf32, #tpu.memory_space<vmem>>, %arg2: memref<16x128xf32, #tpu.memory_space<vmem>>, %arg3: memref<2x128xf32, #tpu.memory_space<vmem>>) attributes {dimension_semantics = [#tpu.dimension_semantics<arbitrary>], iteration_bounds = array<i64: 1>, scalar_prefetch = 0 : i64, scratch_operands = 0 : i64, tpu.core_type = #tpu.core_type<tc>, window_params = [{transform_indices = @transform_0, window_bounds = array<i64: 16, 128>}, {transform_indices = @transform_1, window_bounds = array<i64: 16, 128>}, {pipeline_mode = #tpu.pipeline_mode<synchronous>, transform_indices = @transform_2, window_bounds = array<i64: 2, 128>}]} {
    %c0_i32 = arith.constant 0 : i32
    %0 = arith.cmpi eq, %arg0, %c0_i32 : i32
    %1 = arith.extui %0 : i1 to i32
    %c0_i32_0 = arith.constant 0 : i32
    %2 = arith.cmpi ne, %1, %c0_i32_0 : i32
    scf.if %2 {
      %cst_9 = arith.constant 0.000000e+00 : f32
      %15 = vector.broadcast %cst_9 : f32 to vector<2x128xf32>
      %c0_10 = arith.constant 0 : index
      %c0_11 = arith.constant 0 : index
      %16 = vector.load %arg3[%c0_10, %c0_11] : memref<2x128xf32, #tpu.memory_space<vmem>>, vector<2x128xf32>
      tpu.vector_store %arg3[%c0_10, %c0_11], %15 {strides = array<i32>} : memref<2x128xf32, #tpu.memory_space<vmem>>, vector<2x128xf32>,
    } else {
    }
    %c0 = arith.constant 0 : index
    %c0_1 = arith.constant 0 : index
    %3 = vector.load %arg1[%c0, %c0_1] : memref<16x128xf32, #tpu.memory_space<vmem>>, vector<16x128xf32>
    %c0_2 = arith.constant 0 : index
    %c0_3 = arith.constant 0 : index
    %4 = vector.load %arg2[%c0_2, %c0_3] : memref<16x128xf32, #tpu.memory_space<vmem>>, vector<16x128xf32>
    %5 = arith.addf %3, %4 : vector<16x128xf32>
    %cst = arith.constant dense<0.000000e+00> : vector<128xf32>
    %6 = vector.multi_reduction <add>, %5, %cst [0] : vector<16x128xf32> to vector<128xf32>
    %7 = vector.shape_cast %6 : vector<128xf32> to vector<1x128xf32>
    %8 = arith.mulf %5, %5 : vector<16x128xf32>
    %cst_4 = arith.constant dense<0.000000e+00> : vector<128xf32>
    %9 = vector.multi_reduction <add>, %8, %cst_4 [0] : vector<16x128xf32> to vector<128xf32>
    %10 = vector.shape_cast %9 : vector<128xf32> to vector<1x128xf32>
    %11 = tpu.concatenate %7, %10 in 0 : vector<1x128xf32>, vector<1x128xf32> -> vector<2x128xf32>
    %c0_5 = arith.constant 0 : index
    %c0_6 = arith.constant 0 : index
    %12 = vector.load %arg3[%c0_5, %c0_6] : memref<2x128xf32, #tpu.memory_space<vmem>>, vector<2x128xf32>
    %13 = arith.addf %12, %11 : vector<2x128xf32>
    %c0_7 = arith.constant 0 : index
    %c0_8 = arith.constant 0 : index
    %14 = vector.load %arg3[%c0_7, %c0_8] : memref<2x128xf32, #tpu.memory_space<vmem>>, vector<2x128xf32>
    tpu.vector_store %arg3[%c0_7, %c0_8], %13 {strides = array<i32>} : memref<2x128xf32, #tpu.memory_space<vmem>>, vector<2x128xf32>,
    return
  }
  func.func @transform_0(%arg0: i32) -> (i32, i32) {
    %c0_i32 = arith.constant 0 : i32
    %c0_i32_0 = arith.constant 0 : i32
    return %arg0, %c0_i32 : i32, i32
  }
  func.func @transform_1(%arg0: i32) -> (i32, i32) {
    %c0_i32 = arith.constant 0 : i32
    %c0_i32_0 = arith.constant 0 : i32
    return %arg0, %c0_i32 : i32, i32
  }
  func.func @transform_2(%arg0: i32) -> (i32, i32) {
    %c0_i32 = arith.constant 0 : i32
    %c0_i32_0 = arith.constant 0 : i32
    %c0_i32_1 = arith.constant 0 : i32
    return %c0_i32, %c0_i32_0 : i32, i32
  }
}

</mosaic_0001>

<llo_original>
// kernel: mul.30
$region0: #{mul.30}
  #allocation2 [shape = 's32[1]{0}', space=sflag, size = 0x4, scoped, tag = 'scoped memory for mul.30']
  %s0 = inlined_call_operand.hbm [shape: f32[1,4], index: 0, kind: input, shape index: {}]
  %s1 = inlined_call_operand.vmem [shape: f32[1,4], index: 1, kind: input, shape index: {}]
  %s2 = inlined_call_operand.vmem [shape: f32[1,4], index: 2, kind: output, shape index: {}]
  $region1: #{mul.30} parent=0
    #allocation0 [shape = 'u8[512]{0}', space=vmem, size = 0x400, scoped, tag = 'operand span for operand 0']
    #allocation1 [shape = 's32[1]{0}', space=sflag, size = 0x4, scoped, tag = 'scoped memory for mul.30']
    %3 = vsyncpa [#allocation1], 0
    %5 = vsyncadd [#allocation1], 0
    %s7 = sshll.u32 %s0, 4
    %s8 = int_to_ptr.hbm [resolvable:$true] %s7
    %s9 = sshll.u32 [#allocation0], 4
    %s10 = int_to_ptr.vmem [resolvable:$true] %s9
    %12 = dma.hbm_to_vmem [thread:$0]  %s8, 16, %s10, [#allocation1]
    %14 = dma.done [#allocation1], 16
    %v15 = vld [vmem:[#allocation0] sm:$0x1]
    %v16 = vld [vmem:[%s1] sm:$0x1]
    %17 = xla_tuple %v15, %v16
    %18 = xla_tuple %17
    %v19 = vmul.f32 %v15, %v16
    %20 = xla_tuple %v19
    %21 = vst [vmem:[%s2] sm:$0x1] %v19
    %22 = vsyncpa [#allocation1], 1

// kernel: squeeze.12
$region0: #{squeeze.12}
  %s0 = inlined_call_operand.vmem [shape: f32[128], index: 0, kind: input, shape index: {}]
  %s1 = inlined_call_operand.vmem [shape: f32[32,4], index: 1, kind: output, shape index: {}]
  $region1: #{squeeze.12} parent=0
    #allocation0 [shape = 'u8[4096]{0}', space=vmem, size = 0x1000, scoped, tag = 'scoped mem for input reshape']
    %s3 = ssub.s32 2, 1
    %v4 = vld [vmem:[%s0] sm:%s3]
    %5 = vst [vmem:[#allocation0] sm:%s3] %v4
    %v6 = vld [vmem:[#allocation0] sm:$0x1]
    %vm7 = vcmask 31744
    %8 = vst.msk [vmem:[%s1] sm:$0x1] %vm7, %v6
    %v9 = vld [vmem:[#allocation0] sm:$0x1]
    %10 = vrot.lane.b32.xlu0 %v9, 124
    %v11 = vpop.permute.xlu0 %10
    %vm12 = vcmask 31744
    %s13 = scalar_lea.vmem %s1, 1
    %14 = vst.msk [vmem:[%s13] sm:$0x1] %vm12, %v11
    %v15 = vld [vmem:[#allocation0] sm:$0x1]
    %16 = vrot.lane.b32.xlu0 %v15, 120
    %v17 = vpop.permute.xlu0 %16
    %vm18 = vcmask 31744
    %s19 = scalar_lea.vmem %s1, 2
    %20 = vst.msk [vmem:[%s19] sm:$0x1] %vm18, %v17
    %v21 = vld [vmem:[#allocation0] sm:$0x1]
    %22 = vrot.lane.b32.xlu0 %v21, 116
    %v23 = vpop.permute.xlu0 %22
    %vm24 = vcmask 31744
    %s25 = scalar_lea.vmem %s1, 3
    %26 = vst.msk [vmem:[%s25] sm:$0x1] %vm24, %v23
    %v27 = vld [vmem:[#allocation0] sm:$0x1]
    %28 = vrot.lane.b32.xlu0 %v27, 112
    %v29 = vpop.permute.xlu0 %28
    %vm30 = vcmask 31744
    %s31 = scalar_lea.vmem %s1, 4
    %32 = vst.msk [vmem:[%s31] sm:$0x1] %vm30, %v29
    %v33 = vld [vmem:[#allocation0] sm:$0x1]
    %34 = vrot.lane.b32.xlu0 %v33, 108
    %v35 = vpop.permute.xlu0 %34
    %vm36 = vcmask 31744
    %s37 = scalar_lea.vmem %s1, 5
    %38 = vst.msk [vmem:[%s37] sm:$0x1] %vm36, %v35
    %v39 = vld [vmem:[#allocation0] sm:$0x1]
    %40 = vrot.lane.b32.xlu0 %v39, 104
    %v41 = vpop.permute.xlu0 %40
    %vm42 = vcmask 31744
    %s43 = scalar_lea.vmem %s1, 6
    %44 = vst.msk [vmem:[%s43] sm:$0x1] %vm42, %v41
    %v45 = vld [vmem:[#allocation0] sm:$0x1]
    %46 = vrot.lane.b32.xlu0 %v45, 100
    %v47 = vpop.permute.xlu0 %46
    %vm48 = vcmask 31744
    %s49 = scalar_lea.vmem %s1, 7
    %50 = vst.msk [vmem:[%s49] sm:$0x1] %vm48, %v47
    %v51 = vld [vmem:[#allocation0] sm:$0x1]
    %52 = vrot.lane.b32.xlu0 %v51, 96
    %v53 = vpop.permute.xlu0 %52
    %vm54 = vcmask 31744
    %s55 = scalar_lea.vmem %s1, 8
    %56 = vst.msk [vmem:[%s55] sm:$0x1] %vm54, %v53
    %v57 = vld [vmem:[#allocation0] sm:$0x1]
    %58 = vrot.lane.b32.xlu0 %v57, 92
    %v59 = vpop.permute.xlu0 %58
    %vm60 = vcmask 31744
    %s61 = scalar_lea.vmem %s1, 9
    %62 = vst.msk [vmem:[%s61] sm:$0x1] %vm60, %v59
    %v63 = vld [vmem:[#allocation0] sm:$0x1]
    %64 = vrot.lane.b32.xlu0 %v63, 88
    %v65 = vpop.permute.xlu0 %64
    %vm66 = vcmask 31744
    %s67 = scalar_lea.vmem %s1, 10
    %68 = vst.msk [vmem:[%s67] sm:$0x1] %vm66, %v65
    %v69 = vld [vmem:[#allocation0] sm:$0x1]
    %70 = vrot.lane.b32.xlu0 %v69, 84
    %v71 = vpop.permute.xlu0 %70
    %vm72 = vcmask 31744
    %s73 = scalar_lea.vmem %s1, 11
    %74 = vst.msk [vmem:[%s73] sm:$0x1] %vm72, %v71
    %v75 = vld [vmem:[#allocation0] sm:$0x1]
    %76 = vrot.lane.b32.xlu0 %v75, 80
    %v77 = vpop.permute.xlu0 %76
    %vm78 = vcmask 31744
    %s79 = scalar_lea.vmem %s1, 12
    %80 = vst.msk [vmem:[%s79] sm:$0x1] %vm78, %v77
    %v81 = vld [vmem:[#allocation0] sm:$0x1]
    %82 = vrot.lane.b32.xlu0 %v81, 76
    %v83 = vpop.permute.xlu0 %82
    %vm84 = vcmask 31744
    %s85 = scalar_lea.vmem %s1, 13
    %86 = vst.msk [vmem:[%s85] sm:$0x1] %vm84, %v83
    %v87 = vld [vmem:[#allocation0] sm:$0x1]
    %88 = vrot.lane.b32.xlu0 %v87, 72
    %v89 = vpop.permute.xlu0 %88
    %vm90 = vcmask 31744
    %s91 = scalar_lea.vmem %s1, 14
    %92 = vst.msk [vmem:[%s91] sm:$0x1] %vm90, %v89
    %v93 = vld [vmem:[#allocation0] sm:$0x1]
    %94 = vrot.lane.b32.xlu0 %v93, 68
    %v95 = vpop.permute.xlu0 %94
    %vm96 = vcmask 31744
    %s97 = scalar_lea.vmem %s1, 15
    %98 = vst.msk [vmem:[%s97] sm:$0x1] %vm96, %v95
    %v99 = vld [vmem:[#allocation0] sm:$0x1]
    %100 = vrot.lane.b32.xlu0 %v99, 64
    %v101 = vpop.permute.xlu0 %100
    %vm102 = vcmask 31744
    %s103 = scalar_lea.vmem %s1, 16
    %104 = vst.msk [vmem:[%s103] sm:$0x1] %vm102, %v101
    %v105 = vld [vmem:[#allocation0] sm:$0x1]
    %106 = vrot.lane.b32.xlu0 %v105, 60
    %v107 = vpop.permute.xlu0 %106
    %vm108 = vcmask 31744
    %s109 = scalar_lea.vmem %s1, 17
    %110 = vst.msk [vmem:[%s109] sm:$0x1] %vm108, %v107
    %v111 = vld [vmem:[#allocation0] sm:$0x1]
    %112 = vrot.lane.b32.xlu0 %v111, 56
    %v113 = vpop.permute.xlu0 %112
    %vm114 = vcmask 31744
    %s115 = scalar_lea.vmem %s1, 18
    %116 = vst.msk [vmem:[%s115] sm:$0x1] %vm114, %v113
    %v117 = vld [vmem:[#allocation0] sm:$0x1]
    %118 = vrot.lane.b32.xlu0 %v117, 52
    %v119 = vpop.permute.xlu0 %118
    %vm120 = vcmask 31744
    %s121 = scalar_lea.vmem %s1, 19
    %122 = vst.msk [vmem:[%s121] sm:$0x1] %vm120, %v119
    %v123 = vld [vmem:[#allocation0] sm:$0x1]
    %124 = vrot.lane.b32.xlu0 %v123, 48
    %v125 = vpop.permute.xlu0 %124
    %vm126 = vcmask 31744
    %s127 = scalar_lea.vmem %s1, 20
    %128 = vst.msk [vmem:[%s127] sm:$0x1] %vm126, %v125
    %v129 = vld [vmem:[#allocation0] sm:$0x1]
    %130 = vrot.lane.b32.xlu0 %v129, 44
    %v131 = vpop.permute.xlu0 %130
    %vm132 = vcmask 31744
    %s133 = scalar_lea.vmem %s1, 21
    %134 = vst.msk [vmem:[%s133] sm:$0x1] %vm132, %v131
    %v135 = vld [vmem:[#allocation0] sm:$0x1]
    %136 = vrot.lane.b32.xlu0 %v135, 40
    %v137 = vpop.permute.xlu0 %136
    %vm138 = vcmask 31744
    %s139 = scalar_lea.vmem %s1, 22
    %140 = vst.msk [vmem:[%s139] sm:$0x1] %vm138, %v137
    %v141 = vld [vmem:[#allocation0] sm:$0x1]
    %142 = vrot.lane.b32.xlu0 %v141, 36
    %v143 = vpop.permute.xlu0 %142
    %vm144 = vcmask 31744
    %s145 = scalar_lea.vmem %s1, 23
    %146 = vst.msk [vmem:[%s145] sm:$0x1] %vm144, %v143
    %v147 = vld [vmem:[#allocation0] sm:$0x1]
    %148 = vrot.lane.b32.xlu0 %v147, 32
    %v149 = vpop.permute.xlu0 %148
    %vm150 = vcmask 31744
    %s151 = scalar_lea.vmem %s1, 24
    %152 = vst.msk [vmem:[%s151] sm:$0x1] %vm150, %v149
    %v153 = vld [vmem:[#allocation0] sm:$0x1]
    %154 = vrot.lane.b32.xlu0 %v153, 28
    %v155 = vpop.permute.xlu0 %154
    %vm156 = vcmask 31744
    %s157 = scalar_lea.vmem %s1, 25
    %158 = vst.msk [vmem:[%s157] sm:$0x1] %vm156, %v155
    %v159 = vld [vmem:[#allocation0] sm:$0x1]
    %160 = vrot.lane.b32.xlu0 %v159, 24
    %v161 = vpop.permute.xlu0 %160
    %vm162 = vcmask 31744
    %s163 = scalar_lea.vmem %s1, 26
    %164 = vst.msk [vmem:[%s163] sm:$0x1] %vm162, %v161
    %v165 = vld [vmem:[#allocation0] sm:$0x1]
    %166 = vrot.lane.b32.xlu0 %v165, 20
    %v167 = vpop.permute.xlu0 %166
    %vm168 = vcmask 31744
    %s169 = scalar_lea.vmem %s1, 27
    %170 = vst.msk [vmem:[%s169] sm:$0x1] %vm168, %v167
    %v171 = vld [vmem:[#allocation0] sm:$0x1]
    %172 = vrot.lane.b32.xlu0 %v171, 16
    %v173 = vpop.permute.xlu0 %172
    %vm174 = vcmask 31744
    %s175 = scalar_lea.vmem %s1, 28
    %176 = vst.msk [vmem:[%s175] sm:$0x1] %vm174, %v173
    %v177 = vld [vmem:[#allocation0] sm:$0x1]
    %178 = vrot.lane.b32.xlu0 %v177, 12
    %v179 = vpop.permute.xlu0 %178
    %vm180 = vcmask 31744
    %s181 = scalar_lea.vmem %s1, 29
    %182 = vst.msk [vmem:[%s181] sm:$0x1] %vm180, %v179
    %v183 = vld [vmem:[#allocation0] sm:$0x1]
    %184 = vrot.lane.b32.xlu0 %v183, 8
    %v185 = vpop.permute.xlu0 %184
    %vm186 = vcmask 31744
    %s187 = scalar_lea.vmem %s1, 30
    %188 = vst.msk [vmem:[%s187] sm:$0x1] %vm186, %v185
    %v189 = vld [vmem:[#allocation0] sm:$0x1]
    %190 = vrot.lane.b32.xlu0 %v189, 4
    %v191 = vpop.permute.xlu0 %190
    %vm192 = vcmask 31744
    %s193 = scalar_lea.vmem %s1, 31
    %194 = vst.msk [vmem:[%s193] sm:$0x1] %vm192, %v191

// kernel: tile.29
$region0: #{tile.29}
  %s0 = inlined_call_operand.vmem [shape: f32[32,4], index: 0, kind: input, shape index: {}]
  %s1 = inlined_call_operand.vmem [shape: f32[1,128], index: 1, kind: output, shape index: {}]
  $region1: #{tile.29} parent=0
    #allocation0 [shape = 'u8[4096]{0}', space=vmem, size = 0x1000, scoped, tag = 'scoped mem for output reshape']
    %v2 = vld [vmem:[%s0] sm:$0x1]
    %vm3 = vcmask 31744
    %4 = vst.msk [vmem:[#allocation0] sm:$0x1] %vm3, %v2
    %s5 = scalar_lea.vmem %s0, 31
    %v6 = vld [vmem:[%s5] sm:$0x1]
    %7 = vrot.lane.b32.xlu0 %v6, 124
    %v8 = vpop.permute.xlu0 %7
    %vm9 = vcmask 1048544
    %10 = vst.msk [vmem:[#allocation0] sm:$0x1] %vm9, %v8
    %s11 = scalar_lea.vmem %s0, 30
    %v12 = vld [vmem:[%s11] sm:$0x1]
    %13 = vrot.lane.b32.xlu0 %v12, 120
    %v14 = vpop.permute.xlu0 %13
    %vm15 = vcmask 1015744
    %16 = vst.msk [vmem:[#allocation0] sm:$0x1] %vm15, %v14
    %s17 = scalar_lea.vmem %s0, 29
    %v18 = vld [vmem:[%s17] sm:$0x1]
    %19 = vrot.lane.b32.xlu0 %v18, 116
    %v20 = vpop.permute.xlu0 %19
    %vm21 = vcmask 982944
    %22 = vst.msk [vmem:[#allocation0] sm:$0x1] %vm21, %v20
    %s23 = scalar_lea.vmem %s0, 28
    %v24 = vld [vmem:[%s23] sm:$0x1]
    %25 = vrot.lane.b32.xlu0 %v24, 112
    %v26 = vpop.permute.xlu0 %25
    %vm27 = vcmask 950144
    %28 = vst.msk [vmem:[#allocation0] sm:$0x1] %vm27, %v26
    %s29 = scalar_lea.vmem %s0, 27
    %v30 = vld [vmem:[%s29] sm:$0x1]
    %31 = vrot.lane.b32.xlu0 %v30, 108
    %v32 = vpop.permute.xlu0 %31
    %vm33 = vcmask 917344
    %34 = vst.msk [vmem:[#allocation0] sm:$0x1] %vm33, %v32
    %s35 = scalar_lea.vmem %s0, 26
    %v36 = vld [vmem:[%s35] sm:$0x1]
    %37 = vrot.lane.b32.xlu0 %v36, 104
    %v38 = vpop.permute.xlu0 %37
    %vm39 = vcmask 884544
    %40 = vst.msk [vmem:[#allocation0] sm:$0x1] %vm39, %v38
    %s41 = scalar_lea.vmem %s0, 25
    %v42 = vld [vmem:[%s41] sm:$0x1]
    %43 = vrot.lane.b32.xlu0 %v42, 100
    %v44 = vpop.permute.xlu0 %43
    %vm45 = vcmask 851744
    %46 = vst.msk [vmem:[#allocation0] sm:$0x1] %vm45, %v44
    %s47 = scalar_lea.vmem %s0, 24
    %v48 = vld [vmem:[%s47] sm:$0x1]
    %49 = vrot.lane.b32.xlu0 %v48, 96
    %v50 = vpop.permute.xlu0 %49
    %vm51 = vcmask 818944
    %52 = vst.msk [vmem:[#allocation0] sm:$0x1] %vm51, %v50
    %s53 = scalar_lea.vmem %s0, 23
    %v54 = vld [vmem:[%s53] sm:$0x1]
    %55 = vrot.lane.b32.xlu0 %v54, 92
    %v56 = vpop.permute.xlu0 %55
    %vm57 = vcmask 786144
    %58 = vst.msk [vmem:[#allocation0] sm:$0x1] %vm57, %v56
    %s59 = scalar_lea.vmem %s0, 22
    %v60 = vld [vmem:[%s59] sm:$0x1]
    %61 = vrot.lane.b32.xlu0 %v60, 88
    %v62 = vpop.permute.xlu0 %61
    %vm63 = vcmask 753344
    %64 = vst.msk [vmem:[#allocation0] sm:$0x1] %vm63, %v62
    %s65 = scalar_lea.vmem %s0, 21
    %v66 = vld [vmem:[%s65] sm:$0x1]
    %67 = vrot.lane.b32.xlu0 %v66, 84
    %v68 = vpop.permute.xlu0 %67
    %vm69 = vcmask 720544
    %70 = vst.msk [vmem:[#allocation0] sm:$0x1] %vm69, %v68
    %s71 = scalar_lea.vmem %s0, 20
    %v72 = vld [vmem:[%s71] sm:$0x1]
    %73 = vrot.lane.b32.xlu0 %v72, 80
    %v74 = vpop.permute.xlu0 %73
    %vm75 = vcmask 687744
    %76 = vst.msk [vmem:[#allocation0] sm:$0x1] %vm75, %v74
    %s77 = scalar_lea.vmem %s0, 19
    %v78 = vld [vmem:[%s77] sm:$0x1]
    %79 = vrot.lane.b32.xlu0 %v78, 76
    %v80 = vpop.permute.xlu0 %79
    %vm81 = vcmask 654944
    %82 = vst.msk [vmem:[#allocation0] sm:$0x1] %vm81, %v80
    %s83 = scalar_lea.vmem %s0, 18
    %v84 = vld [vmem:[%s83] sm:$0x1]
    %85 = vrot.lane.b32.xlu0 %v84, 72
    %v86 = vpop.permute.xlu0 %85
    %vm87 = vcmask 622144
    %88 = vst.msk [vmem:[#allocation0] sm:$0x1] %vm87, %v86
    %s89 = scalar_lea.vmem %s0, 17
    %v90 = vld [vmem:[%s89] sm:$0x1]
    %91 = vrot.lane.b32.xlu0 %v90, 68
    %v92 = vpop.permute.xlu0 %91
    %vm93 = vcmask 589344
    %94 = vst.msk [vmem:[#allocation0] sm:$0x1] %vm93, %v92
    %s95 = scalar_lea.vmem %s0, 16
    %v96 = vld [vmem:[%s95] sm:$0x1]
    %97 = vrot.lane.b32.xlu0 %v96, 64
    %v98 = vpop.permute.xlu0 %97
    %vm99 = vcmask 556544
    %100 = vst.msk [vmem:[#allocation0] sm:$0x1] %vm99, %v98
    %s101 = scalar_lea.vmem %s0, 15
    %v102 = vld [vmem:[%s101] sm:$0x1]
    %103 = vrot.lane.b32.xlu0 %v102, 60
    %v104 = vpop.permute.xlu0 %103
    %vm105 = vcmask 523744
    %106 = vst.msk [vmem:[#allocation0] sm:$0x1] %vm105, %v104
    %s107 = scalar_lea.vmem %s0, 14
    %v108 = vld [vmem:[%s107] sm:$0x1]
    %109 = vrot.lane.b32.xlu0 %v108, 56
    %v110 = vpop.permute.xlu0 %109
    %vm111 = vcmask 490944
    %112 = vst.msk [vmem:[#allocation0] sm:$0x1] %vm111, %v110
    %s113 = scalar_lea.vmem %s0, 13
    %v114 = vld [vmem:[%s113] sm:$0x1]
    %115 = vrot.lane.b32.xlu0 %v114, 52
    %v116 = vpop.permute.xlu0 %115
    %vm117 = vcmask 458144
    %118 = vst.msk [vmem:[#allocation0] sm:$0x1] %vm117, %v116
    %s119 = scalar_lea.vmem %s0, 12
    %v120 = vld [vmem:[%s119] sm:$0x1]
    %121 = vrot.lane.b32.xlu0 %v120, 48
    %v122 = vpop.permute.xlu0 %121
    %vm123 = vcmask 425344
    %124 = vst.msk [vmem:[#allocation0] sm:$0x1] %vm123, %v122
    %s125 = scalar_lea.vmem %s0, 11
    %v126 = vld [vmem:[%s125] sm:$0x1]
    %127 = vrot.lane.b32.xlu0 %v126, 44
    %v128 = vpop.permute.xlu0 %127
    %vm129 = vcmask 392544
    %130 = vst.msk [vmem:[#allocation0] sm:$0x1] %vm129, %v128
    %s131 = scalar_lea.vmem %s0, 10
    %v132 = vld [vmem:[%s131] sm:$0x1]
    %133 = vrot.lane.b32.xlu0 %v132, 40
    %v134 = vpop.permute.xlu0 %133
    %vm135 = vcmask 359744
    %136 = vst.msk [vmem:[#allocation0] sm:$0x1] %vm135, %v134
    %s137 = scalar_lea.vmem %s0, 9
    %v138 = vld [vmem:[%s137] sm:$0x1]
    %139 = vrot.lane.b32.xlu0 %v138, 36
    %v140 = vpop.permute.xlu0 %139
    %vm141 = vcmask 326944
    %142 = vst.msk [vmem:[#allocation0] sm:$0x1] %vm141, %v140
    %s143 = scalar_lea.vmem %s0, 8
    %v144 = vld [vmem:[%s143] sm:$0x1]
    %145 = vrot.lane.b32.xlu0 %v144, 32
    %v146 = vpop.permute.xlu0 %145
    %vm147 = vcmask 294144
    %148 = vst.msk [vmem:[#allocation0] sm:$0x1] %vm147, %v146
    %s149 = scalar_lea.vmem %s0, 7
    %v150 = vld [vmem:[%s149] sm:$0x1]
    %151 = vrot.lane.b32.xlu0 %v150, 28
    %v152 = vpop.permute.xlu0 %151
    %vm153 = vcmask 261344
    %154 = vst.msk [vmem:[#allocation0] sm:$0x1] %vm153, %v152
    %s155 = scalar_lea.vmem %s0, 6
    %v156 = vld [vmem:[%s155] sm:$0x1]
    %157 = vrot.lane.b32.xlu0 %v156, 24
    %v158 = vpop.permute.xlu0 %157
    %vm159 = vcmask 228544
    %160 = vst.msk [vmem:[#allocation0] sm:$0x1] %vm159, %v158
    %s161 = scalar_lea.vmem %s0, 5
    %v162 = vld [vmem:[%s161] sm:$0x1]
    %163 = vrot.lane.b32.xlu0 %v162, 20
    %v164 = vpop.permute.xlu0 %163
    %vm165 = vcmask 195744
    %166 = vst.msk [vmem:[#allocation0] sm:$0x1] %vm165, %v164
    %s167 = scalar_lea.vmem %s0, 4
    %v168 = vld [vmem:[%s167] sm:$0x1]
    %169 = vrot.lane.b32.xlu0 %v168, 16
    %v170 = vpop.permute.xlu0 %169
    %vm171 = vcmask 162944
    %172 = vst.msk [vmem:[#allocation0] sm:$0x1] %vm171, %v170
    %s173 = scalar_lea.vmem %s0, 3
    %v174 = vld [vmem:[%s173] sm:$0x1]
    %175 = vrot.lane.b32.xlu0 %v174, 12
    %v176 = vpop.permute.xlu0 %175
    %vm177 = vcmask 130144
    %178 = vst.msk [vmem:[#allocation0] sm:$0x1] %vm177, %v176
    %s179 = scalar_lea.vmem %s0, 2
    %v180 = vld [vmem:[%s179] sm:$0x1]
    %181 = vrot.lane.b32.xlu0 %v180, 8
    %v182 = vpop.permute.xlu0 %181
    %vm183 = vcmask 97344
    %184 = vst.msk [vmem:[#allocation0] sm:$0x1] %vm183, %v182
    %s185 = scalar_lea.vmem %s0, 1
    %v186 = vld [vmem:[%s185] sm:$0x1]
    %187 = vrot.lane.b32.xlu0 %v186, 4
    %v188 = vpop.permute.xlu0 %187
    %vm189 = vcmask 64544
    %190 = vst.msk [vmem:[#allocation0] sm:$0x1] %vm189, %v188
    %s192 = ssub.s32 2, 1
    %v193 = vld [vmem:[#allocation0] sm:%s192]
    %s195 = ssub.s32 2, 1
    %196 = vst [vmem:[%s1] sm:%s195] %v193

// kernel: tile.28
$region0: #{tile.28}
  #allocation0 [shape = 's32[1]{0}', space=sflag, size = 0x4, scoped, tag = 'scoped memory for tile.28']
  %s0 = inlined_call_operand.vmem [shape: f32[4], index: 0, kind: input, shape index: {}]
  %s1 = inlined_call_operand.vmem [shape: f32[32,4], index: 1, kind: output, shape index: {}]
  // Predicated region
  $region2: #{tile.28} parent=0 // pred_check
    _
  $region3: #{tile.28} parent=0 // pred_check_branch
    %3 = sbr.rel (0) target = $region5
  $region4: #{tile.28} parent=0 // pred_region
    _
  $region5: #{tile.28} parent=0 // pred_fallthru
    _
  %v4 = vld [vmem:[%s0] ss:$0 sm:$0xff]
  %5 = vst [vmem:[%s1] sm:$0xff] %v4
  %s6 = scalar_lea.vmem %s1, 8
  %7 = vst [vmem:[%s6] sm:$0xff] %v4
  %s8 = scalar_lea.vmem %s1, 16
  %9 = vst [vmem:[%s8] sm:$0xff] %v4
  %s10 = scalar_lea.vmem %s1, 24
  %11 = vst [vmem:[%s10] sm:$0xff] %v4

// kernel: residual_block_forward.8
$region0: #{residual_block_forward.8}
  #allocation0 [shape = 'u32[]', space=smem, size = 0x4, offset = 0x4, fixed_abs, tag = 'smem constant byte address 0x4 - core index']
  #allocation1 [shape = 'u32[72,128]{1,0:T(1,128)}', space=vmem, size = 0x9000, scoped, tag = 'internal scratch']
  %s0 = inlined_call_operand.vmem [shape: f32[16,128], index: 0, kind: input, shape index: {}]
  %s1 = inlined_call_operand.vmem [shape: f32[2,128], index: 1, kind: output, shape index: {}]
  %s2 = sld [smem:[#allocation0]]
  $region18: #{residual_block_forward.8} parent=0
    _
  %s4 = ssub.s32 1, %s2
  %s5 = scalar_select 0, %s4, %s2
  // Predicated region
  $region2: #{residual_block_forward.8} parent=0 // pred_check
    _
  $region3: #{residual_block_forward.8} parent=0 // pred_check_branch
    %7 = sbr.rel (0) target = $region5
  $region4: #{residual_block_forward.8} parent=0 // pred_region
    _
  $region5: #{residual_block_forward.8} parent=0 // pred_fallthru
    _
  %p8 = scmp.eq.s32.totalorder 0, 0
  // Predicated region
  $region6: #{residual_block_forward.8} parent=0 // pred_check
    %p9 = pneg %p8
  $region7: #{residual_block_forward.8} parent=0 // pred_check_branch
    %11 = sbr.rel (%p9) target = $region9
  $region8: #{residual_block_forward.8} parent=0 // pred_region
    %12 = vst [vmem:[%s1] sm:$0x3] 0.0
  $region9: #{residual_block_forward.8} parent=0 // pred_fallthru
    _
  %v13 = vld [vmem:[%s0] sm:$0xff]
  %v14 = vld [vmem:[%s0 + $0x8] sm:$0xff]
  %v15 = vadd.f32 %v13, %v14
  %v16 = vrot.slane %v15, 4
  %v17 = vadd.f32 %v15, %v16
  %v18 = vrot.slane %v17, 2
  %v19 = vadd.f32 %v17, %v18
  %v20 = vrot.slane %v19, 1
  %v21 = vadd.f32 %v19, %v20
  %v22 = vmul.f32 %v13, %v13
  %v23 = vmul.f32 %v14, %v14
  %v24 = vadd.f32 %v22, %v23
  %v25 = vrot.slane %v24, 4
  %v26 = vadd.f32 %v24, %v25
  %v27 = vrot.slane %v26, 2
  %v28 = vadd.f32 %v26, %v27
  %v29 = vrot.slane %v28, 1
  %v30 = vadd.f32 %v28, %v29
  %vm31 = vcmask 1040384
  %v32 = vsel %vm31, %v21, %v30
  %v33 = vld [vmem:[%s1] sm:$0x3]
  %v34 = vadd.f32 %v33, %v32
  %35 = vst [vmem:[%s1] sm:$0x3] %v34
  // Predicated region
  $region10: #{residual_block_forward.8} parent=0 // pred_check
    _
  $region11: #{residual_block_forward.8} parent=0 // pred_check_branch
    %37 = sbr.rel (0) target = $region13
  $region12: #{residual_block_forward.8} parent=0 // pred_region
    _
  $region13: #{residual_block_forward.8} parent=0 // pred_fallthru
    _
  // Predicated region
  $region14: #{residual_block_forward.8} parent=0 // pred_check
    _
  $region15: #{residual_block_forward.8} parent=0 // pred_check_branch
    %39 = sbr.rel (0) target = $region17
  $region16: #{residual_block_forward.8} parent=0 // pred_region
    _
  $region17: #{residual_block_forward.8} parent=0 // pred_fallthru
    _

// kernel: residual_block_forward.9
$region0: #{residual_block_forward.9}
  #allocation0 [shape = 'u32[]', space=smem, size = 0x4, offset = 0x4, fixed_abs, tag = 'smem constant byte address 0x4 - core index']
  #allocation1 [shape = 'u32[72,128]{1,0:T(1,128)}', space=vmem, size = 0x9000, scoped, tag = 'internal scratch']
  %s0 = inlined_call_operand.vmem [shape: f32[16,128], index: 0, kind: input, shape index: {}]
  %s1 = inlined_call_operand.vmem [shape: f32[1,128], index: 1, kind: input, shape index: {}]
  %s2 = inlined_call_operand.vmem [shape: f32[1,128], index: 2, kind: input, shape index: {}]
  %s3 = inlined_call_operand.vmem [shape: f32[16,128], index: 3, kind: output, shape index: {}]
  %s4 = sld [smem:[#allocation0]]
  $region22: #{residual_block_forward.9} parent=0
    _
  %s6 = ssub.s32 1, %s4
  %s7 = scalar_select 0, %s6, %s4
  // Predicated region
  $region2: #{residual_block_forward.9} parent=0 // pred_check
    _
  $region3: #{residual_block_forward.9} parent=0 // pred_check_branch
    %9 = sbr.rel (0) target = $region5
  $region4: #{residual_block_forward.9} parent=0 // pred_region
    _
  $region5: #{residual_block_forward.9} parent=0 // pred_fallthru
    _
  // Predicated region
  $region6: #{residual_block_forward.9} parent=0 // pred_check
    _
  $region7: #{residual_block_forward.9} parent=0 // pred_check_branch
    %11 = sbr.rel (0) target = $region9
  $region8: #{residual_block_forward.9} parent=0 // pred_region
    _
  $region9: #{residual_block_forward.9} parent=0 // pred_fallthru
    _
  // Predicated region
  $region10: #{residual_block_forward.9} parent=0 // pred_check
    _
  $region11: #{residual_block_forward.9} parent=0 // pred_check_branch
    %13 = sbr.rel (0) target = $region13
  $region12: #{residual_block_forward.9} parent=0 // pred_region
    _
  $region13: #{residual_block_forward.9} parent=0 // pred_fallthru
    _
  %v14 = vld [vmem:[%s0] sm:$0xff]
  %v15 = vld [vmem:[%s0 + $0x8] sm:$0xff]
  %v16 = vld [vmem:[%s1] sm:$0x1]
  %v18 = vperm.slane %v16, 0
  %v20 = vmul.f32 %v14, %v18
  %v21 = vmul.f32 %v15, %v18
  %v22 = vld [vmem:[%s2] sm:$0x1]
  %v24 = vperm.slane %v22, 0
  %v26 = vadd.f32 %v20, %v24
  %v27 = vadd.f32 %v21, %v24
  %v28 = vmax.f32 %v26, 0.0
  %v29 = vmax.f32 %v27, 0.0
  %30 = vst [vmem:[%s3] sm:$0xff] %v28
  %31 = vst [vmem:[%s3 + $0x8] sm:$0xff] %v29
  // Predicated region
  $region14: #{residual_block_forward.9} parent=0 // pred_check
    _
  $region15: #{residual_block_forward.9} parent=0 // pred_check_branch
    %33 = sbr.rel (0) target = $region17
  $region16: #{residual_block_forward.9} parent=0 // pred_region
    _
  $region17: #{residual_block_forward.9} parent=0 // pred_fallthru
    _
  // Predicated region
  $region18: #{residual_block_forward.9} parent=0 // pred_check
    _
  $region19: #{residual_block_forward.9} parent=0 // pred_check_branch
    %35 = sbr.rel (0) target = $region21
  $region20: #{residual_block_forward.9} parent=0 // pred_region
    _
  $region21: #{residual_block_forward.9} parent=0 // pred_fallthru
    _

// kernel: residual_block_forward.7
$region0: #{residual_block_forward.7}
  #allocation0 [shape = 'u32[]', space=smem, size = 0x4, offset = 0x4, fixed_abs, tag = 'smem constant byte address 0x4 - core index']
  #allocation1 [shape = 'u32[72,128]{1,0:T(1,128)}', space=vmem, size = 0x9000, scoped, tag = 'internal scratch']
  %s0 = inlined_call_operand.vmem [shape: f32[2,18,18,4], index: 0, kind: input, shape index: {}]
  %s1 = inlined_call_operand.vmem [shape: f32[36,4], index: 1, kind: input, shape index: {}]
  %s2 = inlined_call_operand.vmem [shape: f32[1,4], index: 2, kind: input, shape index: {}]
  %s3 = inlined_call_operand.vmem [shape: f32[2,256,4], index: 3, kind: output, shape index: {}]
  %s4 = sld [smem:[#allocation0]]
  $region45: #{residual_block_forward.7} parent=0
    _
  %s6 = ssub.s32 1, %s4
  %s7 = scalar_select 0, %s6, %s4
  loop: start=0, step=1, limit=4
  $region2: #{residual_block_forward.7} parent=0 // loop_pre_header
    _
  $region3: #{residual_block_forward.7} parent=0 // loop_header
    %s9 = sphi 0, %s13
    %p10 = scmp.ge.s32.totalorder %s9, 4
    %s16 = sphi 0, %s28
    %s17 = sphi 0, %s24
    %s18 = sphi 0, %s16
    %s19 = sphi 0, %s17
    %s20 = sphi 0, %s18
    %s21 = sphi 0, %s19
    %s31 = sphi 0, %s33
    %s34 = sphi 0, %s31
    %s35 = sphi 0, %s34
    %s51 = sphi 0, %s35
    %s57 = sphi 0, %s59
    %s60 = sphi 0, %s57
    %s61 = sphi 0, %s60
    %s77 = sphi 0, %s61
    %s83 = sphi 0, %s85
    %s86 = sphi 0, %s83
    %s87 = sphi 0, %s86
    %s103 = sphi 0, %s87
    %s111 = sphi 0, %s113
    %s114 = sphi 0, %s111
    %s115 = sphi 0, %s114
    %s131 = sphi 0, %s115
  $region4: #{residual_block_forward.7} parent=0 // loop_header_branch
    %12 = sbr.rel (%p10) target = $region8
  $region5: #{residual_block_forward.7} parent=0 // loop_body
    %s14 = ssub.s32 %s9, 1
    %s15 = ssub.s32 %s9, 2
    %s22 = sadd.s32 1, %s17
    %p23 = scmp.ge.s32.totalorder %s22, 1
    %s24 = scalar_select %p23, 0, %s22
    %s25 = sadd.s32 1, %s16
    %s26 = scalar_select %p23, %s25, %s16
    %p27 = scmp.ge.s32.totalorder %s26, 2
    %s28 = scalar_select %p27, 0, %s26
    %s29 = ssub.s32 %s16, %s28
    %p30 = scmp.eq.s32.totalorder %s29, 0
    %s32 = sadd.s32 %s31, 1
    %s33 = scalar_select %p30, %s31, %s32
    %p36 = pneg %p30
    %p37 = scmp.eq.s32.totalorder %s9, 1
    %p38 = por %p36, %p37
    %p39 = scmp.ne.s32.totalorder %s31, %s34
    %p40 = scmp.eq.s32.totalorder %s9, 0
    %p41 = por %p39, %p40
    %p42 = scmp.ne.s32.totalorder %s31, %s34
    %p43 = scmp.eq.s32.totalorder %s14, 1
    %p44 = por %p42, %p43
    %p45 = scmp.ne.s32.totalorder %s34, %s35
    %p46 = scmp.eq.s32.totalorder %s14, 0
    %p47 = por %p45, %p46
    %p48 = scmp.ne.s32.totalorder %s34, %s35
    %p49 = scmp.eq.s32.totalorder %s15, 1
    %p50 = por %p48, %p49
    %p52 = scmp.ne.s32.totalorder %s35, %s51
    %p53 = scmp.eq.s32.totalorder %s15, 0
    %p54 = por %p52, %p53
    %s55 = ssub.s32 %s17, %s24
    %p56 = scmp.eq.s32.totalorder %s55, 0
    %s58 = sadd.s32 %s57, 1
    %s59 = scalar_select %p56, %s57, %s58
    %p62 = pneg %p56
    %p63 = scmp.eq.s32.totalorder %s9, 1
    %p64 = por %p62, %p63
    %p65 = scmp.ne.s32.totalorder %s57, %s60
    %p66 = scmp.eq.s32.totalorder %s9, 0
    %p67 = por %p65, %p66
    %p68 = scmp.ne.s32.totalorder %s57, %s60
    %p69 = scmp.eq.s32.totalorder %s14, 1
    %p70 = por %p68, %p69
    %p71 = scmp.ne.s32.totalorder %s60, %s61
    %p72 = scmp.eq.s32.totalorder %s14, 0
    %p73 = por %p71, %p72
    %p74 = scmp.ne.s32.totalorder %s60, %s61
    %p75 = scmp.eq.s32.totalorder %s15, 1
    %p76 = por %p74, %p75
    %p78 = scmp.ne.s32.totalorder %s61, %s77
    %p79 = scmp.eq.s32.totalorder %s15, 0
    %p80 = por %p78, %p79
    %s81 = ssub.s32 %s17, %s24
    %p82 = scmp.eq.s32.totalorder %s81, 0
    %s84 = sadd.s32 %s83, 1
    %s85 = scalar_select %p82, %s83, %s84
    %p88 = pneg %p82
    %p89 = scmp.eq.s32.totalorder %s9, 1
    %p90 = por %p88, %p89
    %p91 = scmp.ne.s32.totalorder %s83, %s86
    %p92 = scmp.eq.s32.totalorder %s9, 0
    %p93 = por %p91, %p92
    %p94 = scmp.ne.s32.totalorder %s83, %s86
    %p95 = scmp.eq.s32.totalorder %s14, 1
    %p96 = por %p94, %p95
    %p97 = scmp.ne.s32.totalorder %s86, %s87
    %p98 = scmp.eq.s32.totalorder %s14, 0
    %p99 = por %p97, %p98
    %p100 = scmp.ne.s32.totalorder %s86, %s87
    %p101 = scmp.eq.s32.totalorder %s15, 1
    %p102 = por %p100, %p101
    %p104 = scmp.ne.s32.totalorder %s87, %s103
    %p105 = scmp.eq.s32.totalorder %s15, 0
    %p106 = por %p104, %p105
    %s107 = ssub.s32 %s16, %s28
    %s108 = ssub.s32 %s17, %s24
    %s109 = sor.u32 %s107, %s108
    %p110 = scmp.eq.s32.totalorder %s109, 0
    %s112 = sadd.s32 %s111, 1
    %s113 = scalar_select %p110, %s111, %s112
    %p116 = pneg %p110
    %p117 = scmp.eq.s32.totalorder %s9, 1
    %p118 = por %p116, %p117
    %p119 = scmp.ne.s32.totalorder %s111, %s114
    %p120 = scmp.eq.s32.totalorder %s9, 0
    %p121 = por %p119, %p120
    %p122 = scmp.ne.s32.totalorder %s111, %s114
    %p123 = scmp.eq.s32.totalorder %s14, 1
    %p124 = por %p122, %p123
    %p125 = scmp.ne.s32.totalorder %s114, %s115
    %p126 = scmp.eq.s32.totalorder %s14, 0
    %p127 = por %p125, %p126
    %p128 = scmp.ne.s32.totalorder %s114, %s115
    %p129 = scmp.eq.s32.totalorder %s15, 1
    %p130 = por %p128, %p129
    %p132 = scmp.ne.s32.totalorder %s115, %s131
    %p133 = scmp.eq.s32.totalorder %s15, 0
    %p134 = por %p132, %p133
    %p135 = scmp.le.s32.totalorder 1, %s9
    %p136 = scmp.lt.s32.totalorder %s9, 3
    %p137 = pnand %p135, %p136
    %p138 = pneg %p137
    // Predicated region
    $region9: #{residual_block_forward.7} parent=5 // pred_check
      _
    $region10: #{residual_block_forward.7} parent=5 // pred_check_branch
      %140 = sbr.rel (%p137) target = $region12
    $region11: #{residual_block_forward.7} parent=5 // pred_region
      %s141 = ssub.s32 %s9, 1
      // Predicated region
      $region13: #{residual_block_forward.7} parent=11 // pred_check
        %p142 = pneg %p73
      $region14: #{residual_block_forward.7} parent=11 // pred_check_branch
        %144 = sbr.rel (%p142) target = $region16
      $region15: #{residual_block_forward.7} parent=11 // pred_region
        %p145 = scmp.lt.s32.totalorder %s19, 0
        %s146 = scalar_select %p145, %s19, 0
        %s147 = smul.addr %s146, 8
        %s148 = scalar_lea.vmem %s1, %s147
      $region16: #{residual_block_forward.7} parent=11 // pred_fallthru
        _
      // Predicated region
      $region17: #{residual_block_forward.7} parent=11 // pred_check
        %p149 = pneg %p99
      $region18: #{residual_block_forward.7} parent=11 // pred_check_branch
        %151 = sbr.rel (%p149) target = $region20
      $region19: #{residual_block_forward.7} parent=11 // pred_region
        %p152 = scmp.lt.s32.totalorder %s19, 0
        %s153 = scalar_select %p152, %s19, 0
        %s154 = scalar_lea.vmem %s2, %s153
      $region20: #{residual_block_forward.7} parent=11 // pred_fallthru
        _
    $region12: #{residual_block_forward.7} parent=5 // pred_fallthru
      _
    %p155 = scmp.lt.s32.totalorder %s9, 2
    // Predicated region
    $region21: #{residual_block_forward.7} parent=5 // pred_check
      %p156 = pneg %p155
    $region22: #{residual_block_forward.7} parent=5 // pred_check_branch
      %158 = sbr.rel (%p156) target = $region24
    $region23: #{residual_block_forward.7} parent=5 // pred_region
      // Predicated region
      $region25: #{residual_block_forward.7} parent=23 // pred_check
        %p159 = pneg %p41
      $region26: #{residual_block_forward.7} parent=23 // pred_check_branch
        %161 = sbr.rel (%p159) target = $region28
      $region27: #{residual_block_forward.7} parent=23 // pred_region
        %p162 = scmp.lt.s32.totalorder %s16, 1
        %s163 = scalar_select %p162, %s16, 1
        %s164 = smul.addr %s163, 54
        %s165 = smul.addr %s164, 8
        %s166 = scalar_lea.vmem %s0, %s165
      $region28: #{residual_block_forward.7} parent=23 // pred_fallthru
        _
    $region24: #{residual_block_forward.7} parent=5 // pred_fallthru
      _
    %p167 = scmp.le.s32.totalorder 1, %s9
    %p168 = scmp.lt.s32.totalorder %s9, 3
    %p169 = pnand %p167, %p168
    %p170 = pneg %p169
    // Predicated region
    $region29: #{residual_block_forward.7} parent=5 // pred_check
      _
    $region30: #{residual_block_forward.7} parent=5 // pred_check_branch
      %172 = sbr.rel (%p169) target = $region32
    $region31: #{residual_block_forward.7} parent=5 // pred_region
      %s173 = ssub.s32 %s9, 1
      %p174 = scmp.lt.s32.totalorder %s18, 1
      %s175 = scalar_select %p174, %s18, 1
      %s176 = smul.addr %s175, 54
      %s177 = smul.addr %s176, 8
      %s178 = scalar_lea.vmem %s0, %s177
      %p179 = pneg %p47
      %p180 = pneg %p44
      %p181 = scmp.lt.s32.totalorder %s19, 0
      %s182 = scalar_select %p181, %s19, 0
      %s183 = smul.addr %s182, 8
      %s184 = scalar_lea.vmem %s1, %s183
      %p185 = pneg %p73
      %p186 = pneg %p70
      %p187 = scmp.lt.s32.totalorder %s19, 0
      %s188 = scalar_select %p187, %s19, 0
      %s189 = scalar_lea.vmem %s2, %s188
      %p190 = pneg %p99
      %p191 = pneg %p96
      %p192 = pneg %p127
      %p193 = pneg %p124
      %p194 = scmp.lt.s32.totalorder %s18, 1
      %s195 = scalar_select %p194, %s18, 1
      %p196 = scmp.lt.s32.totalorder %s19, 0
      %s197 = scalar_select %p196, %s19, 0
      %s198 = smul.addr %s195, 32
      %s199 = sadd.s32 %s197, %s198
      %s200 = smul.addr %s199, 8
      %s201 = scalar_lea.vmem %s3, %s200
      %p202 = scmp.lt.s32.totalorder %s18, 1
      %s203 = scalar_select %p202, %s18, 1
      %s204 = smul.addr %s203, 54
      %s205 = smul.addr %s204, 8
      %s206 = scalar_lea.vmem %s0, %s205
      %p207 = scmp.lt.s32.totalorder %s19, 0
      %s208 = scalar_select %p207, %s19, 0
      %s209 = smul.addr %s208, 8
      %s210 = scalar_lea.vmem %s1, %s209
      %p211 = scmp.lt.s32.totalorder %s19, 0
      %s212 = scalar_select %p211, %s19, 0
      %s213 = scalar_lea.vmem %s2, %s212
      %p214 = scmp.lt.s32.totalorder %s18, 1
      %s215 = scalar_select %p214, %s18, 1
      %p216 = scmp.lt.s32.totalorder %s19, 0
      %s217 = scalar_select %p216, %s19, 0
      %s218 = smul.addr %s215, 32
      %s219 = sadd.s32 %s217, %s218
      %s220 = smul.addr %s219, 8
      %s221 = scalar_lea.vmem %s3, %s220
      %v222 = vld [vmem:[%s206] sm:$0xff]
      %v223 = vld [vmem:[%s206 + $0x8] sm:$0xff]
      %v224 = vld [vmem:[%s206 + $0x10] sm:$0x3]
      %v225 = vld [vmem:[%s206 + $0x18] sm:$0xff]
      %v226 = vld [vmem:[%s206 + $0x20] sm:$0xff]
      %v227 = vld [vmem:[%s206 + $0x28] sm:$0x3]
      %v228 = vld [vmem:[%s206 + $0x30] sm:$0xff]
      %v229 = vld [vmem:[%s206 + $0x38] sm:$0xff]
      %v230 = vld [vmem:[%s206 + $0x40] sm:$0x3]
      %v231 = vld [vmem:[%s206 + $0x48] sm:$0xff]
      %v232 = vld [vmem:[%s206 + $0x50] sm:$0xff]
      %v233 = vld [vmem:[%s206 + $0x58] sm:$0x3]
      %v234 = vld [vmem:[%s206 + $0x60] sm:$0xff]
      %v235 = vld [vmem:[%s206 + $0x68] sm:$0xff]
      %v236 = vld [vmem:[%s206 + $0x70] sm:$0x3]
      %v237 = vld [vmem:[%s206 + $0x78] sm:$0xff]
      %v238 = vld [vmem:[%s206 + $0x80] sm:$0xff]
      %v239 = vld [vmem:[%s206 + $0x88] sm:$0x3]
      %v240 = vld [vmem:[%s206 + $0x90] sm:$0xff]
      %v241 = vld [vmem:[%s206 + $0x98] sm:$0xff]
      %v242 = vld [vmem:[%s206 + $0xa0] sm:$0x3]
      %v243 = vld [vmem:[%s206 + $0xa8] sm:$0xff]
      %v244 = vld [vmem:[%s206 + $0xb0] sm:$0xff]
      %v245 = vld [vmem:[%s206 + $0xb8] sm:$0x3]
      %v246 = vld [vmem:[%s206 + $0xc0] sm:$0xff]
      %v247 = vld [vmem:[%s206 + $0xc8] sm:$0xff]
      %v248 = vld [vmem:[%s206 + $0xd0] sm:$0x3]
      %v249 = vld [vmem:[%s206 + $0xd8] sm:$0xff]
      %v250 = vld [vmem:[%s206 + $0xe0] sm:$0xff]
      %v251 = vld [vmem:[%s206 + $0xe8] sm:$0x3]
      %v252 = vld [vmem:[%s206 + $0xf0] sm:$0xff]
      %v253 = vld [vmem:[%s206 + $0xf8] sm:$0xff]
      %v254 = vld [vmem:[%s206 + $0x100] sm:$0x3]
      %v255 = vld [vmem:[%s206 + $0x108] sm:$0xff]
      %v256 = vld [vmem:[%s206 + $0x110] sm:$0xff]
      %v257 = vld [vmem:[%s206 + $0x118] sm:$0x3]
      %v258 = vld [vmem:[%s206 + $0x120] sm:$0xff]
      %v259 = vld [vmem:[%s206 + $0x128] sm:$0xff]
      %v260 = vld [vmem:[%s206 + $0x130] sm:$0x3]
      %v261 = vld [vmem:[%s206 + $0x138] sm:$0xff]
      %v262 = vld [vmem:[%s206 + $0x140] sm:$0xff]
      %v263 = vld [vmem:[%s206 + $0x148] sm:$0x3]
      %v264 = vld [vmem:[%s206 + $0x150] sm:$0xff]
      %v265 = vld [vmem:[%s206 + $0x158] sm:$0xff]
      %v266 = vld [vmem:[%s206 + $0x160] sm:$0x3]
      %v267 = vld [vmem:[%s206 + $0x168] sm:$0xff]
      %v268 = vld [vmem:[%s206 + $0x170] sm:$0xff]
      %v269 = vld [vmem:[%s206 + $0x178] sm:$0x3]
      %v270 = vld [vmem:[%s206 + $0x180] sm:$0xff]
      %v271 = vld [vmem:[%s206 + $0x188] sm:$0xff]
      %v272 = vld [vmem:[%s206 + $0x190] sm:$0x3]
      %v273 = vld [vmem:[%s206 + $0x198] sm:$0xff]
      %v274 = vld [vmem:[%s206 + $0x1a0] sm:$0xff]
      %v275 = vld [vmem:[%s206 + $0x1a8] sm:$0x3]
      %vm324 = vcmask 1046528
      %v325 = vrot.slane %v222, 1
      %v326 = vrot.slane %v223, 1
      %v327 = vsel %vm324, %v325, %v326
      %v328 = vrot.slane %v224, 1
      %v329 = vsel %vm324, %v326, %v328
      %v330 = vrot.slane %v225, 1
      %v331 = vrot.slane %v226, 1
      %v332 = vsel %vm324, %v330, %v331
      %v333 = vrot.slane %v227, 1
      %v334 = vsel %vm324, %v331, %v333
      %v335 = vrot.slane %v228, 1
      %v336 = vrot.slane %v229, 1
      %v337 = vsel %vm324, %v335, %v336
      %v338 = vrot.slane %v230, 1
      %v339 = vsel %vm324, %v336, %v338
      %v340 = vrot.slane %v231, 1
      %v341 = vrot.slane %v232, 1
      %v342 = vsel %vm324, %v340, %v341
      %v343 = vrot.slane %v233, 1
      %v344 = vsel %vm324, %v341, %v343
      %v345 = vrot.slane %v234, 1
      %v346 = vrot.slane %v235, 1
      %v347 = vsel %vm324, %v345, %v346
      %v348 = vrot.slane %v236, 1
      %v349 = vsel %vm324, %v346, %v348
      %v350 = vrot.slane %v237, 1
      %v351 = vrot.slane %v238, 1
      %v352 = vsel %vm324, %v350, %v351
      %v353 = vrot.slane %v239, 1
      %v354 = vsel %vm324, %v351, %v353
      %v355 = vrot.slane %v240, 1
      %v356 = vrot.slane %v241, 1
      %v357 = vsel %vm324, %v355, %v356
      %v358 = vrot.slane %v242, 1
      %v359 = vsel %vm324, %v356, %v358
      %v360 = vrot.slane %v243, 1
      %v361 = vrot.slane %v244, 1
      %v362 = vsel %vm324, %v360, %v361
      %v363 = vrot.slane %v245, 1
      %v364 = vsel %vm324, %v361, %v363
      %v365 = vrot.slane %v246, 1
      %v366 = vrot.slane %v247, 1
      %v367 = vsel %vm324, %v365, %v366
      %v368 = vrot.slane %v248, 1
      %v369 = vsel %vm324, %v366, %v368
      %v370 = vrot.slane %v249, 1
      %v371 = vrot.slane %v250, 1
      %v372 = vsel %vm324, %v370, %v371
      %v373 = vrot.slane %v251, 1
      %v374 = vsel %vm324, %v371, %v373
      %v375 = vrot.slane %v252, 1
      %v376 = vrot.slane %v253, 1
      %v377 = vsel %vm324, %v375, %v376
      %v378 = vrot.slane %v254, 1
      %v379 = vsel %vm324, %v376, %v378
      %v380 = vrot.slane %v255, 1
      %v381 = vrot.slane %v256, 1
      %v382 = vsel %vm324, %v380, %v381
      %v383 = vrot.slane %v257, 1
      %v384 = vsel %vm324, %v381, %v383
      %v385 = vrot.slane %v258, 1
      %v386 = vrot.slane %v259, 1
      %v387 = vsel %vm324, %v385, %v386
      %v388 = vrot.slane %v260, 1
      %v389 = vsel %vm324, %v386, %v388
      %v390 = vrot.slane %v261, 1
      %v391 = vrot.slane %v262, 1
      %v392 = vsel %vm324, %v390, %v391
      %v393 = vrot.slane %v263, 1
      %v394 = vsel %vm324, %v391, %v393
      %v395 = vrot.slane %v264, 1
      %v396 = vrot.slane %v265, 1
      %v397 = vsel %vm324, %v395, %v396
      %v398 = vrot.slane %v266, 1
      %v399 = vsel %vm324, %v396, %v398
      %v400 = vrot.slane %v267, 1
      %v401 = vrot.slane %v268, 1
      %v402 = vsel %vm324, %v400, %v401
      %v403 = vrot.slane %v269, 1
      %v404 = vsel %vm324, %v401, %v403
      %405 = vrot.lane.b32.xlu0 %v327, 4
      %v406 = vpop.permute.xlu0 %405
      %407 = vrot.lane.b32.xlu0 %v329, 4
      %v408 = vpop.permute.xlu0 %407
      %409 = vrot.lane.b32.xlu0 %v332, 4
      %v410 = vpop.permute.xlu0 %409
      %411 = vrot.lane.b32.xlu0 %v334, 4
      %v412 = vpop.permute.xlu0 %411
      %413 = vrot.lane.b32.xlu0 %v337, 4
      %v414 = vpop.permute.xlu0 %413
      %415 = vrot.lane.b32.xlu0 %v339, 4
      %v416 = vpop.permute.xlu0 %415
      %417 = vrot.lane.b32.xlu0 %v342, 4
      %v418 = vpop.permute.xlu0 %417
      %419 = vrot.lane.b32.xlu0 %v344, 4
      %v420 = vpop.permute.xlu0 %419
      %421 = vrot.lane.b32.xlu0 %v347, 4
      %v422 = vpop.permute.xlu0 %421
      %423 = vrot.lane.b32.xlu0 %v349, 4
      %v424 = vpop.permute.xlu0 %423
      %425 = vrot.lane.b32.xlu0 %v352, 4
      %v426 = vpop.permute.xlu0 %425
      %427 = vrot.lane.b32.xlu0 %v354, 4
      %v428 = vpop.permute.xlu0 %427
      %429 = vrot.lane.b32.xlu0 %v357, 4
      %v430 = vpop.permute.xlu0 %429
      %431 = vrot.lane.b32.xlu0 %v359, 4
      %v432 = vpop.permute.xlu0 %431
      %433 = vrot.lane.b32.xlu0 %v362, 4
      %v434 = vpop.permute.xlu0 %433
      %435 = vrot.lane.b32.xlu0 %v364, 4
      %v436 = vpop.permute.xlu0 %435
      %437 = vrot.lane.b32.xlu0 %v367, 4
      %v438 = vpop.permute.xlu0 %437
      %439 = vrot.lane.b32.xlu0 %v369, 4
      %v440 = vpop.permute.xlu0 %439
      %441 = vrot.lane.b32.xlu0 %v372, 4
      %v442 = vpop.permute.xlu0 %441
      %443 = vrot.lane.b32.xlu0 %v374, 4
      %v444 = vpop.permute.xlu0 %443
      %445 = vrot.lane.b32.xlu0 %v377, 4
      %v446 = vpop.permute.xlu0 %445
      %447 = vrot.lane.b32.xlu0 %v379, 4
      %v448 = vpop.permute.xlu0 %447
      %449 = vrot.lane.b32.xlu0 %v382, 4
      %v450 = vpop.permute.xlu0 %449
      %451 = vrot.lane.b32.xlu0 %v384, 4
      %v452 = vpop.permute.xlu0 %451
      %453 = vrot.lane.b32.xlu0 %v387, 4
      %v454 = vpop.permute.xlu0 %453
      %455 = vrot.lane.b32.xlu0 %v389, 4
      %v456 = vpop.permute.xlu0 %455
      %457 = vrot.lane.b32.xlu0 %v392, 4
      %v458 = vpop.permute.xlu0 %457
      %459 = vrot.lane.b32.xlu0 %v394, 4
      %v460 = vpop.permute.xlu0 %459
      %461 = vrot.lane.b32.xlu0 %v397, 4
      %v462 = vpop.permute.xlu0 %461
      %463 = vrot.lane.b32.xlu0 %v399, 4
      %v464 = vpop.permute.xlu0 %463
      %465 = vrot.lane.b32.xlu0 %v402, 4
      %v466 = vpop.permute.xlu0 %465
      %467 = vrot.lane.b32.xlu0 %v404, 4
      %v468 = vpop.permute.xlu0 %467
      %vm501 = vcmask 1045504
      %v502 = vrot.slane %v222, 2
      %v503 = vrot.slane %v223, 2
      %v504 = vsel %vm501, %v502, %v503
      %v505 = vrot.slane %v224, 2
      %v506 = vsel %vm501, %v503, %v505
      %v507 = vrot.slane %v225, 2
      %v508 = vrot.slane %v226, 2
      %v509 = vsel %vm501, %v507, %v508
      %v510 = vrot.slane %v227, 2
      %v511 = vsel %vm501, %v508, %v510
      %v512 = vrot.slane %v228, 2
      %v513 = vrot.slane %v229, 2
      %v514 = vsel %vm501, %v512, %v513
      %v515 = vrot.slane %v230, 2
      %v516 = vsel %vm501, %v513, %v515
      %v517 = vrot.slane %v231, 2
      %v518 = vrot.slane %v232, 2
      %v519 = vsel %vm501, %v517, %v518
      %v520 = vrot.slane %v233, 2
      %v521 = vsel %vm501, %v518, %v520
      %v522 = vrot.slane %v234, 2
      %v523 = vrot.slane %v235, 2
      %v524 = vsel %vm501, %v522, %v523
      %v525 = vrot.slane %v236, 2
      %v526 = vsel %vm501, %v523, %v525
      %v527 = vrot.slane %v237, 2
      %v528 = vrot.slane %v238, 2
      %v529 = vsel %vm501, %v527, %v528
      %v530 = vrot.slane %v239, 2
      %v531 = vsel %vm501, %v528, %v530
      %v532 = vrot.slane %v240, 2
      %v533 = vrot.slane %v241, 2
      %v534 = vsel %vm501, %v532, %v533
      %v535 = vrot.slane %v242, 2
      %v536 = vsel %vm501, %v533, %v535
      %v537 = vrot.slane %v243, 2
      %v538 = vrot.slane %v244, 2
      %v539 = vsel %vm501, %v537, %v538
      %v540 = vrot.slane %v245, 2
      %v541 = vsel %vm501, %v538, %v540
      %v542 = vrot.slane %v246, 2
      %v543 = vrot.slane %v247, 2
      %v544 = vsel %vm501, %v542, %v543
      %v545 = vrot.slane %v248, 2
      %v546 = vsel %vm501, %v543, %v545
      %v547 = vrot.slane %v249, 2
      %v548 = vrot.slane %v250, 2
      %v549 = vsel %vm501, %v547, %v548
      %v550 = vrot.slane %v251, 2
      %v551 = vsel %vm501, %v548, %v550
      %v552 = vrot.slane %v252, 2
      %v553 = vrot.slane %v253, 2
      %v554 = vsel %vm501, %v552, %v553
      %v555 = vrot.slane %v254, 2
      %v556 = vsel %vm501, %v553, %v555
      %v557 = vrot.slane %v255, 2
      %v558 = vrot.slane %v256, 2
      %v559 = vsel %vm501, %v557, %v558
      %v560 = vrot.slane %v257, 2
      %v561 = vsel %vm501, %v558, %v560
      %v562 = vrot.slane %v258, 2
      %v563 = vrot.slane %v259, 2
      %v564 = vsel %vm501, %v562, %v563
      %v565 = vrot.slane %v260, 2
      %v566 = vsel %vm501, %v563, %v565
      %v567 = vrot.slane %v261, 2
      %v568 = vrot.slane %v262, 2
      %v569 = vsel %vm501, %v567, %v568
      %v570 = vrot.slane %v263, 2
      %v571 = vsel %vm501, %v568, %v570
      %v572 = vrot.slane %v264, 2
      %v573 = vrot.slane %v265, 2
      %v574 = vsel %vm501, %v572, %v573
      %v575 = vrot.slane %v266, 2
      %v576 = vsel %vm501, %v573, %v575
      %v577 = vrot.slane %v267, 2
      %v578 = vrot.slane %v268, 2
      %v579 = vsel %vm501, %v577, %v578
      %v580 = vrot.slane %v269, 2
      %v581 = vsel %vm501, %v578, %v580
      %582 = vrot.lane.b32.xlu0 %v504, 8
      %v583 = vpop.permute.xlu0 %582
      %584 = vrot.lane.b32.xlu0 %v506, 8
      %v585 = vpop.permute.xlu0 %584
      %586 = vrot.lane.b32.xlu0 %v509, 8
      %v587 = vpop.permute.xlu0 %586
      %588 = vrot.lane.b32.xlu0 %v511, 8
      %v589 = vpop.permute.xlu0 %588
      %590 = vrot.lane.b32.xlu0 %v514, 8
      %v591 = vpop.permute.xlu0 %590
      %592 = vrot.lane.b32.xlu0 %v516, 8
      %v593 = vpop.permute.xlu0 %592
      %594 = vrot.lane.b32.xlu0 %v519, 8
      %v595 = vpop.permute.xlu0 %594
      %596 = vrot.lane.b32.xlu0 %v521, 8
      %v597 = vpop.permute.xlu0 %596
      %598 = vrot.lane.b32.xlu0 %v524, 8
      %v599 = vpop.permute.xlu0 %598
      %600 = vrot.lane.b32.xlu0 %v526, 8
      %v601 = vpop.permute.xlu0 %600
      %602 = vrot.lane.b32.xlu0 %v529, 8
      %v603 = vpop.permute.xlu0 %602
      %604 = vrot.lane.b32.xlu0 %v531, 8
      %v605 = vpop.permute.xlu0 %604
      %606 = vrot.lane.b32.xlu0 %v534, 8
      %v607 = vpop.permute.xlu0 %606
      %608 = vrot.lane.b32.xlu0 %v536, 8
      %v609 = vpop.permute.xlu0 %608
      %610 = vrot.lane.b32.xlu0 %v539, 8
      %v611 = vpop.permute.xlu0 %610
      %612 = vrot.lane.b32.xlu0 %v541, 8
      %v613 = vpop.permute.xlu0 %612
      %614 = vrot.lane.b32.xlu0 %v544, 8
      %v615 = vpop.permute.xlu0 %614
      %616 = vrot.lane.b32.xlu0 %v546, 8
      %v617 = vpop.permute.xlu0 %616
      %618 = vrot.lane.b32.xlu0 %v549, 8
      %v619 = vpop.permute.xlu0 %618
      %620 = vrot.lane.b32.xlu0 %v551, 8
      %v621 = vpop.permute.xlu0 %620
      %622 = vrot.lane.b32.xlu0 %v554, 8
      %v623 = vpop.permute.xlu0 %622
      %624 = vrot.lane.b32.xlu0 %v556, 8
      %v625 = vpop.permute.xlu0 %624
      %626 = vrot.lane.b32.xlu0 %v559, 8
      %v627 = vpop.permute.xlu0 %626
      %628 = vrot.lane.b32.xlu0 %v561, 8
      %v629 = vpop.permute.xlu0 %628
      %630 = vrot.lane.b32.xlu0 %v564, 8
      %v631 = vpop.permute.xlu0 %630
      %632 = vrot.lane.b32.xlu0 %v566, 8
      %v633 = vpop.permute.xlu0 %632
      %634 = vrot.lane.b32.xlu0 %v569, 8
      %v635 = vpop.permute.xlu0 %634
      %636 = vrot.lane.b32.xlu0 %v571, 8
      %v637 = vpop.permute.xlu0 %636
      %638 = vrot.lane.b32.xlu0 %v574, 8
      %v639 = vpop.permute.xlu0 %638
      %640 = vrot.lane.b32.xlu0 %v576, 8
      %v641 = vpop.permute.xlu0 %640
      %642 = vrot.lane.b32.xlu0 %v579, 8
      %v643 = vpop.permute.xlu0 %642
      %644 = vrot.lane.b32.xlu0 %v581, 8
      %v645 = vpop.permute.xlu0 %644
      %680 = vrot.lane.b32.xlu0 %v225, 12
      %v681 = vpop.permute.xlu0 %680
      %682 = vrot.lane.b32.xlu0 %v226, 12
      %v683 = vpop.permute.xlu0 %682
      %684 = vrot.lane.b32.xlu0 %v228, 12
      %v685 = vpop.permute.xlu0 %684
      %686 = vrot.lane.b32.xlu0 %v229, 12
      %v687 = vpop.permute.xlu0 %686
      %688 = vrot.lane.b32.xlu0 %v231, 12
      %v689 = vpop.permute.xlu0 %688
      %690 = vrot.lane.b32.xlu0 %v232, 12
      %v691 = vpop.permute.xlu0 %690
      %692 = vrot.lane.b32.xlu0 %v234, 12
      %v693 = vpop.permute.xlu0 %692
      %694 = vrot.lane.b32.xlu0 %v235, 12
      %v695 = vpop.permute.xlu0 %694
      %696 = vrot.lane.b32.xlu0 %v237, 12
      %v697 = vpop.permute.xlu0 %696
      %698 = vrot.lane.b32.xlu0 %v238, 12
      %v699 = vpop.permute.xlu0 %698
      %700 = vrot.lane.b32.xlu0 %v240, 12
      %v701 = vpop.permute.xlu0 %700
      %702 = vrot.lane.b32.xlu0 %v241, 12
      %v703 = vpop.permute.xlu0 %702
      %704 = vrot.lane.b32.xlu0 %v243, 12
      %v705 = vpop.permute.xlu0 %704
      %706 = vrot.lane.b32.xlu0 %v244, 12
      %v707 = vpop.permute.xlu0 %706
      %708 = vrot.lane.b32.xlu0 %v246, 12
      %v709 = vpop.permute.xlu0 %708
      %710 = vrot.lane.b32.xlu0 %v247, 12
      %v711 = vpop.permute.xlu0 %710
      %712 = vrot.lane.b32.xlu0 %v249, 12
      %v713 = vpop.permute.xlu0 %712
      %714 = vrot.lane.b32.xlu0 %v250, 12
      %v715 = vpop.permute.xlu0 %714
      %716 = vrot.lane.b32.xlu0 %v252, 12
      %v717 = vpop.permute.xlu0 %716
      %718 = vrot.lane.b32.xlu0 %v253, 12
      %v719 = vpop.permute.xlu0 %718
      %720 = vrot.lane.b32.xlu0 %v255, 12
      %v721 = vpop.permute.xlu0 %720
      %722 = vrot.lane.b32.xlu0 %v256, 12
      %v723 = vpop.permute.xlu0 %722
      %724 = vrot.lane.b32.xlu0 %v258, 12
      %v725 = vpop.permute.xlu0 %724
      %726 = vrot.lane.b32.xlu0 %v259, 12
      %v727 = vpop.permute.xlu0 %726
      %728 = vrot.lane.b32.xlu0 %v261, 12
      %v729 = vpop.permute.xlu0 %728
      %730 = vrot.lane.b32.xlu0 %v262, 12
      %v731 = vpop.permute.xlu0 %730
      %732 = vrot.lane.b32.xlu0 %v264, 12
      %v733 = vpop.permute.xlu0 %732
      %734 = vrot.lane.b32.xlu0 %v265, 12
      %v735 = vpop.permute.xlu0 %734
      %736 = vrot.lane.b32.xlu0 %v267, 12
      %v737 = vpop.permute.xlu0 %736
      %738 = vrot.lane.b32.xlu0 %v268, 12
      %v739 = vpop.permute.xlu0 %738
      %740 = vrot.lane.b32.xlu0 %v270, 12
      %v741 = vpop.permute.xlu0 %740
      %742 = vrot.lane.b32.xlu0 %v271, 12
      %v743 = vpop.permute.xlu0 %742
      %v777 = vrot.slane %v270, 1
      %v778 = vrot.slane %v271, 1
      %v779 = vsel %vm324, %v777, %v778
      %v780 = vrot.slane %v272, 1
      %v781 = vsel %vm324, %v778, %v780
      %782 = vrot.lane.b32.xlu0 %v332, 16
      %v783 = vpop.permute.xlu0 %782
      %784 = vrot.lane.b32.xlu0 %v334, 16
      %v785 = vpop.permute.xlu0 %784
      %786 = vrot.lane.b32.xlu0 %v337, 16
      %v787 = vpop.permute.xlu0 %786
      %788 = vrot.lane.b32.xlu0 %v339, 16
      %v789 = vpop.permute.xlu0 %788
      %790 = vrot.lane.b32.xlu0 %v342, 16
      %v791 = vpop.permute.xlu0 %790
      %792 = vrot.lane.b32.xlu0 %v344, 16
      %v793 = vpop.permute.xlu0 %792
      %794 = vrot.lane.b32.xlu0 %v347, 16
      %v795 = vpop.permute.xlu0 %794
      %796 = vrot.lane.b32.xlu0 %v349, 16
      %v797 = vpop.permute.xlu0 %796
      %798 = vrot.lane.b32.xlu0 %v352, 16
      %v799 = vpop.permute.xlu0 %798
      %800 = vrot.lane.b32.xlu0 %v354, 16
      %v801 = vpop.permute.xlu0 %800
      %802 = vrot.lane.b32.xlu0 %v357, 16
      %v803 = vpop.permute.xlu0 %802
      %804 = vrot.lane.b32.xlu0 %v359, 16
      %v805 = vpop.permute.xlu0 %804
      %806 = vrot.lane.b32.xlu0 %v362, 16
      %v807 = vpop.permute.xlu0 %806
      %808 = vrot.lane.b32.xlu0 %v364, 16
      %v809 = vpop.permute.xlu0 %808
      %810 = vrot.lane.b32.xlu0 %v367, 16
      %v811 = vpop.permute.xlu0 %810
      %812 = vrot.lane.b32.xlu0 %v369, 16
      %v813 = vpop.permute.xlu0 %812
      %814 = vrot.lane.b32.xlu0 %v372, 16
      %v815 = vpop.permute.xlu0 %814
      %816 = vrot.lane.b32.xlu0 %v374, 16
      %v817 = vpop.permute.xlu0 %816
      %818 = vrot.lane.b32.xlu0 %v377, 16
      %v819 = vpop.permute.xlu0 %818
      %820 = vrot.lane.b32.xlu0 %v379, 16
      %v821 = vpop.permute.xlu0 %820
      %822 = vrot.lane.b32.xlu0 %v382, 16
      %v823 = vpop.permute.xlu0 %822
      %824 = vrot.lane.b32.xlu0 %v384, 16
      %v825 = vpop.permute.xlu0 %824
      %826 = vrot.lane.b32.xlu0 %v387, 16
      %v827 = vpop.permute.xlu0 %826
      %828 = vrot.lane.b32.xlu0 %v389, 16
      %v829 = vpop.permute.xlu0 %828
      %830 = vrot.lane.b32.xlu0 %v392, 16
      %v831 = vpop.permute.xlu0 %830
      %832 = vrot.lane.b32.xlu0 %v394, 16
      %v833 = vpop.permute.xlu0 %832
      %834 = vrot.lane.b32.xlu0 %v397, 16
      %v835 = vpop.permute.xlu0 %834
      %836 = vrot.lane.b32.xlu0 %v399, 16
      %v837 = vpop.permute.xlu0 %836
      %838 = vrot.lane.b32.xlu0 %v402, 16
      %v839 = vpop.permute.xlu0 %838
      %840 = vrot.lane.b32.xlu0 %v404, 16
      %v841 = vpop.permute.xlu0 %840
      %842 = vrot.lane.b32.xlu0 %v779, 16
      %v843 = vpop.permute.xlu0 %842
      %844 = vrot.lane.b32.xlu0 %v781, 16
      %v845 = vpop.permute.xlu0 %844
      %v878 = vrot.slane %v270, 2
      %v879 = vrot.slane %v271, 2
      %v880 = vsel %vm501, %v878, %v879
      %v881 = vrot.slane %v272, 2
      %v882 = vsel %vm501, %v879, %v881
      %883 = vrot.lane.b32.xlu0 %v509, 20
      %v884 = vpop.permute.xlu0 %883
      %885 = vrot.lane.b32.xlu0 %v511, 20
      %v886 = vpop.permute.xlu0 %885
      %887 = vrot.lane.b32.xlu0 %v514, 20
      %v888 = vpop.permute.xlu0 %887
      %889 = vrot.lane.b32.xlu0 %v516, 20
      %v890 = vpop.permute.xlu0 %889
      %891 = vrot.lane.b32.xlu0 %v519, 20
      %v892 = vpop.permute.xlu0 %891
      %893 = vrot.lane.b32.xlu0 %v521, 20
      %v894 = vpop.permute.xlu0 %893
      %895 = vrot.lane.b32.xlu0 %v524, 20
      %v896 = vpop.permute.xlu0 %895
      %897 = vrot.lane.b32.xlu0 %v526, 20
      %v898 = vpop.permute.xlu0 %897
      %899 = vrot.lane.b32.xlu0 %v529, 20
      %v900 = vpop.permute.xlu0 %899
      %901 = vrot.lane.b32.xlu0 %v531, 20
      %v902 = vpop.permute.xlu0 %901
      %903 = vrot.lane.b32.xlu0 %v534, 20
      %v904 = vpop.permute.xlu0 %903
      %905 = vrot.lane.b32.xlu0 %v536, 20
      %v906 = vpop.permute.xlu0 %905
      %907 = vrot.lane.b32.xlu0 %v539, 20
      %v908 = vpop.permute.xlu0 %907
      %909 = vrot.lane.b32.xlu0 %v541, 20
      %v910 = vpop.permute.xlu0 %909
      %911 = vrot.lane.b32.xlu0 %v544, 20
      %v912 = vpop.permute.xlu0 %911
      %913 = vrot.lane.b32.xlu0 %v546, 20
      %v914 = vpop.permute.xlu0 %913
      %915 = vrot.lane.b32.xlu0 %v549, 20
      %v916 = vpop.permute.xlu0 %915
      %917 = vrot.lane.b32.xlu0 %v551, 20
      %v918 = vpop.permute.xlu0 %917
      %919 = vrot.lane.b32.xlu0 %v554, 20
      %v920 = vpop.permute.xlu0 %919
      %921 = vrot.lane.b32.xlu0 %v556, 20
      %v922 = vpop.permute.xlu0 %921
      %923 = vrot.lane.b32.xlu0 %v559, 20
      %v924 = vpop.permute.xlu0 %923
      %925 = vrot.lane.b32.xlu0 %v561, 20
      %v926 = vpop.permute.xlu0 %925
      %927 = vrot.lane.b32.xlu0 %v564, 20
      %v928 = vpop.permute.xlu0 %927
      %929 = vrot.lane.b32.xlu0 %v566, 20
      %v930 = vpop.permute.xlu0 %929
      %931 = vrot.lane.b32.xlu0 %v569, 20
      %v932 = vpop.permute.xlu0 %931
      %933 = vrot.lane.b32.xlu0 %v571, 20
      %v934 = vpop.permute.xlu0 %933
      %935 = vrot.lane.b32.xlu0 %v574, 20
      %v936 = vpop.permute.xlu0 %935
      %937 = vrot.lane.b32.xlu0 %v576, 20
      %v938 = vpop.permute.xlu0 %937
      %939 = vrot.lane.b32.xlu0 %v579, 20
      %v940 = vpop.permute.xlu0 %939
      %941 = vrot.lane.b32.xlu0 %v581, 20
      %v942 = vpop.permute.xlu0 %941
      %943 = vrot.lane.b32.xlu0 %v880, 20
      %v944 = vpop.permute.xlu0 %943
      %945 = vrot.lane.b32.xlu0 %v882, 20
      %v946 = vpop.permute.xlu0 %945
      %981 = vrot.lane.b32.xlu0 %v228, 24
      %v982 = vpop.permute.xlu0 %981
      %983 = vrot.lane.b32.xlu0 %v229, 24
      %v984 = vpop.permute.xlu0 %983
      %985 = vrot.lane.b32.xlu0 %v231, 24
      %v986 = vpop.permute.xlu0 %985
      %987 = vrot.lane.b32.xlu0 %v232, 24
      %v988 = vpop.permute.xlu0 %987
      %989 = vrot.lane.b32.xlu0 %v234, 24
      %v990 = vpop.permute.xlu0 %989
      %991 = vrot.lane.b32.xlu0 %v235, 24
      %v992 = vpop.permute.xlu0 %991
      %993 = vrot.lane.b32.xlu0 %v237, 24
      %v994 = vpop.permute.xlu0 %993
      %995 = vrot.lane.b32.xlu0 %v238, 24
      %v996 = vpop.permute.xlu0 %995
      %997 = vrot.lane.b32.xlu0 %v240, 24
      %v998 = vpop.permute.xlu0 %997
      %999 = vrot.lane.b32.xlu0 %v241, 24
      %v1000 = vpop.permute.xlu0 %999
      %1001 = vrot.lane.b32.xlu0 %v243, 24
      %v1002 = vpop.permute.xlu0 %1001
      %1003 = vrot.lane.b32.xlu0 %v244, 24
      %v1004 = vpop.permute.xlu0 %1003
      %1005 = vrot.lane.b32.xlu0 %v246, 24
      %v1006 = vpop.permute.xlu0 %1005
      %1007 = vrot.lane.b32.xlu0 %v247, 24
      %v1008 = vpop.permute.xlu0 %1007
      %1009 = vrot.lane.b32.xlu0 %v249, 24
      %v1010 = vpop.permute.xlu0 %1009
      %1011 = vrot.lane.b32.xlu0 %v250, 24
      %v1012 = vpop.permute.xlu0 %1011
      %1013 = vrot.lane.b32.xlu0 %v252, 24
      %v1014 = vpop.permute.xlu0 %1013
      %1015 = vrot.lane.b32.xlu0 %v253, 24
      %v1016 = vpop.permute.xlu0 %1015
      %1017 = vrot.lane.b32.xlu0 %v255, 24
      %v1018 = vpop.permute.xlu0 %1017
      %1019 = vrot.lane.b32.xlu0 %v256, 24
      %v1020 = vpop.permute.xlu0 %1019
      %1021 = vrot.lane.b32.xlu0 %v258, 24
      %v1022 = vpop.permute.xlu0 %1021
      %1023 = vrot.lane.b32.xlu0 %v259, 24
      %v1024 = vpop.permute.xlu0 %1023
      %1025 = vrot.lane.b32.xlu0 %v261, 24
      %v1026 = vpop.permute.xlu0 %1025
      %1027 = vrot.lane.b32.xlu0 %v262, 24
      %v1028 = vpop.permute.xlu0 %1027
      %1029 = vrot.lane.b32.xlu0 %v264, 24
      %v1030 = vpop.permute.xlu0 %1029
      %1031 = vrot.lane.b32.xlu0 %v265, 24
      %v1032 = vpop.permute.xlu0 %1031
      %1033 = vrot.lane.b32.xlu0 %v267, 24
      %v1034 = vpop.permute.xlu0 %1033
      %1035 = vrot.lane.b32.xlu0 %v268, 24
      %v1036 = vpop.permute.xlu0 %1035
      %1037 = vrot.lane.b32.xlu0 %v270, 24
      %v1038 = vpop.permute.xlu0 %1037
      %1039 = vrot.lane.b32.xlu0 %v271, 24
      %v1040 = vpop.permute.xlu0 %1039
      %1041 = vrot.lane.b32.xlu0 %v273, 24
      %v1042 = vpop.permute.xlu0 %1041
      %1043 = vrot.lane.b32.xlu0 %v274, 24
      %v1044 = vpop.permute.xlu0 %1043
      %v1078 = vrot.slane %v273, 1
      %v1079 = vrot.slane %v274, 1
      %v1080 = vsel %vm324, %v1078, %v1079
      %v1081 = vrot.slane %v275, 1
      %v1082 = vsel %vm324, %v1079, %v1081
      %1083 = vrot.lane.b32.xlu0 %v337, 28
      %v1084 = vpop.permute.xlu0 %1083
      %1085 = vrot.lane.b32.xlu0 %v339, 28
      %v1086 = vpop.permute.xlu0 %1085
      %1087 = vrot.lane.b32.xlu0 %v342, 28
      %v1088 = vpop.permute.xlu0 %1087
      %1089 = vrot.lane.b32.xlu0 %v344, 28
      %v1090 = vpop.permute.xlu0 %1089
      %1091 = vrot.lane.b32.xlu0 %v347, 28
      %v1092 = vpop.permute.xlu0 %1091
      %1093 = vrot.lane.b32.xlu0 %v349, 28
      %v1094 = vpop.permute.xlu0 %1093
      %1095 = vrot.lane.b32.xlu0 %v352, 28
      %v1096 = vpop.permute.xlu0 %1095
      %1097 = vrot.lane.b32.xlu0 %v354, 28
      %v1098 = vpop.permute.xlu0 %1097
      %1099 = vrot.lane.b32.xlu0 %v357, 28
      %v1100 = vpop.permute.xlu0 %1099
      %1101 = vrot.lane.b32.xlu0 %v359, 28
      %v1102 = vpop.permute.xlu0 %1101
      %1103 = vrot.lane.b32.xlu0 %v362, 28
      %v1104 = vpop.permute.xlu0 %1103
      %1105 = vrot.lane.b32.xlu0 %v364, 28
      %v1106 = vpop.permute.xlu0 %1105
      %1107 = vrot.lane.b32.xlu0 %v367, 28
      %v1108 = vpop.permute.xlu0 %1107
      %1109 = vrot.lane.b32.xlu0 %v369, 28
      %v1110 = vpop.permute.xlu0 %1109
      %1111 = vrot.lane.b32.xlu0 %v372, 28
      %v1112 = vpop.permute.xlu0 %1111
      %1113 = vrot.lane.b32.xlu0 %v374, 28
      %v1114 = vpop.permute.xlu0 %1113
      %1115 = vrot.lane.b32.xlu0 %v377, 28
      %v1116 = vpop.permute.xlu0 %1115
      %1117 = vrot.lane.b32.xlu0 %v379, 28
      %v1118 = vpop.permute.xlu0 %1117
      %1119 = vrot.lane.b32.xlu0 %v382, 28
      %v1120 = vpop.permute.xlu0 %1119
      %1121 = vrot.lane.b32.xlu0 %v384, 28
      %v1122 = vpop.permute.xlu0 %1121
      %1123 = vrot.lane.b32.xlu0 %v387, 28
      %v1124 = vpop.permute.xlu0 %1123
      %1125 = vrot.lane.b32.xlu0 %v389, 28
      %v1126 = vpop.permute.xlu0 %1125
      %1127 = vrot.lane.b32.xlu0 %v392, 28
      %v1128 = vpop.permute.xlu0 %1127
      %1129 = vrot.lane.b32.xlu0 %v394, 28
      %v1130 = vpop.permute.xlu0 %1129
      %1131 = vrot.lane.b32.xlu0 %v397, 28
      %v1132 = vpop.permute.xlu0 %1131
      %1133 = vrot.lane.b32.xlu0 %v399, 28
      %v1134 = vpop.permute.xlu0 %1133
      %1135 = vrot.lane.b32.xlu0 %v402, 28
      %v1136 = vpop.permute.xlu0 %1135
      %1137 = vrot.lane.b32.xlu0 %v404, 28
      %v1138 = vpop.permute.xlu0 %1137
      %1139 = vrot.lane.b32.xlu0 %v779, 28
      %v1140 = vpop.permute.xlu0 %1139
      %1141 = vrot.lane.b32.xlu0 %v781, 28
      %v1142 = vpop.permute.xlu0 %1141
      %1143 = vrot.lane.b32.xlu0 %v1080, 28
      %v1144 = vpop.permute.xlu0 %1143
      %1145 = vrot.lane.b32.xlu0 %v1082, 28
      %v1146 = vpop.permute.xlu0 %1145
      %v1179 = vrot.slane %v273, 2
      %v1180 = vrot.slane %v274, 2
      %v1181 = vsel %vm501, %v1179, %v1180
      %v1182 = vrot.slane %v275, 2
      %v1183 = vsel %vm501, %v1180, %v1182
      %1184 = vrot.lane.b32.xlu0 %v514, 32
      %v1185 = vpop.permute.xlu0 %1184
      %1186 = vrot.lane.b32.xlu0 %v516, 32
      %v1187 = vpop.permute.xlu0 %1186
      %1188 = vrot.lane.b32.xlu0 %v519, 32
      %v1189 = vpop.permute.xlu0 %1188
      %1190 = vrot.lane.b32.xlu0 %v521, 32
      %v1191 = vpop.permute.xlu0 %1190
      %1192 = vrot.lane.b32.xlu0 %v524, 32
      %v1193 = vpop.permute.xlu0 %1192
      %1194 = vrot.lane.b32.xlu0 %v526, 32
      %v1195 = vpop.permute.xlu0 %1194
      %1196 = vrot.lane.b32.xlu0 %v529, 32
      %v1197 = vpop.permute.xlu0 %1196
      %1198 = vrot.lane.b32.xlu0 %v531, 32
      %v1199 = vpop.permute.xlu0 %1198
      %1200 = vrot.lane.b32.xlu0 %v534, 32
      %v1201 = vpop.permute.xlu0 %1200
      %1202 = vrot.lane.b32.xlu0 %v536, 32
      %v1203 = vpop.permute.xlu0 %1202
      %1204 = vrot.lane.b32.xlu0 %v539, 32
      %v1205 = vpop.permute.xlu0 %1204
      %1206 = vrot.lane.b32.xlu0 %v541, 32
      %v1207 = vpop.permute.xlu0 %1206
      %1208 = vrot.lane.b32.xlu0 %v544, 32
      %v1209 = vpop.permute.xlu0 %1208
      %1210 = vrot.lane.b32.xlu0 %v546, 32
      %v1211 = vpop.permute.xlu0 %1210
      %1212 = vrot.lane.b32.xlu0 %v549, 32
      %v1213 = vpop.permute.xlu0 %1212
      %1214 = vrot.lane.b32.xlu0 %v551, 32
      %v1215 = vpop.permute.xlu0 %1214
      %1216 = vrot.lane.b32.xlu0 %v554, 32
      %v1217 = vpop.permute.xlu0 %1216
      %1218 = vrot.lane.b32.xlu0 %v556, 32
      %v1219 = vpop.permute.xlu0 %1218
      %1220 = vrot.lane.b32.xlu0 %v559, 32
      %v1221 = vpop.permute.xlu0 %1220
      %1222 = vrot.lane.b32.xlu0 %v561, 32
      %v1223 = vpop.permute.xlu0 %1222
      %1224 = vrot.lane.b32.xlu0 %v564, 32
      %v1225 = vpop.permute.xlu0 %1224
      %1226 = vrot.lane.b32.xlu0 %v566, 32
      %v1227 = vpop.permute.xlu0 %1226
      %1228 = vrot.lane.b32.xlu0 %v569, 32
      %v1229 = vpop.permute.xlu0 %1228
      %1230 = vrot.lane.b32.xlu0 %v571, 32
      %v1231 = vpop.permute.xlu0 %1230
      %1232 = vrot.lane.b32.xlu0 %v574, 32
      %v1233 = vpop.permute.xlu0 %1232
      %1234 = vrot.lane.b32.xlu0 %v576, 32
      %v1235 = vpop.permute.xlu0 %1234
      %1236 = vrot.lane.b32.xlu0 %v579, 32
      %v1237 = vpop.permute.xlu0 %1236
      %1238 = vrot.lane.b32.xlu0 %v581, 32
      %v1239 = vpop.permute.xlu0 %1238
      %1240 = vrot.lane.b32.xlu0 %v880, 32
      %v1241 = vpop.permute.xlu0 %1240
      %1242 = vrot.lane.b32.xlu0 %v882, 32
      %v1243 = vpop.permute.xlu0 %1242
      %1244 = vrot.lane.b32.xlu0 %v1181, 32
      %v1245 = vpop.permute.xlu0 %1244
      %1246 = vrot.lane.b32.xlu0 %v1183, 32
      %v1247 = vpop.permute.xlu0 %1246
      %vm1280 = vcmask 31744
      %v1281 = vsel %vm1280, %v222, %v406
      %v1282 = vsel %vm1280, %v223, %v408
      %v1283 = vsel %vm1280, %v225, %v410
      %v1284 = vsel %vm1280, %v226, %v412
      %v1285 = vsel %vm1280, %v228, %v414
      %v1286 = vsel %vm1280, %v229, %v416
      %v1287 = vsel %vm1280, %v231, %v418
      %v1288 = vsel %vm1280, %v232, %v420
      %v1289 = vsel %vm1280, %v234, %v422
      %v1290 = vsel %vm1280, %v235, %v424
      %v1291 = vsel %vm1280, %v237, %v426
      %v1292 = vsel %vm1280, %v238, %v428
      %v1293 = vsel %vm1280, %v240, %v430
      %v1294 = vsel %vm1280, %v241, %v432
      %v1295 = vsel %vm1280, %v243, %v434
      %v1296 = vsel %vm1280, %v244, %v436
      %v1297 = vsel %vm1280, %v246, %v438
      %v1298 = vsel %vm1280, %v247, %v440
      %v1299 = vsel %vm1280, %v249, %v442
      %v1300 = vsel %vm1280, %v250, %v444
      %v1301 = vsel %vm1280, %v252, %v446
      %v1302 = vsel %vm1280, %v253, %v448
      %v1303 = vsel %vm1280, %v255, %v450
      %v1304 = vsel %vm1280, %v256, %v452
      %v1305 = vsel %vm1280, %v258, %v454
      %v1306 = vsel %vm1280, %v259, %v456
      %v1307 = vsel %vm1280, %v261, %v458
      %v1308 = vsel %vm1280, %v262, %v460
      %v1309 = vsel %vm1280, %v264, %v462
      %v1310 = vsel %vm1280, %v265, %v464
      %v1311 = vsel %vm1280, %v267, %v466
      %v1312 = vsel %vm1280, %v268, %v468
      %vm1313 = vcmask 64512
      %v1314 = vsel %vm1313, %v1281, %v583
      %v1315 = vsel %vm1313, %v1282, %v585
      %v1316 = vsel %vm1313, %v1283, %v587
      %v1317 = vsel %vm1313, %v1284, %v589
      %v1318 = vsel %vm1313, %v1285, %v591
      %v1319 = vsel %vm1313, %v1286, %v593
      %v1320 = vsel %vm1313, %v1287, %v595
      %v1321 = vsel %vm1313, %v1288, %v597
      %v1322 = vsel %vm1313, %v1289, %v599
      %v1323 = vsel %vm1313, %v1290, %v601
      %v1324 = vsel %vm1313, %v1291, %v603
      %v1325 = vsel %vm1313, %v1292, %v605
      %v1326 = vsel %vm1313, %v1293, %v607
      %v1327 = vsel %vm1313, %v1294, %v609
      %v1328 = vsel %vm1313, %v1295, %v611
      %v1329 = vsel %vm1313, %v1296, %v613
      %v1330 = vsel %vm1313, %v1297, %v615
      %v1331 = vsel %vm1313, %v1298, %v617
      %v1332 = vsel %vm1313, %v1299, %v619
      %v1333 = vsel %vm1313, %v1300, %v621
      %v1334 = vsel %vm1313, %v1301, %v623
      %v1335 = vsel %vm1313, %v1302, %v625
      %v1336 = vsel %vm1313, %v1303, %v627
      %v1337 = vsel %vm1313, %v1304, %v629
      %v1338 = vsel %vm1313, %v1305, %v631
      %v1339 = vsel %vm1313, %v1306, %v633
      %v1340 = vsel %vm1313, %v1307, %v635
      %v1341 = vsel %vm1313, %v1308, %v637
      %v1342 = vsel %vm1313, %v1309, %v639
      %v1343 = vsel %vm1313, %v1310, %v641
      %v1344 = vsel %vm1313, %v1311, %v643
      %v1345 = vsel %vm1313, %v1312, %v645
      %vm1346 = vcmask 97280
      %v1347 = vsel %vm1346, %v1314, %v681
      %v1348 = vsel %vm1346, %v1315, %v683
      %v1349 = vsel %vm1346, %v1316, %v685
      %v1350 = vsel %vm1346, %v1317, %v687
      %v1351 = vsel %vm1346, %v1318, %v689
      %v1352 = vsel %vm1346, %v1319, %v691
      %v1353 = vsel %vm1346, %v1320, %v693
      %v1354 = vsel %vm1346, %v1321, %v695
      %v1355 = vsel %vm1346, %v1322, %v697
      %v1356 = vsel %vm1346, %v1323, %v699
      %v1357 = vsel %vm1346, %v1324, %v701
      %v1358 = vsel %vm1346, %v1325, %v703
      %v1359 = vsel %vm1346, %v1326, %v705
      %v1360 = vsel %vm1346, %v1327, %v707
      %v1361 = vsel %vm1346, %v1328, %v709
      %v1362 = vsel %vm1346, %v1329, %v711
      %v1363 = vsel %vm1346, %v1330, %v713
      %v1364 = vsel %vm1346, %v1331, %v715
      %v1365 = vsel %vm1346, %v1332, %v717
      %v1366 = vsel %vm1346, %v1333, %v719
      %v1367 = vsel %vm1346, %v1334, %v721
      %v1368 = vsel %vm1346, %v1335, %v723
      %v1369 = vsel %vm1346, %v1336, %v725
      %v1370 = vsel %vm1346, %v1337, %v727
      %v1371 = vsel %vm1346, %v1338, %v729
      %v1372 = vsel %vm1346, %v1339, %v731
      %v1373 = vsel %vm1346, %v1340, %v733
      %v1374 = vsel %vm1346, %v1341, %v735
      %v1375 = vsel %vm1346, %v1342, %v737
      %v1376 = vsel %vm1346, %v1343, %v739
      %v1377 = vsel %vm1346, %v1344, %v741
      %v1378 = vsel %vm1346, %v1345, %v743
      %vm1379 = vcmask 130048
      %v1380 = vsel %vm1379, %v1347, %v783
      %v1381 = vsel %vm1379, %v1348, %v785
      %v1382 = vsel %vm1379, %v1349, %v787
      %v1383 = vsel %vm1379, %v1350, %v789
      %v1384 = vsel %vm1379, %v1351, %v791
      %v1385 = vsel %vm1379, %v1352, %v793
      %v1386 = vsel %vm1379, %v1353, %v795
      %v1387 = vsel %vm1379, %v1354, %v797
      %v1388 = vsel %vm1379, %v1355, %v799
      %v1389 = vsel %vm1379, %v1356, %v801
      %v1390 = vsel %vm1379, %v1357, %v803
      %v1391 = vsel %vm1379, %v1358, %v805
      %v1392 = vsel %vm1379, %v1359, %v807
      %v1393 = vsel %vm1379, %v1360, %v809
      %v1394 = vsel %vm1379, %v1361, %v811
      %v1395 = vsel %vm1379, %v1362, %v813
      %v1396 = vsel %vm1379, %v1363, %v815
      %v1397 = vsel %vm1379, %v1364, %v817
      %v1398 = vsel %vm1379, %v1365, %v819
      %v1399 = vsel %vm1379, %v1366, %v821
      %v1400 = vsel %vm1379, %v1367, %v823
      %v1401 = vsel %vm1379, %v1368, %v825
      %v1402 = vsel %vm1379, %v1369, %v827
      %v1403 = vsel %vm1379, %v1370, %v829
      %v1404 = vsel %vm1379, %v1371, %v831
      %v1405 = vsel %vm1379, %v1372, %v833
      %v1406 = vsel %vm1379, %v1373, %v835
      %v1407 = vsel %vm1379, %v1374, %v837
      %v1408 = vsel %vm1379, %v1375, %v839
      %v1409 = vsel %vm1379, %v1376, %v841
      %v1410 = vsel %vm1379, %v1377, %v843
      %v1411 = vsel %vm1379, %v1378, %v845
      %vm1412 = vcmask 162816
      %v1413 = vsel %vm1412, %v1380, %v884
      %v1414 = vsel %vm1412, %v1381, %v886
      %v1415 = vsel %vm1412, %v1382, %v888
      %v1416 = vsel %vm1412, %v1383, %v890
      %v1417 = vsel %vm1412, %v1384, %v892
      %v1418 = vsel %vm1412, %v1385, %v894
      %v1419 = vsel %vm1412, %v1386, %v896
      %v1420 = vsel %vm1412, %v1387, %v898
      %v1421 = vsel %vm1412, %v1388, %v900
      %v1422 = vsel %vm1412, %v1389, %v902
      %v1423 = vsel %vm1412, %v1390, %v904
      %v1424 = vsel %vm1412, %v1391, %v906
      %v1425 = vsel %vm1412, %v1392, %v908
      %v1426 = vsel %vm1412, %v1393, %v910
      %v1427 = vsel %vm1412, %v1394, %v912
      %v1428 = vsel %vm1412, %v1395, %v914
      %v1429 = vsel %vm1412, %v1396, %v916
      %v1430 = vsel %vm1412, %v1397, %v918
      %v1431 = vsel %vm1412, %v1398, %v920
      %v1432 = vsel %vm1412, %v1399, %v922
      %v1433 = vsel %vm1412, %v1400, %v924
      %v1434 = vsel %vm1412, %v1401, %v926
      %v1435 = vsel %vm1412, %v1402, %v928
      %v1436 = vsel %vm1412, %v1403, %v930
      %v1437 = vsel %vm1412, %v1404, %v932
      %v1438 = vsel %vm1412, %v1405, %v934
      %v1439 = vsel %vm1412, %v1406, %v936
      %v1440 = vsel %vm1412, %v1407, %v938
      %v1441 = vsel %vm1412, %v1408, %v940
      %v1442 = vsel %vm1412, %v1409, %v942
      %v1443 = vsel %vm1412, %v1410, %v944
      %v1444 = vsel %vm1412, %v1411, %v946
      %vm1445 = vcmask 195584
      %v1446 = vsel %vm1445, %v1413, %v982
      %v1447 = vsel %vm1445, %v1414, %v984
      %v1448 = vsel %vm1445, %v1415, %v986
      %v1449 = vsel %vm1445, %v1416, %v988
      %v1450 = vsel %vm1445, %v1417, %v990
      %v1451 = vsel %vm1445, %v1418, %v992
      %v1452 = vsel %vm1445, %v1419, %v994
      %v1453 = vsel %vm1445, %v1420, %v996
      %v1454 = vsel %vm1445, %v1421, %v998
      %v1455 = vsel %vm1445, %v1422, %v1000
      %v1456 = vsel %vm1445, %v1423, %v1002
      %v1457 = vsel %vm1445, %v1424, %v1004
      %v1458 = vsel %vm1445, %v1425, %v1006
      %v1459 = vsel %vm1445, %v1426, %v1008
      %v1460 = vsel %vm1445, %v1427, %v1010
      %v1461 = vsel %vm1445, %v1428, %v1012
      %v1462 = vsel %vm1445, %v1429, %v1014
      %v1463 = vsel %vm1445, %v1430, %v1016
      %v1464 = vsel %vm1445, %v1431, %v1018
      %v1465 = vsel %vm1445, %v1432, %v1020
      %v1466 = vsel %vm1445, %v1433, %v1022
      %v1467 = vsel %vm1445, %v1434, %v1024
      %v1468 = vsel %vm1445, %v1435, %v1026
      %v1469 = vsel %vm1445, %v1436, %v1028
      %v1470 = vsel %vm1445, %v1437, %v1030
      %v1471 = vsel %vm1445, %v1438, %v1032
      %v1472 = vsel %vm1445, %v1439, %v1034
      %v1473 = vsel %vm1445, %v1440, %v1036
      %v1474 = vsel %vm1445, %v1441, %v1038
      %v1475 = vsel %vm1445, %v1442, %v1040
      %v1476 = vsel %vm1445, %v1443, %v1042
      %v1477 = vsel %vm1445, %v1444, %v1044
      %vm1478 = vcmask 228352
      %v1479 = vsel %vm1478, %v1446, %v1084
      %v1480 = vsel %vm1478, %v1447, %v1086
      %v1481 = vsel %vm1478, %v1448, %v1088
      %v1482 = vsel %vm1478, %v1449, %v1090
      %v1483 = vsel %vm1478, %v1450, %v1092
      %v1484 = vsel %vm1478, %v1451, %v1094
      %v1485 = vsel %vm1478, %v1452, %v1096
      %v1486 = vsel %vm1478, %v1453, %v1098
      %v1487 = vsel %vm1478, %v1454, %v1100
      %v1488 = vsel %vm1478, %v1455, %v1102
      %v1489 = vsel %vm1478, %v1456, %v1104
      %v1490 = vsel %vm1478, %v1457, %v1106
      %v1491 = vsel %vm1478, %v1458, %v1108
      %v1492 = vsel %vm1478, %v1459, %v1110
      %v1493 = vsel %vm1478, %v1460, %v1112
      %v1494 = vsel %vm1478, %v1461, %v1114
      %v1495 = vsel %vm1478, %v1462, %v1116
      %v1496 = vsel %vm1478, %v1463, %v1118
      %v1497 = vsel %vm1478, %v1464, %v1120
      %v1498 = vsel %vm1478, %v1465, %v1122
      %v1499 = vsel %vm1478, %v1466, %v1124
      %v1500 = vsel %vm1478, %v1467, %v1126
      %v1501 = vsel %vm1478, %v1468, %v1128
      %v1502 = vsel %vm1478, %v1469, %v1130
      %v1503 = vsel %vm1478, %v1470, %v1132
      %v1504 = vsel %vm1478, %v1471, %v1134
      %v1505 = vsel %vm1478, %v1472, %v1136
      %v1506 = vsel %vm1478, %v1473, %v1138
      %v1507 = vsel %vm1478, %v1474, %v1140
      %v1508 = vsel %vm1478, %v1475, %v1142
      %v1509 = vsel %vm1478, %v1476, %v1144
      %v1510 = vsel %vm1478, %v1477, %v1146
      %vm1511 = vcmask 261120
      %v1512 = vsel %vm1511, %v1479, %v1185
      %v1513 = vsel %vm1511, %v1480, %v1187
      %v1514 = vsel %vm1511, %v1481, %v1189
      %v1515 = vsel %vm1511, %v1482, %v1191
      %v1516 = vsel %vm1511, %v1483, %v1193
      %v1517 = vsel %vm1511, %v1484, %v1195
      %v1518 = vsel %vm1511, %v1485, %v1197
      %v1519 = vsel %vm1511, %v1486, %v1199
      %v1520 = vsel %vm1511, %v1487, %v1201
      %v1521 = vsel %vm1511, %v1488, %v1203
      %v1522 = vsel %vm1511, %v1489, %v1205
      %v1523 = vsel %vm1511, %v1490, %v1207
      %v1524 = vsel %vm1511, %v1491, %v1209
      %v1525 = vsel %vm1511, %v1492, %v1211
      %v1526 = vsel %vm1511, %v1493, %v1213
      %v1527 = vsel %vm1511, %v1494, %v1215
      %v1528 = vsel %vm1511, %v1495, %v1217
      %v1529 = vsel %vm1511, %v1496, %v1219
      %v1530 = vsel %vm1511, %v1497, %v1221
      %v1531 = vsel %vm1511, %v1498, %v1223
      %v1532 = vsel %vm1511, %v1499, %v1225
      %v1533 = vsel %vm1511, %v1500, %v1227
      %v1534 = vsel %vm1511, %v1501, %v1229
      %v1535 = vsel %vm1511, %v1502, %v1231
      %v1536 = vsel %vm1511, %v1503, %v1233
      %v1537 = vsel %vm1511, %v1504, %v1235
      %v1538 = vsel %vm1511, %v1505, %v1237
      %v1539 = vsel %vm1511, %v1506, %v1239
      %v1540 = vsel %vm1511, %v1507, %v1241
      %v1541 = vsel %vm1511, %v1508, %v1243
      %v1542 = vsel %vm1511, %v1509, %v1245
      %v1543 = vsel %vm1511, %v1510, %v1247
      %v1544 = vld [vmem:[%s210] sm:$0xff]
      %v1545 = vld [vmem:[%s210 + $0x8] sm:$0xff]
      %v1546 = vld [vmem:[%s210 + $0x10] sm:$0xff]
      %v1547 = vld [vmem:[%s210 + $0x18] sm:$0xff]
      %v1548 = vld [vmem:[%s210 + $0x20] sm:$0xf]
      %v1549 = vld [vmem:[%s213] sm:$0x1]
      %v1551 = vperm.slane %v1549, 0
      %vm1553 = vcmask 293888
      %v1555 = vsel %vm1553, %v1512, 0
      %v1558 = vsel %vm1553, %v1513, 0
      %v1561 = vsel %vm1553, %v1514, 0
      %v1564 = vsel %vm1553, %v1515, 0
      %v1567 = vsel %vm1553, %v1516, 0
      %v1570 = vsel %vm1553, %v1517, 0
      %v1573 = vsel %vm1553, %v1518, 0
      %v1576 = vsel %vm1553, %v1519, 0
      %v1579 = vsel %vm1553, %v1520, 0
      %v1582 = vsel %vm1553, %v1521, 0
      %v1585 = vsel %vm1553, %v1522, 0
      %v1588 = vsel %vm1553, %v1523, 0
      %v1591 = vsel %vm1553, %v1524, 0
      %v1594 = vsel %vm1553, %v1525, 0
      %v1597 = vsel %vm1553, %v1526, 0
      %v1600 = vsel %vm1553, %v1527, 0
      %v1603 = vsel %vm1553, %v1528, 0
      %v1606 = vsel %vm1553, %v1529, 0
      %v1609 = vsel %vm1553, %v1530, 0
      %v1612 = vsel %vm1553, %v1531, 0
      %v1615 = vsel %vm1553, %v1532, 0
      %v1618 = vsel %vm1553, %v1533, 0
      %v1621 = vsel %vm1553, %v1534, 0
      %v1624 = vsel %vm1553, %v1535, 0
      %v1627 = vsel %vm1553, %v1536, 0
      %v1630 = vsel %vm1553, %v1537, 0
      %v1633 = vsel %vm1553, %v1538, 0
      %v1636 = vsel %vm1553, %v1539, 0
      %v1639 = vsel %vm1553, %v1540, 0
      %v1642 = vsel %vm1553, %v1541, 0
      %v1645 = vsel %vm1553, %v1542, 0
      %v1648 = vsel %vm1553, %v1543, 0
      %vm1650 = vcmask 1043456
      %v1652 = vsel %vm1650, %v1548, 0
      %1654 = vmatpush.msra.mxu0 0.0
      %1655 = vmatpush.msra.mxu0 0.0
      %1656 = vmatpush.msra.mxu0 0.0
      %1657 = vmatpush.msra.mxu0 0.0
      %1658 = vmatpush.msra.mxu0 0.0
      %1659 = vmatpush.msra.mxu0 0.0
      %1660 = vmatpush.msra.mxu0 0.0
      %1661 = vmatpush.msra.mxu0 0.0
      %1662 = vmatpush.msra.mxu0 0.0
      %1663 = vmatpush.msra.mxu0 0.0
      %1664 = vmatpush.msra.mxu0 0.0
      %1665 = vmatpush.msra.mxu0 %v1652
      %1666 = vmatpush.msra.mxu0 %v1547
      %1667 = vmatpush.msra.mxu0 %v1546
      %1668 = vmatpush.msra.mxu0 %v1545
      %1669 = vmatpush.msra.mxu0 %v1544
      %1670 = vmatmul.f32.gmra.mxu0 %v1555
      %v1671 = vpop.f32.mrf.mxu0
      %v1672 = vadd.f32 %v1551, %v1671
      %1673 = vmatmul.f32.gmra.mxu0 %v1558
      %v1674 = vpop.f32.mrf.mxu0
      %v1675 = vadd.f32 %v1551, %v1674
      %1676 = vmatmul.f32.gmra.mxu0 %v1561
      %v1677 = vpop.f32.mrf.mxu0
      %v1678 = vadd.f32 %v1551, %v1677
      %1679 = vmatmul.f32.gmra.mxu0 %v1564
      %v1680 = vpop.f32.mrf.mxu0
      %v1681 = vadd.f32 %v1551, %v1680
      %1682 = vmatmul.f32.gmra.mxu0 %v1567
      %v1683 = vpop.f32.mrf.mxu0
      %v1684 = vadd.f32 %v1551, %v1683
      %1685 = vmatmul.f32.gmra.mxu0 %v1570
      %v1686 = vpop.f32.mrf.mxu0
      %v1687 = vadd.f32 %v1551, %v1686
      %1688 = vmatmul.f32.gmra.mxu0 %v1573
      %v1689 = vpop.f32.mrf.mxu0
      %v1690 = vadd.f32 %v1551, %v1689
      %1691 = vmatmul.f32.gmra.mxu0 %v1576
      %v1692 = vpop.f32.mrf.mxu0
      %v1693 = vadd.f32 %v1551, %v1692
      %1694 = vmatmul.f32.gmra.mxu0 %v1579
      %v1695 = vpop.f32.mrf.mxu0
      %v1696 = vadd.f32 %v1551, %v1695
      %1697 = vmatmul.f32.gmra.mxu0 %v1582
      %v1698 = vpop.f32.mrf.mxu0
      %v1699 = vadd.f32 %v1551, %v1698
      %1700 = vmatmul.f32.gmra.mxu0 %v1585
      %v1701 = vpop.f32.mrf.mxu0
      %v1702 = vadd.f32 %v1551, %v1701
      %1703 = vmatmul.f32.gmra.mxu0 %v1588
      %v1704 = vpop.f32.mrf.mxu0
      %v1705 = vadd.f32 %v1551, %v1704
      %1706 = vmatmul.f32.gmra.mxu0 %v1591
      %v1707 = vpop.f32.mrf.mxu0
      %v1708 = vadd.f32 %v1551, %v1707
      %1709 = vmatmul.f32.gmra.mxu0 %v1594
      %v1710 = vpop.f32.mrf.mxu0
      %v1711 = vadd.f32 %v1551, %v1710
      %1712 = vmatmul.f32.gmra.mxu0 %v1597
      %v1713 = vpop.f32.mrf.mxu0
      %v1714 = vadd.f32 %v1551, %v1713
      %1715 = vmatmul.f32.gmra.mxu0 %v1600
      %v1716 = vpop.f32.mrf.mxu0
      %v1717 = vadd.f32 %v1551, %v1716
      %1718 = vmatmul.f32.gmra.mxu0 %v1603
      %v1719 = vpop.f32.mrf.mxu0
      %v1720 = vadd.f32 %v1551, %v1719
      %1721 = vmatmul.f32.gmra.mxu0 %v1606
      %v1722 = vpop.f32.mrf.mxu0
      %v1723 = vadd.f32 %v1551, %v1722
      %1724 = vmatmul.f32.gmra.mxu0 %v1609
      %v1725 = vpop.f32.mrf.mxu0
      %v1726 = vadd.f32 %v1551, %v1725
      %1727 = vmatmul.f32.gmra.mxu0 %v1612
      %v1728 = vpop.f32.mrf.mxu0
      %v1729 = vadd.f32 %v1551, %v1728
      %1730 = vmatmul.f32.gmra.mxu0 %v1615
      %v1731 = vpop.f32.mrf.mxu0
      %v1732 = vadd.f32 %v1551, %v1731
      %1733 = vmatmul.f32.gmra.mxu0 %v1618
      %v1734 = vpop.f32.mrf.mxu0
      %v1735 = vadd.f32 %v1551, %v1734
      %1736 = vmatmul.f32.gmra.mxu0 %v1621
      %v1737 = vpop.f32.mrf.mxu0
      %v1738 = vadd.f32 %v1551, %v1737
      %1739 = vmatmul.f32.gmra.mxu0 %v1624
      %v1740 = vpop.f32.mrf.mxu0
      %v1741 = vadd.f32 %v1551, %v1740
      %1742 = vmatmul.f32.gmra.mxu0 %v1627
      %v1743 = vpop.f32.mrf.mxu0
      %v1744 = vadd.f32 %v1551, %v1743
      %1745 = vmatmul.f32.gmra.mxu0 %v1630
      %v1746 = vpop.f32.mrf.mxu0
      %v1747 = vadd.f32 %v1551, %v1746
      %1748 = vmatmul.f32.gmra.mxu0 %v1633
      %v1749 = vpop.f32.mrf.mxu0
      %v1750 = vadd.f32 %v1551, %v1749
      %1751 = vmatmul.f32.gmra.mxu0 %v1636
      %v1752 = vpop.f32.mrf.mxu0
      %v1753 = vadd.f32 %v1551, %v1752
      %1754 = vmatmul.f32.gmra.mxu0 %v1639
      %v1755 = vpop.f32.mrf.mxu0
      %v1756 = vadd.f32 %v1551, %v1755
      %1757 = vmatmul.f32.gmra.mxu0 %v1642
      %v1758 = vpop.f32.mrf.mxu0
      %v1759 = vadd.f32 %v1551, %v1758
      %1760 = vmatmul.f32.gmra.mxu0 %v1645
      %v1761 = vpop.f32.mrf.mxu0
      %v1762 = vadd.f32 %v1551, %v1761
      %1763 = vmatmul.f32.gmra.mxu0 %v1648
      %v1764 = vpop.f32.mrf.mxu0
      %v1765 = vadd.f32 %v1551, %v1764
      %1766 = vdwg.mxu0
      %1767 = vst.msk [vmem:[%s221] sm:$0xff] %vm1280, %v1672
      %1768 = vst.msk [vmem:[%s221 + $0x8] sm:$0xff] %vm1280, %v1675
      %1769 = vst.msk [vmem:[%s221 + $0x10] sm:$0xff] %vm1280, %v1678
      %1770 = vst.msk [vmem:[%s221 + $0x18] sm:$0xff] %vm1280, %v1681
      %1771 = vst.msk [vmem:[%s221 + $0x20] sm:$0xff] %vm1280, %v1684
      %1772 = vst.msk [vmem:[%s221 + $0x28] sm:$0xff] %vm1280, %v1687
      %1773 = vst.msk [vmem:[%s221 + $0x30] sm:$0xff] %vm1280, %v1690
      %1774 = vst.msk [vmem:[%s221 + $0x38] sm:$0xff] %vm1280, %v1693
      %1775 = vst.msk [vmem:[%s221 + $0x40] sm:$0xff] %vm1280, %v1696
      %1776 = vst.msk [vmem:[%s221 + $0x48] sm:$0xff] %vm1280, %v1699
      %1777 = vst.msk [vmem:[%s221 + $0x50] sm:$0xff] %vm1280, %v1702
      %1778 = vst.msk [vmem:[%s221 + $0x58] sm:$0xff] %vm1280, %v1705
      %1779 = vst.msk [vmem:[%s221 + $0x60] sm:$0xff] %vm1280, %v1708
      %1780 = vst.msk [vmem:[%s221 + $0x68] sm:$0xff] %vm1280, %v1711
      %1781 = vst.msk [vmem:[%s221 + $0x70] sm:$0xff] %vm1280, %v1714
      %1782 = vst.msk [vmem:[%s221 + $0x78] sm:$0xff] %vm1280, %v1717
      %1783 = vst.msk [vmem:[%s221 + $0x80] sm:$0xff] %vm1280, %v1720
      %1784 = vst.msk [vmem:[%s221 + $0x88] sm:$0xff] %vm1280, %v1723
      %1785 = vst.msk [vmem:[%s221 + $0x90] sm:$0xff] %vm1280, %v1726
      %1786 = vst.msk [vmem:[%s221 + $0x98] sm:$0xff] %vm1280, %v1729
      %1787 = vst.msk [vmem:[%s221 + $0xa0] sm:$0xff] %vm1280, %v1732
      %1788 = vst.msk [vmem:[%s221 + $0xa8] sm:$0xff] %vm1280, %v1735
      %1789 = vst.msk [vmem:[%s221 + $0xb0] sm:$0xff] %vm1280, %v1738
      %1790 = vst.msk [vmem:[%s221 + $0xb8] sm:$0xff] %vm1280, %v1741
      %1791 = vst.msk [vmem:[%s221 + $0xc0] sm:$0xff] %vm1280, %v1744
      %1792 = vst.msk [vmem:[%s221 + $0xc8] sm:$0xff] %vm1280, %v1747
      %1793 = vst.msk [vmem:[%s221 + $0xd0] sm:$0xff] %vm1280, %v1750
      %1794 = vst.msk [vmem:[%s221 + $0xd8] sm:$0xff] %vm1280, %v1753
      %1795 = vst.msk [vmem:[%s221 + $0xe0] sm:$0xff] %vm1280, %v1756
      %1796 = vst.msk [vmem:[%s221 + $0xe8] sm:$0xff] %vm1280, %v1759
      %1797 = vst.msk [vmem:[%s221 + $0xf0] sm:$0xff] %vm1280, %v1762
      %1798 = vst.msk [vmem:[%s221 + $0xf8] sm:$0xff] %vm1280, %v1765
      %p1799 = scmp.lt.s32.totalorder %s18, 1
      %s1800 = scalar_select %p1799, %s18, 1
      %p1801 = scmp.lt.s32.totalorder %s19, 0
      %s1802 = scalar_select %p1801, %s19, 0
      %s1803 = smul.addr %s1800, 32
      %s1804 = sadd.s32 %s1802, %s1803
      %s1805 = smul.addr %s1804, 8
      %s1806 = scalar_lea.vmem %s3, %s1805
      // Predicated region
      $region33: #{residual_block_forward.7} parent=31 // pred_check
        %p1807 = pneg %p124
      $region34: #{residual_block_forward.7} parent=31 // pred_check_branch
        %1809 = sbr.rel (%p1807) target = $region36
      $region35: #{residual_block_forward.7} parent=31 // pred_region
        _
      $region36: #{residual_block_forward.7} parent=31 // pred_fallthru
        _
    $region32: #{residual_block_forward.7} parent=5 // pred_fallthru
      _
    %p1810 = scmp.le.s32.totalorder 2, %s9
    // Predicated region
    $region37: #{residual_block_forward.7} parent=5 // pred_check
      %p1811 = pneg %p1810
    $region38: #{residual_block_forward.7} parent=5 // pred_check_branch
      %1813 = sbr.rel (%p1811) target = $region40
    $region39: #{residual_block_forward.7} parent=5 // pred_region
      %s1814 = ssub.s32 %s9, 2
      // Predicated region
      $region41: #{residual_block_forward.7} parent=39 // pred_check
        %p1815 = pneg %p130
      $region42: #{residual_block_forward.7} parent=39 // pred_check_branch
        %1817 = sbr.rel (%p1815) target = $region44
      $region43: #{residual_block_forward.7} parent=39 // pred_region
        %p1818 = scmp.lt.s32.totalorder %s20, 1
        %s1819 = scalar_select %p1818, %s20, 1
        %p1820 = scmp.lt.s32.totalorder %s21, 0
        %s1821 = scalar_select %p1820, %s21, 0
        %s1822 = smul.addr %s1819, 32
        %s1823 = sadd.s32 %s1821, %s1822
        %s1824 = smul.addr %s1823, 8
        %s1825 = scalar_lea.vmem %s3, %s1824
      $region44: #{residual_block_forward.7} parent=39 // pred_fallthru
        _
    $region40: #{residual_block_forward.7} parent=5 // pred_fallthru
      _
  $region6: #{residual_block_forward.7} parent=0 // loop_footer
    %s13 = sadd.s32 1, %s9
  $region7: #{residual_block_forward.7} parent=0 // loop_footer_branch
    %8 = sbr.rel target = $region3
  $region8: #{residual_block_forward.7} parent=0 // loop_exit
    _

// kernel: residual_block_forward.11
$region0: #{residual_block_forward.11}
  #allocation0 [shape = 'u32[]', space=smem, size = 0x4, offset = 0x4, fixed_abs, tag = 'smem constant byte address 0x4 - core index']
  #allocation1 [shape = 'u32[72,128]{1,0:T(1,128)}', space=vmem, size = 0x9000, scoped, tag = 'internal scratch']
  %s0 = inlined_call_operand.vmem [shape: f32[2,10,10,16], index: 0, kind: input, shape index: {}]
  %s1 = inlined_call_operand.vmem [shape: f32[9,16], index: 1, kind: input, shape index: {}]
  %s2 = inlined_call_operand.vmem [shape: f32[1,16], index: 2, kind: input, shape index: {}]
  %s3 = inlined_call_operand.vmem [shape: f32[2,8,8,16], index: 3, kind: output, shape index: {}]
  %s4 = sld [smem:[#allocation0]]
  $region45: #{residual_block_forward.11} parent=0
    _
  %s6 = ssub.s32 1, %s4
  %s7 = scalar_select 0, %s6, %s4
  loop: start=0, step=1, limit=4
  $region2: #{residual_block_forward.11} parent=0 // loop_pre_header
    _
  $region3: #{residual_block_forward.11} parent=0 // loop_header
    %s9 = sphi 0, %s13
    %p10 = scmp.ge.s32.totalorder %s9, 4
    %s16 = sphi 0, %s28
    %s17 = sphi 0, %s24
    %s18 = sphi 0, %s16
    %s19 = sphi 0, %s17
    %s20 = sphi 0, %s18
    %s21 = sphi 0, %s19
    %s33 = sphi 0, %s35
    %s36 = sphi 0, %s33
    %s37 = sphi 0, %s36
    %s53 = sphi 0, %s37
    %s59 = sphi 0, %s61
    %s62 = sphi 0, %s59
    %s63 = sphi 0, %s62
    %s79 = sphi 0, %s63
    %s85 = sphi 0, %s87
    %s88 = sphi 0, %s85
    %s89 = sphi 0, %s88
    %s105 = sphi 0, %s89
    %s113 = sphi 0, %s115
    %s116 = sphi 0, %s113
    %s117 = sphi 0, %s116
    %s133 = sphi 0, %s117
  $region4: #{residual_block_forward.11} parent=0 // loop_header_branch
    %12 = sbr.rel (%p10) target = $region8
  $region5: #{residual_block_forward.11} parent=0 // loop_body
    %s14 = ssub.s32 %s9, 1
    %s15 = ssub.s32 %s9, 2
    %s22 = sadd.s32 1, %s17
    %p23 = scmp.ge.s32.totalorder %s22, 1
    %s24 = scalar_select %p23, 0, %s22
    %s25 = sadd.s32 1, %s16
    %s26 = scalar_select %p23, %s25, %s16
    %p27 = scmp.ge.s32.totalorder %s26, 2
    %s28 = scalar_select %p27, 0, %s26
    %s29 = ssub.s32 %s16, %s28
    %s30 = ssub.s32 %s17, %s24
    %s31 = sor.u32 %s29, %s30
    %p32 = scmp.eq.s32.totalorder %s31, 0
    %s34 = sadd.s32 %s33, 1
    %s35 = scalar_select %p32, %s33, %s34
    %p38 = pneg %p32
    %p39 = scmp.eq.s32.totalorder %s9, 1
    %p40 = por %p38, %p39
    %p41 = scmp.ne.s32.totalorder %s33, %s36
    %p42 = scmp.eq.s32.totalorder %s9, 0
    %p43 = por %p41, %p42
    %p44 = scmp.ne.s32.totalorder %s33, %s36
    %p45 = scmp.eq.s32.totalorder %s14, 1
    %p46 = por %p44, %p45
    %p47 = scmp.ne.s32.totalorder %s36, %s37
    %p48 = scmp.eq.s32.totalorder %s14, 0
    %p49 = por %p47, %p48
    %p50 = scmp.ne.s32.totalorder %s36, %s37
    %p51 = scmp.eq.s32.totalorder %s15, 1
    %p52 = por %p50, %p51
    %p54 = scmp.ne.s32.totalorder %s37, %s53
    %p55 = scmp.eq.s32.totalorder %s15, 0
    %p56 = por %p54, %p55
    %s57 = ssub.s32 %s17, %s24
    %p58 = scmp.eq.s32.totalorder %s57, 0
    %s60 = sadd.s32 %s59, 1
    %s61 = scalar_select %p58, %s59, %s60
    %p64 = pneg %p58
    %p65 = scmp.eq.s32.totalorder %s9, 1
    %p66 = por %p64, %p65
    %p67 = scmp.ne.s32.totalorder %s59, %s62
    %p68 = scmp.eq.s32.totalorder %s9, 0
    %p69 = por %p67, %p68
    %p70 = scmp.ne.s32.totalorder %s59, %s62
    %p71 = scmp.eq.s32.totalorder %s14, 1
    %p72 = por %p70, %p71
    %p73 = scmp.ne.s32.totalorder %s62, %s63
    %p74 = scmp.eq.s32.totalorder %s14, 0
    %p75 = por %p73, %p74
    %p76 = scmp.ne.s32.totalorder %s62, %s63
    %p77 = scmp.eq.s32.totalorder %s15, 1
    %p78 = por %p76, %p77
    %p80 = scmp.ne.s32.totalorder %s63, %s79
    %p81 = scmp.eq.s32.totalorder %s15, 0
    %p82 = por %p80, %p81
    %s83 = ssub.s32 %s17, %s24
    %p84 = scmp.eq.s32.totalorder %s83, 0
    %s86 = sadd.s32 %s85, 1
    %s87 = scalar_select %p84, %s85, %s86
    %p90 = pneg %p84
    %p91 = scmp.eq.s32.totalorder %s9, 1
    %p92 = por %p90, %p91
    %p93 = scmp.ne.s32.totalorder %s85, %s88
    %p94 = scmp.eq.s32.totalorder %s9, 0
    %p95 = por %p93, %p94
    %p96 = scmp.ne.s32.totalorder %s85, %s88
    %p97 = scmp.eq.s32.totalorder %s14, 1
    %p98 = por %p96, %p97
    %p99 = scmp.ne.s32.totalorder %s88, %s89
    %p100 = scmp.eq.s32.totalorder %s14, 0
    %p101 = por %p99, %p100
    %p102 = scmp.ne.s32.totalorder %s88, %s89
    %p103 = scmp.eq.s32.totalorder %s15, 1
    %p104 = por %p102, %p103
    %p106 = scmp.ne.s32.totalorder %s89, %s105
    %p107 = scmp.eq.s32.totalorder %s15, 0
    %p108 = por %p106, %p107
    %s109 = ssub.s32 %s16, %s28
    %s110 = ssub.s32 %s17, %s24
    %s111 = sor.u32 %s109, %s110
    %p112 = scmp.eq.s32.totalorder %s111, 0
    %s114 = sadd.s32 %s113, 1
    %s115 = scalar_select %p112, %s113, %s114
    %p118 = pneg %p112
    %p119 = scmp.eq.s32.totalorder %s9, 1
    %p120 = por %p118, %p119
    %p121 = scmp.ne.s32.totalorder %s113, %s116
    %p122 = scmp.eq.s32.totalorder %s9, 0
    %p123 = por %p121, %p122
    %p124 = scmp.ne.s32.totalorder %s113, %s116
    %p125 = scmp.eq.s32.totalorder %s14, 1
    %p126 = por %p124, %p125
    %p127 = scmp.ne.s32.totalorder %s116, %s117
    %p128 = scmp.eq.s32.totalorder %s14, 0
    %p129 = por %p127, %p128
    %p130 = scmp.ne.s32.totalorder %s116, %s117
    %p131 = scmp.eq.s32.totalorder %s15, 1
    %p132 = por %p130, %p131
    %p134 = scmp.ne.s32.totalorder %s117, %s133
    %p135 = scmp.eq.s32.totalorder %s15, 0
    %p136 = por %p134, %p135
    %p137 = scmp.le.s32.totalorder 1, %s9
    %p138 = scmp.lt.s32.totalorder %s9, 3
    %p139 = pnand %p137, %p138
    %p140 = pneg %p139
    // Predicated region
    $region9: #{residual_block_forward.11} parent=5 // pred_check
      _
    $region10: #{residual_block_forward.11} parent=5 // pred_check_branch
      %142 = sbr.rel (%p139) target = $region12
    $region11: #{residual_block_forward.11} parent=5 // pred_region
      %s143 = ssub.s32 %s9, 1
      // Predicated region
      $region13: #{residual_block_forward.11} parent=11 // pred_check
        %p144 = pneg %p75
      $region14: #{residual_block_forward.11} parent=11 // pred_check_branch
        %146 = sbr.rel (%p144) target = $region16
      $region15: #{residual_block_forward.11} parent=11 // pred_region
        %p147 = scmp.lt.s32.totalorder %s19, 0
        %s148 = scalar_select %p147, %s19, 0
        %s149 = smul.addr %s148, 8
        %s150 = scalar_lea.vmem %s1, %s149
      $region16: #{residual_block_forward.11} parent=11 // pred_fallthru
        _
      // Predicated region
      $region17: #{residual_block_forward.11} parent=11 // pred_check
        %p151 = pneg %p101
      $region18: #{residual_block_forward.11} parent=11 // pred_check_branch
        %153 = sbr.rel (%p151) target = $region20
      $region19: #{residual_block_forward.11} parent=11 // pred_region
        %p154 = scmp.lt.s32.totalorder %s19, 0
        %s155 = scalar_select %p154, %s19, 0
        %s156 = scalar_lea.vmem %s2, %s155
      $region20: #{residual_block_forward.11} parent=11 // pred_fallthru
        _
    $region12: #{residual_block_forward.11} parent=5 // pred_fallthru
      _
    %p157 = scmp.lt.s32.totalorder %s9, 2
    // Predicated region
    $region21: #{residual_block_forward.11} parent=5 // pred_check
      %p158 = pneg %p157
    $region22: #{residual_block_forward.11} parent=5 // pred_check_branch
      %160 = sbr.rel (%p158) target = $region24
    $region23: #{residual_block_forward.11} parent=5 // pred_region
      // Predicated region
      $region25: #{residual_block_forward.11} parent=23 // pred_check
        %p161 = pneg %p43
      $region26: #{residual_block_forward.11} parent=23 // pred_check_branch
        %163 = sbr.rel (%p161) target = $region28
      $region27: #{residual_block_forward.11} parent=23 // pred_region
        %p164 = scmp.lt.s32.totalorder %s16, 1
        %s165 = scalar_select %p164, %s16, 1
        %p166 = scmp.lt.s32.totalorder %s17, 0
        %s167 = scalar_select %p166, %s17, 0
        %s168 = smul.addr %s165, 20
        %s169 = sadd.s32 %s167, %s168
        %s170 = smul.addr %s169, 8
        %s171 = scalar_lea.vmem %s0, %s170
      $region28: #{residual_block_forward.11} parent=23 // pred_fallthru
        _
    $region24: #{residual_block_forward.11} parent=5 // pred_fallthru
      _
    %p172 = scmp.le.s32.totalorder 1, %s9
    %p173 = scmp.lt.s32.totalorder %s9, 3
    %p174 = pnand %p172, %p173
    %p175 = pneg %p174
    // Predicated region
    $region29: #{residual_block_forward.11} parent=5 // pred_check
      _
    $region30: #{residual_block_forward.11} parent=5 // pred_check_branch
      %177 = sbr.rel (%p174) target = $region32
    $region31: #{residual_block_forward.11} parent=5 // pred_region
      %s178 = ssub.s32 %s9, 1
      %p179 = scmp.lt.s32.totalorder %s18, 1
      %s180 = scalar_select %p179, %s18, 1
      %p181 = scmp.lt.s32.totalorder %s19, 0
      %s182 = scalar_select %p181, %s19, 0
      %s183 = smul.addr %s180, 20
      %s184 = sadd.s32 %s182, %s183
      %s185 = smul.addr %s184, 8
      %s186 = scalar_lea.vmem %s0, %s185
      %p187 = pneg %p49
      %p188 = pneg %p46
      %p189 = scmp.lt.s32.totalorder %s19, 0
      %s190 = scalar_select %p189, %s19, 0
      %s191 = smul.addr %s190, 8
      %s192 = scalar_lea.vmem %s1, %s191
      %p193 = pneg %p75
      %p194 = pneg %p72
      %p195 = scmp.lt.s32.totalorder %s19, 0
      %s196 = scalar_select %p195, %s19, 0
      %s197 = scalar_lea.vmem %s2, %s196
      %p198 = pneg %p101
      %p199 = pneg %p98
      %p200 = pneg %p129
      %p201 = pneg %p126
      %p202 = scmp.lt.s32.totalorder %s18, 1
      %s203 = scalar_select %p202, %s18, 1
      %p204 = scmp.lt.s32.totalorder %s19, 0
      %s205 = scalar_select %p204, %s19, 0
      %s206 = smul.addr %s203, 8
      %s207 = sadd.s32 %s205, %s206
      %s208 = smul.addr %s207, 8
      %s209 = scalar_lea.vmem %s3, %s208
      %p210 = scmp.lt.s32.totalorder %s18, 1
      %s211 = scalar_select %p210, %s18, 1
      %p212 = scmp.lt.s32.totalorder %s19, 0
      %s213 = scalar_select %p212, %s19, 0
      %s214 = smul.addr %s211, 20
      %s215 = sadd.s32 %s213, %s214
      %s216 = smul.addr %s215, 8
      %s217 = scalar_lea.vmem %s0, %s216
      %p218 = scmp.lt.s32.totalorder %s19, 0
      %s219 = scalar_select %p218, %s19, 0
      %s220 = smul.addr %s219, 8
      %s221 = scalar_lea.vmem %s1, %s220
      %p222 = scmp.lt.s32.totalorder %s19, 0
      %s223 = scalar_select %p222, %s19, 0
      %s224 = scalar_lea.vmem %s2, %s223
      %p225 = scmp.lt.s32.totalorder %s18, 1
      %s226 = scalar_select %p225, %s18, 1
      %p227 = scmp.lt.s32.totalorder %s19, 0
      %s228 = scalar_select %p227, %s19, 0
      %s229 = smul.addr %s226, 8
      %s230 = sadd.s32 %s228, %s229
      %s231 = smul.addr %s230, 8
      %s232 = scalar_lea.vmem %s3, %s231
      %v233 = vld [vmem:[%s217] sm:$0xff]
      %v234 = vld [vmem:[%s217 + $0x8] sm:$0x3]
      %v235 = vld [vmem:[%s217 + $0x10] sm:$0xff]
      %v236 = vld [vmem:[%s217 + $0x18] sm:$0x3]
      %v237 = vld [vmem:[%s217 + $0x20] sm:$0xff]
      %v238 = vld [vmem:[%s217 + $0x28] sm:$0x3]
      %v239 = vld [vmem:[%s217 + $0x30] sm:$0xff]
      %v240 = vld [vmem:[%s217 + $0x38] sm:$0x3]
      %v241 = vld [vmem:[%s217 + $0x40] sm:$0xff]
      %v242 = vld [vmem:[%s217 + $0x48] sm:$0x3]
      %v243 = vld [vmem:[%s217 + $0x50] sm:$0xff]
      %v244 = vld [vmem:[%s217 + $0x58] sm:$0x3]
      %v245 = vld [vmem:[%s217 + $0x60] sm:$0xff]
      %v246 = vld [vmem:[%s217 + $0x68] sm:$0x3]
      %v247 = vld [vmem:[%s217 + $0x70] sm:$0xff]
      %v248 = vld [vmem:[%s217 + $0x78] sm:$0x3]
      %v249 = vld [vmem:[%s217 + $0x80] sm:$0xff]
      %v250 = vld [vmem:[%s217 + $0x88] sm:$0x3]
      %v251 = vld [vmem:[%s217 + $0x90] sm:$0xff]
      %v252 = vld [vmem:[%s217 + $0x98] sm:$0x3]
      %v253 = vld [vmem:[%s221] sm:$0xff]
      %v254 = vld [vmem:[%s221 + $0x8] sm:$0x1]
      %v255 = vperm.slane %v253, 0
      %v256 = vmul.f32 %v233, %v255
      %v257 = vmul.f32 %v235, %v255
      %v258 = vmul.f32 %v237, %v255
      %v259 = vmul.f32 %v239, %v255
      %v260 = vmul.f32 %v241, %v255
      %v261 = vmul.f32 %v243, %v255
      %v262 = vmul.f32 %v245, %v255
      %v263 = vmul.f32 %v247, %v255
      %v264 = vadd.f32 %v256, 0.0
      %v265 = vadd.f32 %v257, 0.0
      %v266 = vadd.f32 %v258, 0.0
      %v267 = vadd.f32 %v259, 0.0
      %v268 = vadd.f32 %v260, 0.0
      %v269 = vadd.f32 %v261, 0.0
      %v270 = vadd.f32 %v262, 0.0
      %v271 = vadd.f32 %v263, 0.0
      %v272 = vperm.slane %v253, 1
      %v273 = vmul.f32 %v233, %v272
      %v274 = vmul.f32 %v234, %v272
      %v275 = vmul.f32 %v235, %v272
      %v276 = vmul.f32 %v236, %v272
      %v277 = vmul.f32 %v237, %v272
      %v278 = vmul.f32 %v238, %v272
      %v279 = vmul.f32 %v239, %v272
      %v280 = vmul.f32 %v240, %v272
      %v281 = vmul.f32 %v241, %v272
      %v282 = vmul.f32 %v242, %v272
      %v283 = vmul.f32 %v243, %v272
      %v284 = vmul.f32 %v244, %v272
      %v285 = vmul.f32 %v245, %v272
      %v286 = vmul.f32 %v246, %v272
      %v287 = vmul.f32 %v247, %v272
      %v288 = vmul.f32 %v248, %v272
      %vm305 = vcmask 1046528
      %v306 = vrot.slane %v273, 1
      %v307 = vrot.slane %v274, 1
      %v308 = vsel %vm305, %v306, %v307
      %v309 = vrot.slane %v275, 1
      %v310 = vrot.slane %v276, 1
      %v311 = vsel %vm305, %v309, %v310
      %v312 = vrot.slane %v277, 1
      %v313 = vrot.slane %v278, 1
      %v314 = vsel %vm305, %v312, %v313
      %v315 = vrot.slane %v279, 1
      %v316 = vrot.slane %v280, 1
      %v317 = vsel %vm305, %v315, %v316
      %v318 = vrot.slane %v281, 1
      %v319 = vrot.slane %v282, 1
      %v320 = vsel %vm305, %v318, %v319
      %v321 = vrot.slane %v283, 1
      %v322 = vrot.slane %v284, 1
      %v323 = vsel %vm305, %v321, %v322
      %v324 = vrot.slane %v285, 1
      %v325 = vrot.slane %v286, 1
      %v326 = vsel %vm305, %v324, %v325
      %v327 = vrot.slane %v287, 1
      %v328 = vrot.slane %v288, 1
      %v329 = vsel %vm305, %v327, %v328
      %v338 = vadd.f32 %v264, %v308
      %v339 = vadd.f32 %v265, %v311
      %v340 = vadd.f32 %v266, %v314
      %v341 = vadd.f32 %v267, %v317
      %v342 = vadd.f32 %v268, %v320
      %v343 = vadd.f32 %v269, %v323
      %v344 = vadd.f32 %v270, %v326
      %v345 = vadd.f32 %v271, %v329
      %v346 = vperm.slane %v253, 2
      %v347 = vmul.f32 %v233, %v346
      %v348 = vmul.f32 %v234, %v346
      %v349 = vmul.f32 %v235, %v346
      %v350 = vmul.f32 %v236, %v346
      %v351 = vmul.f32 %v237, %v346
      %v352 = vmul.f32 %v238, %v346
      %v353 = vmul.f32 %v239, %v346
      %v354 = vmul.f32 %v240, %v346
      %v355 = vmul.f32 %v241, %v346
      %v356 = vmul.f32 %v242, %v346
      %v357 = vmul.f32 %v243, %v346
      %v358 = vmul.f32 %v244, %v346
      %v359 = vmul.f32 %v245, %v346
      %v360 = vmul.f32 %v246, %v346
      %v361 = vmul.f32 %v247, %v346
      %v362 = vmul.f32 %v248, %v346
      %vm379 = vcmask 1045504
      %v380 = vrot.slane %v347, 2
      %v381 = vrot.slane %v348, 2
      %v382 = vsel %vm379, %v380, %v381
      %v383 = vrot.slane %v349, 2
      %v384 = vrot.slane %v350, 2
      %v385 = vsel %vm379, %v383, %v384
      %v386 = vrot.slane %v351, 2
      %v387 = vrot.slane %v352, 2
      %v388 = vsel %vm379, %v386, %v387
      %v389 = vrot.slane %v353, 2
      %v390 = vrot.slane %v354, 2
      %v391 = vsel %vm379, %v389, %v390
      %v392 = vrot.slane %v355, 2
      %v393 = vrot.slane %v356, 2
      %v394 = vsel %vm379, %v392, %v393
      %v395 = vrot.slane %v357, 2
      %v396 = vrot.slane %v358, 2
      %v397 = vsel %vm379, %v395, %v396
      %v398 = vrot.slane %v359, 2
      %v399 = vrot.slane %v360, 2
      %v400 = vsel %vm379, %v398, %v399
      %v401 = vrot.slane %v361, 2
      %v402 = vrot.slane %v362, 2
      %v403 = vsel %vm379, %v401, %v402
      %v412 = vadd.f32 %v338, %v382
      %v413 = vadd.f32 %v339, %v385
      %v414 = vadd.f32 %v340, %v388
      %v415 = vadd.f32 %v341, %v391
      %v416 = vadd.f32 %v342, %v394
      %v417 = vadd.f32 %v343, %v397
      %v418 = vadd.f32 %v344, %v400
      %v419 = vadd.f32 %v345, %v403
      %v420 = vperm.slane %v253, 3
      %v421 = vmul.f32 %v235, %v420
      %v422 = vmul.f32 %v237, %v420
      %v423 = vmul.f32 %v239, %v420
      %v424 = vmul.f32 %v241, %v420
      %v425 = vmul.f32 %v243, %v420
      %v426 = vmul.f32 %v245, %v420
      %v427 = vmul.f32 %v247, %v420
      %v428 = vmul.f32 %v249, %v420
      %v429 = vadd.f32 %v412, %v421
      %v430 = vadd.f32 %v413, %v422
      %v431 = vadd.f32 %v414, %v423
      %v432 = vadd.f32 %v415, %v424
      %v433 = vadd.f32 %v416, %v425
      %v434 = vadd.f32 %v417, %v426
      %v435 = vadd.f32 %v418, %v427
      %v436 = vadd.f32 %v419, %v428
      %v437 = vperm.slane %v253, 4
      %v438 = vmul.f32 %v235, %v437
      %v439 = vmul.f32 %v236, %v437
      %v440 = vmul.f32 %v237, %v437
      %v441 = vmul.f32 %v238, %v437
      %v442 = vmul.f32 %v239, %v437
      %v443 = vmul.f32 %v240, %v437
      %v444 = vmul.f32 %v241, %v437
      %v445 = vmul.f32 %v242, %v437
      %v446 = vmul.f32 %v243, %v437
      %v447 = vmul.f32 %v244, %v437
      %v448 = vmul.f32 %v245, %v437
      %v449 = vmul.f32 %v246, %v437
      %v450 = vmul.f32 %v247, %v437
      %v451 = vmul.f32 %v248, %v437
      %v452 = vmul.f32 %v249, %v437
      %v453 = vmul.f32 %v250, %v437
      %v470 = vrot.slane %v438, 1
      %v471 = vrot.slane %v439, 1
      %v472 = vsel %vm305, %v470, %v471
      %v473 = vrot.slane %v440, 1
      %v474 = vrot.slane %v441, 1
      %v475 = vsel %vm305, %v473, %v474
      %v476 = vrot.slane %v442, 1
      %v477 = vrot.slane %v443, 1
      %v478 = vsel %vm305, %v476, %v477
      %v479 = vrot.slane %v444, 1
      %v480 = vrot.slane %v445, 1
      %v481 = vsel %vm305, %v479, %v480
      %v482 = vrot.slane %v446, 1
      %v483 = vrot.slane %v447, 1
      %v484 = vsel %vm305, %v482, %v483
      %v485 = vrot.slane %v448, 1
      %v486 = vrot.slane %v449, 1
      %v487 = vsel %vm305, %v485, %v486
      %v488 = vrot.slane %v450, 1
      %v489 = vrot.slane %v451, 1
      %v490 = vsel %vm305, %v488, %v489
      %v491 = vrot.slane %v452, 1
      %v492 = vrot.slane %v453, 1
      %v493 = vsel %vm305, %v491, %v492
      %v502 = vadd.f32 %v429, %v472
      %v503 = vadd.f32 %v430, %v475
      %v504 = vadd.f32 %v431, %v478
      %v505 = vadd.f32 %v432, %v481
      %v506 = vadd.f32 %v433, %v484
      %v507 = vadd.f32 %v434, %v487
      %v508 = vadd.f32 %v435, %v490
      %v509 = vadd.f32 %v436, %v493
      %v510 = vperm.slane %v253, 5
      %v511 = vmul.f32 %v235, %v510
      %v512 = vmul.f32 %v236, %v510
      %v513 = vmul.f32 %v237, %v510
      %v514 = vmul.f32 %v238, %v510
      %v515 = vmul.f32 %v239, %v510
      %v516 = vmul.f32 %v240, %v510
      %v517 = vmul.f32 %v241, %v510
      %v518 = vmul.f32 %v242, %v510
      %v519 = vmul.f32 %v243, %v510
      %v520 = vmul.f32 %v244, %v510
      %v521 = vmul.f32 %v245, %v510
      %v522 = vmul.f32 %v246, %v510
      %v523 = vmul.f32 %v247, %v510
      %v524 = vmul.f32 %v248, %v510
      %v525 = vmul.f32 %v249, %v510
      %v526 = vmul.f32 %v250, %v510
      %v543 = vrot.slane %v511, 2
      %v544 = vrot.slane %v512, 2
      %v545 = vsel %vm379, %v543, %v544
      %v546 = vrot.slane %v513, 2
      %v547 = vrot.slane %v514, 2
      %v548 = vsel %vm379, %v546, %v547
      %v549 = vrot.slane %v515, 2
      %v550 = vrot.slane %v516, 2
      %v551 = vsel %vm379, %v549, %v550
      %v552 = vrot.slane %v517, 2
      %v553 = vrot.slane %v518, 2
      %v554 = vsel %vm379, %v552, %v553
      %v555 = vrot.slane %v519, 2
      %v556 = vrot.slane %v520, 2
      %v557 = vsel %vm379, %v555, %v556
      %v558 = vrot.slane %v521, 2
      %v559 = vrot.slane %v522, 2
      %v560 = vsel %vm379, %v558, %v559
      %v561 = vrot.slane %v523, 2
      %v562 = vrot.slane %v524, 2
      %v563 = vsel %vm379, %v561, %v562
      %v564 = vrot.slane %v525, 2
      %v565 = vrot.slane %v526, 2
      %v566 = vsel %vm379, %v564, %v565
      %v575 = vadd.f32 %v502, %v545
      %v576 = vadd.f32 %v503, %v548
      %v577 = vadd.f32 %v504, %v551
      %v578 = vadd.f32 %v505, %v554
      %v579 = vadd.f32 %v506, %v557
      %v580 = vadd.f32 %v507, %v560
      %v581 = vadd.f32 %v508, %v563
      %v582 = vadd.f32 %v509, %v566
      %v583 = vperm.slane %v253, 6
      %v584 = vmul.f32 %v237, %v583
      %v585 = vmul.f32 %v239, %v583
      %v586 = vmul.f32 %v241, %v583
      %v587 = vmul.f32 %v243, %v583
      %v588 = vmul.f32 %v245, %v583
      %v589 = vmul.f32 %v247, %v583
      %v590 = vmul.f32 %v249, %v583
      %v591 = vmul.f32 %v251, %v583
      %v592 = vadd.f32 %v575, %v584
      %v593 = vadd.f32 %v576, %v585
      %v594 = vadd.f32 %v577, %v586
      %v595 = vadd.f32 %v578, %v587
      %v596 = vadd.f32 %v579, %v588
      %v597 = vadd.f32 %v580, %v589
      %v598 = vadd.f32 %v581, %v590
      %v599 = vadd.f32 %v582, %v591
      %v600 = vperm.slane %v253, 7
      %v601 = vmul.f32 %v237, %v600
      %v602 = vmul.f32 %v238, %v600
      %v603 = vmul.f32 %v239, %v600
      %v604 = vmul.f32 %v240, %v600
      %v605 = vmul.f32 %v241, %v600
      %v606 = vmul.f32 %v242, %v600
      %v607 = vmul.f32 %v243, %v600
      %v608 = vmul.f32 %v244, %v600
      %v609 = vmul.f32 %v245, %v600
      %v610 = vmul.f32 %v246, %v600
      %v611 = vmul.f32 %v247, %v600
      %v612 = vmul.f32 %v248, %v600
      %v613 = vmul.f32 %v249, %v600
      %v614 = vmul.f32 %v250, %v600
      %v615 = vmul.f32 %v251, %v600
      %v616 = vmul.f32 %v252, %v600
      %v633 = vrot.slane %v601, 1
      %v634 = vrot.slane %v602, 1
      %v635 = vsel %vm305, %v633, %v634
      %v636 = vrot.slane %v603, 1
      %v637 = vrot.slane %v604, 1
      %v638 = vsel %vm305, %v636, %v637
      %v639 = vrot.slane %v605, 1
      %v640 = vrot.slane %v606, 1
      %v641 = vsel %vm305, %v639, %v640
      %v642 = vrot.slane %v607, 1
      %v643 = vrot.slane %v608, 1
      %v644 = vsel %vm305, %v642, %v643
      %v645 = vrot.slane %v609, 1
      %v646 = vrot.slane %v610, 1
      %v647 = vsel %vm305, %v645, %v646
      %v648 = vrot.slane %v611, 1
      %v649 = vrot.slane %v612, 1
      %v650 = vsel %vm305, %v648, %v649
      %v651 = vrot.slane %v613, 1
      %v652 = vrot.slane %v614, 1
      %v653 = vsel %vm305, %v651, %v652
      %v654 = vrot.slane %v615, 1
      %v655 = vrot.slane %v616, 1
      %v656 = vsel %vm305, %v654, %v655
      %v665 = vadd.f32 %v592, %v635
      %v666 = vadd.f32 %v593, %v638
      %v667 = vadd.f32 %v594, %v641
      %v668 = vadd.f32 %v595, %v644
      %v669 = vadd.f32 %v596, %v647
      %v670 = vadd.f32 %v597, %v650
      %v671 = vadd.f32 %v598, %v653
      %v672 = vadd.f32 %v599, %v656
      %v673 = vperm.slane %v254, 0
      %v674 = vmul.f32 %v237, %v673
      %v675 = vmul.f32 %v238, %v673
      %v676 = vmul.f32 %v239, %v673
      %v677 = vmul.f32 %v240, %v673
      %v678 = vmul.f32 %v241, %v673
      %v679 = vmul.f32 %v242, %v673
      %v680 = vmul.f32 %v243, %v673
      %v681 = vmul.f32 %v244, %v673
      %v682 = vmul.f32 %v245, %v673
      %v683 = vmul.f32 %v246, %v673
      %v684 = vmul.f32 %v247, %v673
      %v685 = vmul.f32 %v248, %v673
      %v686 = vmul.f32 %v249, %v673
      %v687 = vmul.f32 %v250, %v673
      %v688 = vmul.f32 %v251, %v673
      %v689 = vmul.f32 %v252, %v673
      %v706 = vrot.slane %v674, 2
      %v707 = vrot.slane %v675, 2
      %v708 = vsel %vm379, %v706, %v707
      %v709 = vrot.slane %v676, 2
      %v710 = vrot.slane %v677, 2
      %v711 = vsel %vm379, %v709, %v710
      %v712 = vrot.slane %v678, 2
      %v713 = vrot.slane %v679, 2
      %v714 = vsel %vm379, %v712, %v713
      %v715 = vrot.slane %v680, 2
      %v716 = vrot.slane %v681, 2
      %v717 = vsel %vm379, %v715, %v716
      %v718 = vrot.slane %v682, 2
      %v719 = vrot.slane %v683, 2
      %v720 = vsel %vm379, %v718, %v719
      %v721 = vrot.slane %v684, 2
      %v722 = vrot.slane %v685, 2
      %v723 = vsel %vm379, %v721, %v722
      %v724 = vrot.slane %v686, 2
      %v725 = vrot.slane %v687, 2
      %v726 = vsel %vm379, %v724, %v725
      %v727 = vrot.slane %v688, 2
      %v728 = vrot.slane %v689, 2
      %v729 = vsel %vm379, %v727, %v728
      %v738 = vadd.f32 %v665, %v708
      %v739 = vadd.f32 %v666, %v711
      %v740 = vadd.f32 %v667, %v714
      %v741 = vadd.f32 %v668, %v717
      %v742 = vadd.f32 %v669, %v720
      %v743 = vadd.f32 %v670, %v723
      %v744 = vadd.f32 %v671, %v726
      %v745 = vadd.f32 %v672, %v729
      %v746 = vld [vmem:[%s224] sm:$0x1]
      %v748 = vperm.slane %v746, 0
      %v750 = vadd.f32 %v738, %v748
      %v751 = vadd.f32 %v739, %v748
      %v752 = vadd.f32 %v740, %v748
      %v753 = vadd.f32 %v741, %v748
      %v754 = vadd.f32 %v742, %v748
      %v755 = vadd.f32 %v743, %v748
      %v756 = vadd.f32 %v744, %v748
      %v757 = vadd.f32 %v745, %v748
      %vm758 = vcmask 130048
      %759 = vst.msk [vmem:[%s232] sm:$0xff] %vm758, %v750
      %760 = vst.msk [vmem:[%s232 + $0x8] sm:$0xff] %vm758, %v751
      %761 = vst.msk [vmem:[%s232 + $0x10] sm:$0xff] %vm758, %v752
      %762 = vst.msk [vmem:[%s232 + $0x18] sm:$0xff] %vm758, %v753
      %763 = vst.msk [vmem:[%s232 + $0x20] sm:$0xff] %vm758, %v754
      %764 = vst.msk [vmem:[%s232 + $0x28] sm:$0xff] %vm758, %v755
      %765 = vst.msk [vmem:[%s232 + $0x30] sm:$0xff] %vm758, %v756
      %766 = vst.msk [vmem:[%s232 + $0x38] sm:$0xff] %vm758, %v757
      %p767 = scmp.lt.s32.totalorder %s18, 1
      %s768 = scalar_select %p767, %s18, 1
      %p769 = scmp.lt.s32.totalorder %s19, 0
      %s770 = scalar_select %p769, %s19, 0
      %s771 = smul.addr %s768, 8
      %s772 = sadd.s32 %s770, %s771
      %s773 = smul.addr %s772, 8
      %s774 = scalar_lea.vmem %s3, %s773
      // Predicated region
      $region33: #{residual_block_forward.11} parent=31 // pred_check
        %p775 = pneg %p126
      $region34: #{residual_block_forward.11} parent=31 // pred_check_branch
        %777 = sbr.rel (%p775) target = $region36
      $region35: #{residual_block_forward.11} parent=31 // pred_region
        _
      $region36: #{residual_block_forward.11} parent=31 // pred_fallthru
        _
    $region32: #{residual_block_forward.11} parent=5 // pred_fallthru
      _
    %p778 = scmp.le.s32.totalorder 2, %s9
    // Predicated region
    $region37: #{residual_block_forward.11} parent=5 // pred_check
      %p779 = pneg %p778
    $region38: #{residual_block_forward.11} parent=5 // pred_check_branch
      %781 = sbr.rel (%p779) target = $region40
    $region39: #{residual_block_forward.11} parent=5 // pred_region
      %s782 = ssub.s32 %s9, 2
      // Predicated region
      $region41: #{residual_block_forward.11} parent=39 // pred_check
        %p783 = pneg %p132
      $region42: #{residual_block_forward.11} parent=39 // pred_check_branch
        %785 = sbr.rel (%p783) target = $region44
      $region43: #{residual_block_forward.11} parent=39 // pred_region
        %p786 = scmp.lt.s32.totalorder %s20, 1
        %s787 = scalar_select %p786, %s20, 1
        %p788 = scmp.lt.s32.totalorder %s21, 0
        %s789 = scalar_select %p788, %s21, 0
        %s790 = smul.addr %s787, 8
        %s791 = sadd.s32 %s789, %s790
        %s792 = smul.addr %s791, 8
        %s793 = scalar_lea.vmem %s3, %s792
      $region44: #{residual_block_forward.11} parent=39 // pred_fallthru
        _
    $region40: #{residual_block_forward.11} parent=5 // pred_fallthru
      _
  $region6: #{residual_block_forward.11} parent=0 // loop_footer
    %s13 = sadd.s32 1, %s9
  $region7: #{residual_block_forward.11} parent=0 // loop_footer_branch
    %8 = sbr.rel target = $region3
  $region8: #{residual_block_forward.11} parent=0 // loop_exit
    _

// kernel: residual_block_forward.13
$region0: #{residual_block_forward.13}
  #allocation0 [shape = 'u32[]', space=smem, size = 0x4, offset = 0x4, fixed_abs, tag = 'smem constant byte address 0x4 - core index']
  #allocation1 [shape = 'u32[72,128]{1,0:T(1,128)}', space=vmem, size = 0x9000, scoped, tag = 'internal scratch']
  %s0 = inlined_call_operand.vmem [shape: f32[16,128], index: 0, kind: input, shape index: {}]
  %s1 = inlined_call_operand.vmem [shape: f32[16,128], index: 1, kind: input, shape index: {}]
  %s2 = inlined_call_operand.vmem [shape: f32[16,128], index: 2, kind: input, shape index: {}]
  %s3 = inlined_call_operand.vmem [shape: f32[1,128], index: 3, kind: input, shape index: {}]
  %s4 = inlined_call_operand.vmem [shape: f32[1,128], index: 4, kind: input, shape index: {}]
  %s5 = inlined_call_operand.vmem [shape: f32[16,128], index: 5, kind: output, shape index: {}]
  %s6 = sld [smem:[#allocation0]]
  $region30: #{residual_block_forward.13} parent=0
    _
  %s8 = ssub.s32 1, %s6
  %s9 = scalar_select 0, %s8, %s6
  // Predicated region
  $region2: #{residual_block_forward.13} parent=0 // pred_check
    _
  $region3: #{residual_block_forward.13} parent=0 // pred_check_branch
    %11 = sbr.rel (0) target = $region5
  $region4: #{residual_block_forward.13} parent=0 // pred_region
    _
  $region5: #{residual_block_forward.13} parent=0 // pred_fallthru
    _
  // Predicated region
  $region6: #{residual_block_forward.13} parent=0 // pred_check
    _
  $region7: #{residual_block_forward.13} parent=0 // pred_check_branch
    %13 = sbr.rel (0) target = $region9
  $region8: #{residual_block_forward.13} parent=0 // pred_region
    _
  $region9: #{residual_block_forward.13} parent=0 // pred_fallthru
    _
  // Predicated region
  $region10: #{residual_block_forward.13} parent=0 // pred_check
    _
  $region11: #{residual_block_forward.13} parent=0 // pred_check_branch
    %15 = sbr.rel (0) target = $region13
  $region12: #{residual_block_forward.13} parent=0 // pred_region
    _
  $region13: #{residual_block_forward.13} parent=0 // pred_fallthru
    _
  // Predicated region
  $region14: #{residual_block_forward.13} parent=0 // pred_check
    _
  $region15: #{residual_block_forward.13} parent=0 // pred_check_branch
    %17 = sbr.rel (0) target = $region17
  $region16: #{residual_block_forward.13} parent=0 // pred_region
    _
  $region17: #{residual_block_forward.13} parent=0 // pred_fallthru
    _
  // Predicated region
  $region18: #{residual_block_forward.13} parent=0 // pred_check
    _
  $region19: #{residual_block_forward.13} parent=0 // pred_check_branch
    %19 = sbr.rel (0) target = $region21
  $region20: #{residual_block_forward.13} parent=0 // pred_region
    _
  $region21: #{residual_block_forward.13} parent=0 // pred_fallthru
    _
  %v20 = vld [vmem:[%s0] sm:$0xff]
  %v21 = vld [vmem:[%s0 + $0x8] sm:$0xff]
  %v22 = vld [vmem:[%s1] sm:$0xff]
  %v23 = vld [vmem:[%s1 + $0x8] sm:$0xff]
  %v24 = vadd.f32 %v20, %v22
  %v25 = vadd.f32 %v21, %v23
  %v26 = vld [vmem:[%s2] sm:$0xff]
  %v27 = vld [vmem:[%s2 + $0x8] sm:$0xff]
  %v28 = vld [vmem:[%s3] sm:$0x1]
  %v30 = vperm.slane %v28, 0
  %v32 = vmul.f32 %v24, %v30
  %v33 = vmul.f32 %v25, %v30
  %v34 = vld [vmem:[%s4] sm:$0x1]
  %v36 = vperm.slane %v34, 0
  %v38 = vadd.f32 %v32, %v36
  %v39 = vadd.f32 %v33, %v36
  %v40 = vadd.f32 %v38, %v26
  %v41 = vadd.f32 %v39, %v27
  %v42 = vmax.f32 %v40, 0.0
  %v43 = vmax.f32 %v41, 0.0
  %44 = vst [vmem:[%s5] sm:$0xff] %v42
  %45 = vst [vmem:[%s5 + $0x8] sm:$0xff] %v43
  // Predicated region
  $region22: #{residual_block_forward.13} parent=0 // pred_check
    _
  $region23: #{residual_block_forward.13} parent=0 // pred_check_branch
    %47 = sbr.rel (0) target = $region25
  $region24: #{residual_block_forward.13} parent=0 // pred_region
    _
  $region25: #{residual_block_forward.13} parent=0 // pred_fallthru
    _
  // Predicated region
  $region26: #{residual_block_forward.13} parent=0 // pred_check
    _
  $region27: #{residual_block_forward.13} parent=0 // pred_check_branch
    %49 = sbr.rel (0) target = $region29
  $region28: #{residual_block_forward.13} parent=0 // pred_region
    _
  $region29: #{residual_block_forward.13} parent=0 // pred_fallthru
    _

// kernel: residual_block_forward.12
$region0: #{residual_block_forward.12}
  #allocation0 [shape = 'u32[]', space=smem, size = 0x4, offset = 0x4, fixed_abs, tag = 'smem constant byte address 0x4 - core index']
  #allocation1 [shape = 'u32[72,128]{1,0:T(1,128)}', space=vmem, size = 0x9000, scoped, tag = 'internal scratch']
  %s0 = inlined_call_operand.vmem [shape: f32[16,128], index: 0, kind: input, shape index: {}]
  %s1 = inlined_call_operand.vmem [shape: f32[16,128], index: 1, kind: input, shape index: {}]
  %s2 = inlined_call_operand.vmem [shape: f32[2,128], index: 2, kind: output, shape index: {}]
  %s3 = sld [smem:[#allocation0]]
  $region22: #{residual_block_forward.12} parent=0
    _
  %s5 = ssub.s32 1, %s3
  %s6 = scalar_select 0, %s5, %s3
  // Predicated region
  $region2: #{residual_block_forward.12} parent=0 // pred_check
    _
  $region3: #{residual_block_forward.12} parent=0 // pred_check_branch
    %8 = sbr.rel (0) target = $region5
  $region4: #{residual_block_forward.12} parent=0 // pred_region
    _
  $region5: #{residual_block_forward.12} parent=0 // pred_fallthru
    _
  // Predicated region
  $region6: #{residual_block_forward.12} parent=0 // pred_check
    _
  $region7: #{residual_block_forward.12} parent=0 // pred_check_branch
    %10 = sbr.rel (0) target = $region9
  $region8: #{residual_block_forward.12} parent=0 // pred_region
    _
  $region9: #{residual_block_forward.12} parent=0 // pred_fallthru
    _
  %p11 = scmp.eq.s32.totalorder 0, 0
  // Predicated region
  $region10: #{residual_block_forward.12} parent=0 // pred_check
    %p12 = pneg %p11
  $region11: #{residual_block_forward.12} parent=0 // pred_check_branch
    %14 = sbr.rel (%p12) target = $region13
  $region12: #{residual_block_forward.12} parent=0 // pred_region
    %15 = vst [vmem:[%s2] sm:$0x3] 0.0
  $region13: #{residual_block_forward.12} parent=0 // pred_fallthru
    _
  %v16 = vld [vmem:[%s0] sm:$0xff]
  %v17 = vld [vmem:[%s0 + $0x8] sm:$0xff]
  %v18 = vld [vmem:[%s1] sm:$0xff]
  %v19 = vld [vmem:[%s1 + $0x8] sm:$0xff]
  %v20 = vadd.f32 %v16, %v18
  %v21 = vadd.f32 %v17, %v19
  %v22 = vadd.f32 %v20, %v21
  %v23 = vrot.slane %v22, 4
  %v24 = vadd.f32 %v22, %v23
  %v25 = vrot.slane %v24, 2
  %v26 = vadd.f32 %v24, %v25
  %v27 = vrot.slane %v26, 1
  %v28 = vadd.f32 %v26, %v27
  %v29 = vmul.f32 %v20, %v20
  %v30 = vmul.f32 %v21, %v21
  %v31 = vadd.f32 %v29, %v30
  %v32 = vrot.slane %v31, 4
  %v33 = vadd.f32 %v31, %v32
  %v34 = vrot.slane %v33, 2
  %v35 = vadd.f32 %v33, %v34
  %v36 = vrot.slane %v35, 1
  %v37 = vadd.f32 %v35, %v36
  %vm38 = vcmask 1040384
  %v39 = vsel %vm38, %v28, %v37
  %v40 = vld [vmem:[%s2] sm:$0x3]
  %v41 = vadd.f32 %v40, %v39
  %42 = vst [vmem:[%s2] sm:$0x3] %v41
  // Predicated region
  $region14: #{residual_block_forward.12} parent=0 // pred_check
    _
  $region15: #{residual_block_forward.12} parent=0 // pred_check_branch
    %44 = sbr.rel (0) target = $region17
  $region16: #{residual_block_forward.12} parent=0 // pred_region
    _
  $region17: #{residual_block_forward.12} parent=0 // pred_fallthru
    _
  // Predicated region
  $region18: #{residual_block_forward.12} parent=0 // pred_check
    _
  $region19: #{residual_block_forward.12} parent=0 // pred_check_branch
    %46 = sbr.rel (0) target = $region21
  $region20: #{residual_block_forward.12} parent=0 // pred_region
    _
  $region21: #{residual_block_forward.12} parent=0 // pred_fallthru
    _

// kernel: residual_block_forward.10
$region0: #{residual_block_forward.10}
  #allocation0 [shape = 'u32[]', space=smem, size = 0x4, offset = 0x4, fixed_abs, tag = 'smem constant byte address 0x4 - core index']
  #allocation1 [shape = 'u32[72,128]{1,0:T(1,128)}', space=vmem, size = 0x9000, scoped, tag = 'internal scratch']
  %s0 = inlined_call_operand.vmem [shape: f32[2,18,18,4], index: 0, kind: input, shape index: {}]
  %s1 = inlined_call_operand.vmem [shape: f32[9,4], index: 1, kind: input, shape index: {}]
  %s2 = inlined_call_operand.vmem [shape: f32[1,4], index: 2, kind: input, shape index: {}]
  %s3 = inlined_call_operand.vmem [shape: f32[2,16,16,4], index: 3, kind: output, shape index: {}]
  %s4 = sld [smem:[#allocation0]]
  $region45: #{residual_block_forward.10} parent=0
    _
  %s6 = ssub.s32 1, %s4
  %s7 = scalar_select 0, %s6, %s4
  loop: start=0, step=1, limit=4
  $region2: #{residual_block_forward.10} parent=0 // loop_pre_header
    _
  $region3: #{residual_block_forward.10} parent=0 // loop_header
    %s9 = sphi 0, %s13
    %p10 = scmp.ge.s32.totalorder %s9, 4
    %s16 = sphi 0, %s28
    %s17 = sphi 0, %s24
    %s18 = sphi 0, %s16
    %s19 = sphi 0, %s17
    %s20 = sphi 0, %s18
    %s21 = sphi 0, %s19
    %s33 = sphi 0, %s35
    %s36 = sphi 0, %s33
    %s37 = sphi 0, %s36
    %s53 = sphi 0, %s37
    %s59 = sphi 0, %s61
    %s62 = sphi 0, %s59
    %s63 = sphi 0, %s62
    %s79 = sphi 0, %s63
    %s85 = sphi 0, %s87
    %s88 = sphi 0, %s85
    %s89 = sphi 0, %s88
    %s105 = sphi 0, %s89
    %s113 = sphi 0, %s115
    %s116 = sphi 0, %s113
    %s117 = sphi 0, %s116
    %s133 = sphi 0, %s117
  $region4: #{residual_block_forward.10} parent=0 // loop_header_branch
    %12 = sbr.rel (%p10) target = $region8
  $region5: #{residual_block_forward.10} parent=0 // loop_body
    %s14 = ssub.s32 %s9, 1
    %s15 = ssub.s32 %s9, 2
    %s22 = sadd.s32 1, %s17
    %p23 = scmp.ge.s32.totalorder %s22, 1
    %s24 = scalar_select %p23, 0, %s22
    %s25 = sadd.s32 1, %s16
    %s26 = scalar_select %p23, %s25, %s16
    %p27 = scmp.ge.s32.totalorder %s26, 2
    %s28 = scalar_select %p27, 0, %s26
    %s29 = ssub.s32 %s16, %s28
    %s30 = ssub.s32 %s17, %s24
    %s31 = sor.u32 %s29, %s30
    %p32 = scmp.eq.s32.totalorder %s31, 0
    %s34 = sadd.s32 %s33, 1
    %s35 = scalar_select %p32, %s33, %s34
    %p38 = pneg %p32
    %p39 = scmp.eq.s32.totalorder %s9, 1
    %p40 = por %p38, %p39
    %p41 = scmp.ne.s32.totalorder %s33, %s36
    %p42 = scmp.eq.s32.totalorder %s9, 0
    %p43 = por %p41, %p42
    %p44 = scmp.ne.s32.totalorder %s33, %s36
    %p45 = scmp.eq.s32.totalorder %s14, 1
    %p46 = por %p44, %p45
    %p47 = scmp.ne.s32.totalorder %s36, %s37
    %p48 = scmp.eq.s32.totalorder %s14, 0
    %p49 = por %p47, %p48
    %p50 = scmp.ne.s32.totalorder %s36, %s37
    %p51 = scmp.eq.s32.totalorder %s15, 1
    %p52 = por %p50, %p51
    %p54 = scmp.ne.s32.totalorder %s37, %s53
    %p55 = scmp.eq.s32.totalorder %s15, 0
    %p56 = por %p54, %p55
    %s57 = ssub.s32 %s17, %s24
    %p58 = scmp.eq.s32.totalorder %s57, 0
    %s60 = sadd.s32 %s59, 1
    %s61 = scalar_select %p58, %s59, %s60
    %p64 = pneg %p58
    %p65 = scmp.eq.s32.totalorder %s9, 1
    %p66 = por %p64, %p65
    %p67 = scmp.ne.s32.totalorder %s59, %s62
    %p68 = scmp.eq.s32.totalorder %s9, 0
    %p69 = por %p67, %p68
    %p70 = scmp.ne.s32.totalorder %s59, %s62
    %p71 = scmp.eq.s32.totalorder %s14, 1
    %p72 = por %p70, %p71
    %p73 = scmp.ne.s32.totalorder %s62, %s63
    %p74 = scmp.eq.s32.totalorder %s14, 0
    %p75 = por %p73, %p74
    %p76 = scmp.ne.s32.totalorder %s62, %s63
    %p77 = scmp.eq.s32.totalorder %s15, 1
    %p78 = por %p76, %p77
    %p80 = scmp.ne.s32.totalorder %s63, %s79
    %p81 = scmp.eq.s32.totalorder %s15, 0
    %p82 = por %p80, %p81
    %s83 = ssub.s32 %s17, %s24
    %p84 = scmp.eq.s32.totalorder %s83, 0
    %s86 = sadd.s32 %s85, 1
    %s87 = scalar_select %p84, %s85, %s86
    %p90 = pneg %p84
    %p91 = scmp.eq.s32.totalorder %s9, 1
    %p92 = por %p90, %p91
    %p93 = scmp.ne.s32.totalorder %s85, %s88
    %p94 = scmp.eq.s32.totalorder %s9, 0
    %p95 = por %p93, %p94
    %p96 = scmp.ne.s32.totalorder %s85, %s88
    %p97 = scmp.eq.s32.totalorder %s14, 1
    %p98 = por %p96, %p97
    %p99 = scmp.ne.s32.totalorder %s88, %s89
    %p100 = scmp.eq.s32.totalorder %s14, 0
    %p101 = por %p99, %p100
    %p102 = scmp.ne.s32.totalorder %s88, %s89
    %p103 = scmp.eq.s32.totalorder %s15, 1
    %p104 = por %p102, %p103
    %p106 = scmp.ne.s32.totalorder %s89, %s105
    %p107 = scmp.eq.s32.totalorder %s15, 0
    %p108 = por %p106, %p107
    %s109 = ssub.s32 %s16, %s28
    %s110 = ssub.s32 %s17, %s24
    %s111 = sor.u32 %s109, %s110
    %p112 = scmp.eq.s32.totalorder %s111, 0
    %s114 = sadd.s32 %s113, 1
    %s115 = scalar_select %p112, %s113, %s114
    %p118 = pneg %p112
    %p119 = scmp.eq.s32.totalorder %s9, 1
    %p120 = por %p118, %p119
    %p121 = scmp.ne.s32.totalorder %s113, %s116
    %p122 = scmp.eq.s32.totalorder %s9, 0
    %p123 = por %p121, %p122
    %p124 = scmp.ne.s32.totalorder %s113, %s116
    %p125 = scmp.eq.s32.totalorder %s14, 1
    %p126 = por %p124, %p125
    %p127 = scmp.ne.s32.totalorder %s116, %s117
    %p128 = scmp.eq.s32.totalorder %s14, 0
    %p129 = por %p127, %p128
    %p130 = scmp.ne.s32.totalorder %s116, %s117
    %p131 = scmp.eq.s32.totalorder %s15, 1
    %p132 = por %p130, %p131
    %p134 = scmp.ne.s32.totalorder %s117, %s133
    %p135 = scmp.eq.s32.totalorder %s15, 0
    %p136 = por %p134, %p135
    %p137 = scmp.le.s32.totalorder 1, %s9
    %p138 = scmp.lt.s32.totalorder %s9, 3
    %p139 = pnand %p137, %p138
    %p140 = pneg %p139
    // Predicated region
    $region9: #{residual_block_forward.10} parent=5 // pred_check
      _
    $region10: #{residual_block_forward.10} parent=5 // pred_check_branch
      %142 = sbr.rel (%p139) target = $region12
    $region11: #{residual_block_forward.10} parent=5 // pred_region
      %s143 = ssub.s32 %s9, 1
      // Predicated region
      $region13: #{residual_block_forward.10} parent=11 // pred_check
        %p144 = pneg %p75
      $region14: #{residual_block_forward.10} parent=11 // pred_check_branch
        %146 = sbr.rel (%p144) target = $region16
      $region15: #{residual_block_forward.10} parent=11 // pred_region
        %p147 = scmp.lt.s32.totalorder %s19, 0
        %s148 = scalar_select %p147, %s19, 0
        %s149 = smul.addr %s148, 8
        %s150 = scalar_lea.vmem %s1, %s149
      $region16: #{residual_block_forward.10} parent=11 // pred_fallthru
        _
      // Predicated region
      $region17: #{residual_block_forward.10} parent=11 // pred_check
        %p151 = pneg %p101
      $region18: #{residual_block_forward.10} parent=11 // pred_check_branch
        %153 = sbr.rel (%p151) target = $region20
      $region19: #{residual_block_forward.10} parent=11 // pred_region
        %p154 = scmp.lt.s32.totalorder %s19, 0
        %s155 = scalar_select %p154, %s19, 0
        %s156 = scalar_lea.vmem %s2, %s155
      $region20: #{residual_block_forward.10} parent=11 // pred_fallthru
        _
    $region12: #{residual_block_forward.10} parent=5 // pred_fallthru
      _
    %p157 = scmp.lt.s32.totalorder %s9, 2
    // Predicated region
    $region21: #{residual_block_forward.10} parent=5 // pred_check
      %p158 = pneg %p157
    $region22: #{residual_block_forward.10} parent=5 // pred_check_branch
      %160 = sbr.rel (%p158) target = $region24
    $region23: #{residual_block_forward.10} parent=5 // pred_region
      // Predicated region
      $region25: #{residual_block_forward.10} parent=23 // pred_check
        %p161 = pneg %p43
      $region26: #{residual_block_forward.10} parent=23 // pred_check_branch
        %163 = sbr.rel (%p161) target = $region28
      $region27: #{residual_block_forward.10} parent=23 // pred_region
        %p164 = scmp.lt.s32.totalorder %s16, 1
        %s165 = scalar_select %p164, %s16, 1
        %p166 = scmp.lt.s32.totalorder %s17, 0
        %s167 = scalar_select %p166, %s17, 0
        %s168 = smul.addr %s165, 54
        %s169 = sadd.s32 %s167, %s168
        %s170 = smul.addr %s169, 8
        %s171 = scalar_lea.vmem %s0, %s170
      $region28: #{residual_block_forward.10} parent=23 // pred_fallthru
        _
    $region24: #{residual_block_forward.10} parent=5 // pred_fallthru
      _
    %p172 = scmp.le.s32.totalorder 1, %s9
    %p173 = scmp.lt.s32.totalorder %s9, 3
    %p174 = pnand %p172, %p173
    %p175 = pneg %p174
    // Predicated region
    $region29: #{residual_block_forward.10} parent=5 // pred_check
      _
    $region30: #{residual_block_forward.10} parent=5 // pred_check_branch
      %177 = sbr.rel (%p174) target = $region32
    $region31: #{residual_block_forward.10} parent=5 // pred_region
      %s178 = ssub.s32 %s9, 1
      %p179 = scmp.lt.s32.totalorder %s18, 1
      %s180 = scalar_select %p179, %s18, 1
      %p181 = scmp.lt.s32.totalorder %s19, 0
      %s182 = scalar_select %p181, %s19, 0
      %s183 = smul.addr %s180, 54
      %s184 = sadd.s32 %s182, %s183
      %s185 = smul.addr %s184, 8
      %s186 = scalar_lea.vmem %s0, %s185
      %p187 = pneg %p49
      %p188 = pneg %p46
      %p189 = scmp.lt.s32.totalorder %s19, 0
      %s190 = scalar_select %p189, %s19, 0
      %s191 = smul.addr %s190, 8
      %s192 = scalar_lea.vmem %s1, %s191
      %p193 = pneg %p75
      %p194 = pneg %p72
      %p195 = scmp.lt.s32.totalorder %s19, 0
      %s196 = scalar_select %p195, %s19, 0
      %s197 = scalar_lea.vmem %s2, %s196
      %p198 = pneg %p101
      %p199 = pneg %p98
      %p200 = pneg %p129
      %p201 = pneg %p126
      %p202 = scmp.lt.s32.totalorder %s18, 1
      %s203 = scalar_select %p202, %s18, 1
      %p204 = scmp.lt.s32.totalorder %s19, 0
      %s205 = scalar_select %p204, %s19, 0
      %s206 = smul.addr %s203, 32
      %s207 = sadd.s32 %s205, %s206
      %s208 = smul.addr %s207, 8
      %s209 = scalar_lea.vmem %s3, %s208
      %p210 = scmp.lt.s32.totalorder %s18, 1
      %s211 = scalar_select %p210, %s18, 1
      %p212 = scmp.lt.s32.totalorder %s19, 0
      %s213 = scalar_select %p212, %s19, 0
      %s214 = smul.addr %s211, 54
      %s215 = sadd.s32 %s213, %s214
      %s216 = smul.addr %s215, 8
      %s217 = scalar_lea.vmem %s0, %s216
      %p218 = scmp.lt.s32.totalorder %s19, 0
      %s219 = scalar_select %p218, %s19, 0
      %s220 = smul.addr %s219, 8
      %s221 = scalar_lea.vmem %s1, %s220
      %p222 = scmp.lt.s32.totalorder %s19, 0
      %s223 = scalar_select %p222, %s19, 0
      %s224 = scalar_lea.vmem %s2, %s223
      %p225 = scmp.lt.s32.totalorder %s18, 1
      %s226 = scalar_select %p225, %s18, 1
      %p227 = scmp.lt.s32.totalorder %s19, 0
      %s228 = scalar_select %p227, %s19, 0
      %s229 = smul.addr %s226, 32
      %s230 = sadd.s32 %s228, %s229
      %s231 = smul.addr %s230, 8
      %s232 = scalar_lea.vmem %s3, %s231
      %v233 = vld [vmem:[%s217] sm:$0xff]
      %v234 = vld [vmem:[%s217 + $0x8] sm:$0xff]
      %v235 = vld [vmem:[%s217 + $0x10] sm:$0x3]
      %v236 = vld [vmem:[%s217 + $0x18] sm:$0xff]
      %v237 = vld [vmem:[%s217 + $0x20] sm:$0xff]
      %v238 = vld [vmem:[%s217 + $0x28] sm:$0x3]
      %v239 = vld [vmem:[%s217 + $0x30] sm:$0xff]
      %v240 = vld [vmem:[%s217 + $0x38] sm:$0xff]
      %v241 = vld [vmem:[%s217 + $0x40] sm:$0x3]
      %v242 = vld [vmem:[%s217 + $0x48] sm:$0xff]
      %v243 = vld [vmem:[%s217 + $0x50] sm:$0xff]
      %v244 = vld [vmem:[%s217 + $0x58] sm:$0x3]
      %v245 = vld [vmem:[%s217 + $0x60] sm:$0xff]
      %v246 = vld [vmem:[%s217 + $0x68] sm:$0xff]
      %v247 = vld [vmem:[%s217 + $0x70] sm:$0x3]
      %v248 = vld [vmem:[%s217 + $0x78] sm:$0xff]
      %v249 = vld [vmem:[%s217 + $0x80] sm:$0xff]
      %v250 = vld [vmem:[%s217 + $0x88] sm:$0x3]
      %v251 = vld [vmem:[%s217 + $0x90] sm:$0xff]
      %v252 = vld [vmem:[%s217 + $0x98] sm:$0xff]
      %v253 = vld [vmem:[%s217 + $0xa0] sm:$0x3]
      %v254 = vld [vmem:[%s217 + $0xa8] sm:$0xff]
      %v255 = vld [vmem:[%s217 + $0xb0] sm:$0xff]
      %v256 = vld [vmem:[%s217 + $0xb8] sm:$0x3]
      %v257 = vld [vmem:[%s217 + $0xc0] sm:$0xff]
      %v258 = vld [vmem:[%s217 + $0xc8] sm:$0xff]
      %v259 = vld [vmem:[%s217 + $0xd0] sm:$0x3]
      %v260 = vld [vmem:[%s217 + $0xd8] sm:$0xff]
      %v261 = vld [vmem:[%s217 + $0xe0] sm:$0xff]
      %v262 = vld [vmem:[%s217 + $0xe8] sm:$0x3]
      %v263 = vld [vmem:[%s217 + $0xf0] sm:$0xff]
      %v264 = vld [vmem:[%s217 + $0xf8] sm:$0xff]
      %v265 = vld [vmem:[%s217 + $0x100] sm:$0x3]
      %v266 = vld [vmem:[%s217 + $0x108] sm:$0xff]
      %v267 = vld [vmem:[%s217 + $0x110] sm:$0xff]
      %v268 = vld [vmem:[%s217 + $0x118] sm:$0x3]
      %v269 = vld [vmem:[%s217 + $0x120] sm:$0xff]
      %v270 = vld [vmem:[%s217 + $0x128] sm:$0xff]
      %v271 = vld [vmem:[%s217 + $0x130] sm:$0x3]
      %v272 = vld [vmem:[%s217 + $0x138] sm:$0xff]
      %v273 = vld [vmem:[%s217 + $0x140] sm:$0xff]
      %v274 = vld [vmem:[%s217 + $0x148] sm:$0x3]
      %v275 = vld [vmem:[%s217 + $0x150] sm:$0xff]
      %v276 = vld [vmem:[%s217 + $0x158] sm:$0xff]
      %v277 = vld [vmem:[%s217 + $0x160] sm:$0x3]
      %v278 = vld [vmem:[%s217 + $0x168] sm:$0xff]
      %v279 = vld [vmem:[%s217 + $0x170] sm:$0xff]
      %v280 = vld [vmem:[%s217 + $0x178] sm:$0x3]
      %v281 = vld [vmem:[%s217 + $0x180] sm:$0xff]
      %v282 = vld [vmem:[%s217 + $0x188] sm:$0xff]
      %v283 = vld [vmem:[%s217 + $0x190] sm:$0x3]
      %v284 = vld [vmem:[%s217 + $0x198] sm:$0xff]
      %v285 = vld [vmem:[%s217 + $0x1a0] sm:$0xff]
      %v286 = vld [vmem:[%s217 + $0x1a8] sm:$0x3]
      %v287 = vld [vmem:[%s221] sm:$0xff]
      %v288 = vld [vmem:[%s221 + $0x8] sm:$0x1]
      %v289 = vperm.slane %v287, 0
      %v290 = vmul.f32 %v233, %v289
      %v291 = vmul.f32 %v234, %v289
      %v292 = vmul.f32 %v236, %v289
      %v293 = vmul.f32 %v237, %v289
      %v294 = vmul.f32 %v239, %v289
      %v295 = vmul.f32 %v240, %v289
      %v296 = vmul.f32 %v242, %v289
      %v297 = vmul.f32 %v243, %v289
      %v298 = vmul.f32 %v245, %v289
      %v299 = vmul.f32 %v246, %v289
      %v300 = vmul.f32 %v248, %v289
      %v301 = vmul.f32 %v249, %v289
      %v302 = vmul.f32 %v251, %v289
      %v303 = vmul.f32 %v252, %v289
      %v304 = vmul.f32 %v254, %v289
      %v305 = vmul.f32 %v255, %v289
      %v306 = vmul.f32 %v257, %v289
      %v307 = vmul.f32 %v258, %v289
      %v308 = vmul.f32 %v260, %v289
      %v309 = vmul.f32 %v261, %v289
      %v310 = vmul.f32 %v263, %v289
      %v311 = vmul.f32 %v264, %v289
      %v312 = vmul.f32 %v266, %v289
      %v313 = vmul.f32 %v267, %v289
      %v314 = vmul.f32 %v269, %v289
      %v315 = vmul.f32 %v270, %v289
      %v316 = vmul.f32 %v272, %v289
      %v317 = vmul.f32 %v273, %v289
      %v318 = vmul.f32 %v275, %v289
      %v319 = vmul.f32 %v276, %v289
      %v320 = vmul.f32 %v278, %v289
      %v321 = vmul.f32 %v279, %v289
      %v322 = vadd.f32 %v290, 0.0
      %v323 = vadd.f32 %v291, 0.0
      %v324 = vadd.f32 %v292, 0.0
      %v325 = vadd.f32 %v293, 0.0
      %v326 = vadd.f32 %v294, 0.0
      %v327 = vadd.f32 %v295, 0.0
      %v328 = vadd.f32 %v296, 0.0
      %v329 = vadd.f32 %v297, 0.0
      %v330 = vadd.f32 %v298, 0.0
      %v331 = vadd.f32 %v299, 0.0
      %v332 = vadd.f32 %v300, 0.0
      %v333 = vadd.f32 %v301, 0.0
      %v334 = vadd.f32 %v302, 0.0
      %v335 = vadd.f32 %v303, 0.0
      %v336 = vadd.f32 %v304, 0.0
      %v337 = vadd.f32 %v305, 0.0
      %v338 = vadd.f32 %v306, 0.0
      %v339 = vadd.f32 %v307, 0.0
      %v340 = vadd.f32 %v308, 0.0
      %v341 = vadd.f32 %v309, 0.0
      %v342 = vadd.f32 %v310, 0.0
      %v343 = vadd.f32 %v311, 0.0
      %v344 = vadd.f32 %v312, 0.0
      %v345 = vadd.f32 %v313, 0.0
      %v346 = vadd.f32 %v314, 0.0
      %v347 = vadd.f32 %v315, 0.0
      %v348 = vadd.f32 %v316, 0.0
      %v349 = vadd.f32 %v317, 0.0
      %v350 = vadd.f32 %v318, 0.0
      %v351 = vadd.f32 %v319, 0.0
      %v352 = vadd.f32 %v320, 0.0
      %v353 = vadd.f32 %v321, 0.0
      %v354 = vperm.slane %v287, 1
      %v355 = vmul.f32 %v233, %v354
      %v356 = vmul.f32 %v234, %v354
      %v357 = vmul.f32 %v235, %v354
      %v358 = vmul.f32 %v236, %v354
      %v359 = vmul.f32 %v237, %v354
      %v360 = vmul.f32 %v238, %v354
      %v361 = vmul.f32 %v239, %v354
      %v362 = vmul.f32 %v240, %v354
      %v363 = vmul.f32 %v241, %v354
      %v364 = vmul.f32 %v242, %v354
      %v365 = vmul.f32 %v243, %v354
      %v366 = vmul.f32 %v244, %v354
      %v367 = vmul.f32 %v245, %v354
      %v368 = vmul.f32 %v246, %v354
      %v369 = vmul.f32 %v247, %v354
      %v370 = vmul.f32 %v248, %v354
      %v371 = vmul.f32 %v249, %v354
      %v372 = vmul.f32 %v250, %v354
      %v373 = vmul.f32 %v251, %v354
      %v374 = vmul.f32 %v252, %v354
      %v375 = vmul.f32 %v253, %v354
      %v376 = vmul.f32 %v254, %v354
      %v377 = vmul.f32 %v255, %v354
      %v378 = vmul.f32 %v256, %v354
      %v379 = vmul.f32 %v257, %v354
      %v380 = vmul.f32 %v258, %v354
      %v381 = vmul.f32 %v259, %v354
      %v382 = vmul.f32 %v260, %v354
      %v383 = vmul.f32 %v261, %v354
      %v384 = vmul.f32 %v262, %v354
      %v385 = vmul.f32 %v263, %v354
      %v386 = vmul.f32 %v264, %v354
      %v387 = vmul.f32 %v265, %v354
      %v388 = vmul.f32 %v266, %v354
      %v389 = vmul.f32 %v267, %v354
      %v390 = vmul.f32 %v268, %v354
      %v391 = vmul.f32 %v269, %v354
      %v392 = vmul.f32 %v270, %v354
      %v393 = vmul.f32 %v271, %v354
      %v394 = vmul.f32 %v272, %v354
      %v395 = vmul.f32 %v273, %v354
      %v396 = vmul.f32 %v274, %v354
      %v397 = vmul.f32 %v275, %v354
      %v398 = vmul.f32 %v276, %v354
      %v399 = vmul.f32 %v277, %v354
      %v400 = vmul.f32 %v278, %v354
      %v401 = vmul.f32 %v279, %v354
      %v402 = vmul.f32 %v280, %v354
      %vm451 = vcmask 1046528
      %v452 = vrot.slane %v355, 1
      %v453 = vrot.slane %v356, 1
      %v454 = vsel %vm451, %v452, %v453
      %v455 = vrot.slane %v357, 1
      %v456 = vsel %vm451, %v453, %v455
      %v457 = vrot.slane %v358, 1
      %v458 = vrot.slane %v359, 1
      %v459 = vsel %vm451, %v457, %v458
      %v460 = vrot.slane %v360, 1
      %v461 = vsel %vm451, %v458, %v460
      %v462 = vrot.slane %v361, 1
      %v463 = vrot.slane %v362, 1
      %v464 = vsel %vm451, %v462, %v463
      %v465 = vrot.slane %v363, 1
      %v466 = vsel %vm451, %v463, %v465
      %v467 = vrot.slane %v364, 1
      %v468 = vrot.slane %v365, 1
      %v469 = vsel %vm451, %v467, %v468
      %v470 = vrot.slane %v366, 1
      %v471 = vsel %vm451, %v468, %v470
      %v472 = vrot.slane %v367, 1
      %v473 = vrot.slane %v368, 1
      %v474 = vsel %vm451, %v472, %v473
      %v475 = vrot.slane %v369, 1
      %v476 = vsel %vm451, %v473, %v475
      %v477 = vrot.slane %v370, 1
      %v478 = vrot.slane %v371, 1
      %v479 = vsel %vm451, %v477, %v478
      %v480 = vrot.slane %v372, 1
      %v481 = vsel %vm451, %v478, %v480
      %v482 = vrot.slane %v373, 1
      %v483 = vrot.slane %v374, 1
      %v484 = vsel %vm451, %v482, %v483
      %v485 = vrot.slane %v375, 1
      %v486 = vsel %vm451, %v483, %v485
      %v487 = vrot.slane %v376, 1
      %v488 = vrot.slane %v377, 1
      %v489 = vsel %vm451, %v487, %v488
      %v490 = vrot.slane %v378, 1
      %v491 = vsel %vm451, %v488, %v490
      %v492 = vrot.slane %v379, 1
      %v493 = vrot.slane %v380, 1
      %v494 = vsel %vm451, %v492, %v493
      %v495 = vrot.slane %v381, 1
      %v496 = vsel %vm451, %v493, %v495
      %v497 = vrot.slane %v382, 1
      %v498 = vrot.slane %v383, 1
      %v499 = vsel %vm451, %v497, %v498
      %v500 = vrot.slane %v384, 1
      %v501 = vsel %vm451, %v498, %v500
      %v502 = vrot.slane %v385, 1
      %v503 = vrot.slane %v386, 1
      %v504 = vsel %vm451, %v502, %v503
      %v505 = vrot.slane %v387, 1
      %v506 = vsel %vm451, %v503, %v505
      %v507 = vrot.slane %v388, 1
      %v508 = vrot.slane %v389, 1
      %v509 = vsel %vm451, %v507, %v508
      %v510 = vrot.slane %v390, 1
      %v511 = vsel %vm451, %v508, %v510
      %v512 = vrot.slane %v391, 1
      %v513 = vrot.slane %v392, 1
      %v514 = vsel %vm451, %v512, %v513
      %v515 = vrot.slane %v393, 1
      %v516 = vsel %vm451, %v513, %v515
      %v517 = vrot.slane %v394, 1
      %v518 = vrot.slane %v395, 1
      %v519 = vsel %vm451, %v517, %v518
      %v520 = vrot.slane %v396, 1
      %v521 = vsel %vm451, %v518, %v520
      %v522 = vrot.slane %v397, 1
      %v523 = vrot.slane %v398, 1
      %v524 = vsel %vm451, %v522, %v523
      %v525 = vrot.slane %v399, 1
      %v526 = vsel %vm451, %v523, %v525
      %v527 = vrot.slane %v400, 1
      %v528 = vrot.slane %v401, 1
      %v529 = vsel %vm451, %v527, %v528
      %v530 = vrot.slane %v402, 1
      %v531 = vsel %vm451, %v528, %v530
      %v564 = vadd.f32 %v322, %v454
      %v565 = vadd.f32 %v323, %v456
      %v566 = vadd.f32 %v324, %v459
      %v567 = vadd.f32 %v325, %v461
      %v568 = vadd.f32 %v326, %v464
      %v569 = vadd.f32 %v327, %v466
      %v570 = vadd.f32 %v328, %v469
      %v571 = vadd.f32 %v329, %v471
      %v572 = vadd.f32 %v330, %v474
      %v573 = vadd.f32 %v331, %v476
      %v574 = vadd.f32 %v332, %v479
      %v575 = vadd.f32 %v333, %v481
      %v576 = vadd.f32 %v334, %v484
      %v577 = vadd.f32 %v335, %v486
      %v578 = vadd.f32 %v336, %v489
      %v579 = vadd.f32 %v337, %v491
      %v580 = vadd.f32 %v338, %v494
      %v581 = vadd.f32 %v339, %v496
      %v582 = vadd.f32 %v340, %v499
      %v583 = vadd.f32 %v341, %v501
      %v584 = vadd.f32 %v342, %v504
      %v585 = vadd.f32 %v343, %v506
      %v586 = vadd.f32 %v344, %v509
      %v587 = vadd.f32 %v345, %v511
      %v588 = vadd.f32 %v346, %v514
      %v589 = vadd.f32 %v347, %v516
      %v590 = vadd.f32 %v348, %v519
      %v591 = vadd.f32 %v349, %v521
      %v592 = vadd.f32 %v350, %v524
      %v593 = vadd.f32 %v351, %v526
      %v594 = vadd.f32 %v352, %v529
      %v595 = vadd.f32 %v353, %v531
      %v596 = vperm.slane %v287, 2
      %v597 = vmul.f32 %v233, %v596
      %v598 = vmul.f32 %v234, %v596
      %v599 = vmul.f32 %v235, %v596
      %v600 = vmul.f32 %v236, %v596
      %v601 = vmul.f32 %v237, %v596
      %v602 = vmul.f32 %v238, %v596
      %v603 = vmul.f32 %v239, %v596
      %v604 = vmul.f32 %v240, %v596
      %v605 = vmul.f32 %v241, %v596
      %v606 = vmul.f32 %v242, %v596
      %v607 = vmul.f32 %v243, %v596
      %v608 = vmul.f32 %v244, %v596
      %v609 = vmul.f32 %v245, %v596
      %v610 = vmul.f32 %v246, %v596
      %v611 = vmul.f32 %v247, %v596
      %v612 = vmul.f32 %v248, %v596
      %v613 = vmul.f32 %v249, %v596
      %v614 = vmul.f32 %v250, %v596
      %v615 = vmul.f32 %v251, %v596
      %v616 = vmul.f32 %v252, %v596
      %v617 = vmul.f32 %v253, %v596
      %v618 = vmul.f32 %v254, %v596
      %v619 = vmul.f32 %v255, %v596
      %v620 = vmul.f32 %v256, %v596
      %v621 = vmul.f32 %v257, %v596
      %v622 = vmul.f32 %v258, %v596
      %v623 = vmul.f32 %v259, %v596
      %v624 = vmul.f32 %v260, %v596
      %v625 = vmul.f32 %v261, %v596
      %v626 = vmul.f32 %v262, %v596
      %v627 = vmul.f32 %v263, %v596
      %v628 = vmul.f32 %v264, %v596
      %v629 = vmul.f32 %v265, %v596
      %v630 = vmul.f32 %v266, %v596
      %v631 = vmul.f32 %v267, %v596
      %v632 = vmul.f32 %v268, %v596
      %v633 = vmul.f32 %v269, %v596
      %v634 = vmul.f32 %v270, %v596
      %v635 = vmul.f32 %v271, %v596
      %v636 = vmul.f32 %v272, %v596
      %v637 = vmul.f32 %v273, %v596
      %v638 = vmul.f32 %v274, %v596
      %v639 = vmul.f32 %v275, %v596
      %v640 = vmul.f32 %v276, %v596
      %v641 = vmul.f32 %v277, %v596
      %v642 = vmul.f32 %v278, %v596
      %v643 = vmul.f32 %v279, %v596
      %v644 = vmul.f32 %v280, %v596
      %vm693 = vcmask 1045504
      %v694 = vrot.slane %v597, 2
      %v695 = vrot.slane %v598, 2
      %v696 = vsel %vm693, %v694, %v695
      %v697 = vrot.slane %v599, 2
      %v698 = vsel %vm693, %v695, %v697
      %v699 = vrot.slane %v600, 2
      %v700 = vrot.slane %v601, 2
      %v701 = vsel %vm693, %v699, %v700
      %v702 = vrot.slane %v602, 2
      %v703 = vsel %vm693, %v700, %v702
      %v704 = vrot.slane %v603, 2
      %v705 = vrot.slane %v604, 2
      %v706 = vsel %vm693, %v704, %v705
      %v707 = vrot.slane %v605, 2
      %v708 = vsel %vm693, %v705, %v707
      %v709 = vrot.slane %v606, 2
      %v710 = vrot.slane %v607, 2
      %v711 = vsel %vm693, %v709, %v710
      %v712 = vrot.slane %v608, 2
      %v713 = vsel %vm693, %v710, %v712
      %v714 = vrot.slane %v609, 2
      %v715 = vrot.slane %v610, 2
      %v716 = vsel %vm693, %v714, %v715
      %v717 = vrot.slane %v611, 2
      %v718 = vsel %vm693, %v715, %v717
      %v719 = vrot.slane %v612, 2
      %v720 = vrot.slane %v613, 2
      %v721 = vsel %vm693, %v719, %v720
      %v722 = vrot.slane %v614, 2
      %v723 = vsel %vm693, %v720, %v722
      %v724 = vrot.slane %v615, 2
      %v725 = vrot.slane %v616, 2
      %v726 = vsel %vm693, %v724, %v725
      %v727 = vrot.slane %v617, 2
      %v728 = vsel %vm693, %v725, %v727
      %v729 = vrot.slane %v618, 2
      %v730 = vrot.slane %v619, 2
      %v731 = vsel %vm693, %v729, %v730
      %v732 = vrot.slane %v620, 2
      %v733 = vsel %vm693, %v730, %v732
      %v734 = vrot.slane %v621, 2
      %v735 = vrot.slane %v622, 2
      %v736 = vsel %vm693, %v734, %v735
      %v737 = vrot.slane %v623, 2
      %v738 = vsel %vm693, %v735, %v737
      %v739 = vrot.slane %v624, 2
      %v740 = vrot.slane %v625, 2
      %v741 = vsel %vm693, %v739, %v740
      %v742 = vrot.slane %v626, 2
      %v743 = vsel %vm693, %v740, %v742
      %v744 = vrot.slane %v627, 2
      %v745 = vrot.slane %v628, 2
      %v746 = vsel %vm693, %v744, %v745
      %v747 = vrot.slane %v629, 2
      %v748 = vsel %vm693, %v745, %v747
      %v749 = vrot.slane %v630, 2
      %v750 = vrot.slane %v631, 2
      %v751 = vsel %vm693, %v749, %v750
      %v752 = vrot.slane %v632, 2
      %v753 = vsel %vm693, %v750, %v752
      %v754 = vrot.slane %v633, 2
      %v755 = vrot.slane %v634, 2
      %v756 = vsel %vm693, %v754, %v755
      %v757 = vrot.slane %v635, 2
      %v758 = vsel %vm693, %v755, %v757
      %v759 = vrot.slane %v636, 2
      %v760 = vrot.slane %v637, 2
      %v761 = vsel %vm693, %v759, %v760
      %v762 = vrot.slane %v638, 2
      %v763 = vsel %vm693, %v760, %v762
      %v764 = vrot.slane %v639, 2
      %v765 = vrot.slane %v640, 2
      %v766 = vsel %vm693, %v764, %v765
      %v767 = vrot.slane %v641, 2
      %v768 = vsel %vm693, %v765, %v767
      %v769 = vrot.slane %v642, 2
      %v770 = vrot.slane %v643, 2
      %v771 = vsel %vm693, %v769, %v770
      %v772 = vrot.slane %v644, 2
      %v773 = vsel %vm693, %v770, %v772
      %v806 = vadd.f32 %v564, %v696
      %v807 = vadd.f32 %v565, %v698
      %v808 = vadd.f32 %v566, %v701
      %v809 = vadd.f32 %v567, %v703
      %v810 = vadd.f32 %v568, %v706
      %v811 = vadd.f32 %v569, %v708
      %v812 = vadd.f32 %v570, %v711
      %v813 = vadd.f32 %v571, %v713
      %v814 = vadd.f32 %v572, %v716
      %v815 = vadd.f32 %v573, %v718
      %v816 = vadd.f32 %v574, %v721
      %v817 = vadd.f32 %v575, %v723
      %v818 = vadd.f32 %v576, %v726
      %v819 = vadd.f32 %v577, %v728
      %v820 = vadd.f32 %v578, %v731
      %v821 = vadd.f32 %v579, %v733
      %v822 = vadd.f32 %v580, %v736
      %v823 = vadd.f32 %v581, %v738
      %v824 = vadd.f32 %v582, %v741
      %v825 = vadd.f32 %v583, %v743
      %v826 = vadd.f32 %v584, %v746
      %v827 = vadd.f32 %v585, %v748
      %v828 = vadd.f32 %v586, %v751
      %v829 = vadd.f32 %v587, %v753
      %v830 = vadd.f32 %v588, %v756
      %v831 = vadd.f32 %v589, %v758
      %v832 = vadd.f32 %v590, %v761
      %v833 = vadd.f32 %v591, %v763
      %v834 = vadd.f32 %v592, %v766
      %v835 = vadd.f32 %v593, %v768
      %v836 = vadd.f32 %v594, %v771
      %v837 = vadd.f32 %v595, %v773
      %v838 = vperm.slane %v287, 3
      %v839 = vmul.f32 %v236, %v838
      %v840 = vmul.f32 %v237, %v838
      %v841 = vmul.f32 %v239, %v838
      %v842 = vmul.f32 %v240, %v838
      %v843 = vmul.f32 %v242, %v838
      %v844 = vmul.f32 %v243, %v838
      %v845 = vmul.f32 %v245, %v838
      %v846 = vmul.f32 %v246, %v838
      %v847 = vmul.f32 %v248, %v838
      %v848 = vmul.f32 %v249, %v838
      %v849 = vmul.f32 %v251, %v838
      %v850 = vmul.f32 %v252, %v838
      %v851 = vmul.f32 %v254, %v838
      %v852 = vmul.f32 %v255, %v838
      %v853 = vmul.f32 %v257, %v838
      %v854 = vmul.f32 %v258, %v838
      %v855 = vmul.f32 %v260, %v838
      %v856 = vmul.f32 %v261, %v838
      %v857 = vmul.f32 %v263, %v838
      %v858 = vmul.f32 %v264, %v838
      %v859 = vmul.f32 %v266, %v838
      %v860 = vmul.f32 %v267, %v838
      %v861 = vmul.f32 %v269, %v838
      %v862 = vmul.f32 %v270, %v838
      %v863 = vmul.f32 %v272, %v838
      %v864 = vmul.f32 %v273, %v838
      %v865 = vmul.f32 %v275, %v838
      %v866 = vmul.f32 %v276, %v838
      %v867 = vmul.f32 %v278, %v838
      %v868 = vmul.f32 %v279, %v838
      %v869 = vmul.f32 %v281, %v838
      %v870 = vmul.f32 %v282, %v838
      %v871 = vadd.f32 %v806, %v839
      %v872 = vadd.f32 %v807, %v840
      %v873 = vadd.f32 %v808, %v841
      %v874 = vadd.f32 %v809, %v842
      %v875 = vadd.f32 %v810, %v843
      %v876 = vadd.f32 %v811, %v844
      %v877 = vadd.f32 %v812, %v845
      %v878 = vadd.f32 %v813, %v846
      %v879 = vadd.f32 %v814, %v847
      %v880 = vadd.f32 %v815, %v848
      %v881 = vadd.f32 %v816, %v849
      %v882 = vadd.f32 %v817, %v850
      %v883 = vadd.f32 %v818, %v851
      %v884 = vadd.f32 %v819, %v852
      %v885 = vadd.f32 %v820, %v853
      %v886 = vadd.f32 %v821, %v854
      %v887 = vadd.f32 %v822, %v855
      %v888 = vadd.f32 %v823, %v856
      %v889 = vadd.f32 %v824, %v857
      %v890 = vadd.f32 %v825, %v858
      %v891 = vadd.f32 %v826, %v859
      %v892 = vadd.f32 %v827, %v860
      %v893 = vadd.f32 %v828, %v861
      %v894 = vadd.f32 %v829, %v862
      %v895 = vadd.f32 %v830, %v863
      %v896 = vadd.f32 %v831, %v864
      %v897 = vadd.f32 %v832, %v865
      %v898 = vadd.f32 %v833, %v866
      %v899 = vadd.f32 %v834, %v867
      %v900 = vadd.f32 %v835, %v868
      %v901 = vadd.f32 %v836, %v869
      %v902 = vadd.f32 %v837, %v870
      %v903 = vperm.slane %v287, 4
      %v904 = vmul.f32 %v236, %v903
      %v905 = vmul.f32 %v237, %v903
      %v906 = vmul.f32 %v238, %v903
      %v907 = vmul.f32 %v239, %v903
      %v908 = vmul.f32 %v240, %v903
      %v909 = vmul.f32 %v241, %v903
      %v910 = vmul.f32 %v242, %v903
      %v911 = vmul.f32 %v243, %v903
      %v912 = vmul.f32 %v244, %v903
      %v913 = vmul.f32 %v245, %v903
      %v914 = vmul.f32 %v246, %v903
      %v915 = vmul.f32 %v247, %v903
      %v916 = vmul.f32 %v248, %v903
      %v917 = vmul.f32 %v249, %v903
      %v918 = vmul.f32 %v250, %v903
      %v919 = vmul.f32 %v251, %v903
      %v920 = vmul.f32 %v252, %v903
      %v921 = vmul.f32 %v253, %v903
      %v922 = vmul.f32 %v254, %v903
      %v923 = vmul.f32 %v255, %v903
      %v924 = vmul.f32 %v256, %v903
      %v925 = vmul.f32 %v257, %v903
      %v926 = vmul.f32 %v258, %v903
      %v927 = vmul.f32 %v259, %v903
      %v928 = vmul.f32 %v260, %v903
      %v929 = vmul.f32 %v261, %v903
      %v930 = vmul.f32 %v262, %v903
      %v931 = vmul.f32 %v263, %v903
      %v932 = vmul.f32 %v264, %v903
      %v933 = vmul.f32 %v265, %v903
      %v934 = vmul.f32 %v266, %v903
      %v935 = vmul.f32 %v267, %v903
      %v936 = vmul.f32 %v268, %v903
      %v937 = vmul.f32 %v269, %v903
      %v938 = vmul.f32 %v270, %v903
      %v939 = vmul.f32 %v271, %v903
      %v940 = vmul.f32 %v272, %v903
      %v941 = vmul.f32 %v273, %v903
      %v942 = vmul.f32 %v274, %v903
      %v943 = vmul.f32 %v275, %v903
      %v944 = vmul.f32 %v276, %v903
      %v945 = vmul.f32 %v277, %v903
      %v946 = vmul.f32 %v278, %v903
      %v947 = vmul.f32 %v279, %v903
      %v948 = vmul.f32 %v280, %v903
      %v949 = vmul.f32 %v281, %v903
      %v950 = vmul.f32 %v282, %v903
      %v951 = vmul.f32 %v283, %v903
      %v1000 = vrot.slane %v904, 1
      %v1001 = vrot.slane %v905, 1
      %v1002 = vsel %vm451, %v1000, %v1001
      %v1003 = vrot.slane %v906, 1
      %v1004 = vsel %vm451, %v1001, %v1003
      %v1005 = vrot.slane %v907, 1
      %v1006 = vrot.slane %v908, 1
      %v1007 = vsel %vm451, %v1005, %v1006
      %v1008 = vrot.slane %v909, 1
      %v1009 = vsel %vm451, %v1006, %v1008
      %v1010 = vrot.slane %v910, 1
      %v1011 = vrot.slane %v911, 1
      %v1012 = vsel %vm451, %v1010, %v1011
      %v1013 = vrot.slane %v912, 1
      %v1014 = vsel %vm451, %v1011, %v1013
      %v1015 = vrot.slane %v913, 1
      %v1016 = vrot.slane %v914, 1
      %v1017 = vsel %vm451, %v1015, %v1016
      %v1018 = vrot.slane %v915, 1
      %v1019 = vsel %vm451, %v1016, %v1018
      %v1020 = vrot.slane %v916, 1
      %v1021 = vrot.slane %v917, 1
      %v1022 = vsel %vm451, %v1020, %v1021
      %v1023 = vrot.slane %v918, 1
      %v1024 = vsel %vm451, %v1021, %v1023
      %v1025 = vrot.slane %v919, 1
      %v1026 = vrot.slane %v920, 1
      %v1027 = vsel %vm451, %v1025, %v1026
      %v1028 = vrot.slane %v921, 1
      %v1029 = vsel %vm451, %v1026, %v1028
      %v1030 = vrot.slane %v922, 1
      %v1031 = vrot.slane %v923, 1
      %v1032 = vsel %vm451, %v1030, %v1031
      %v1033 = vrot.slane %v924, 1
      %v1034 = vsel %vm451, %v1031, %v1033
      %v1035 = vrot.slane %v925, 1
      %v1036 = vrot.slane %v926, 1
      %v1037 = vsel %vm451, %v1035, %v1036
      %v1038 = vrot.slane %v927, 1
      %v1039 = vsel %vm451, %v1036, %v1038
      %v1040 = vrot.slane %v928, 1
      %v1041 = vrot.slane %v929, 1
      %v1042 = vsel %vm451, %v1040, %v1041
      %v1043 = vrot.slane %v930, 1
      %v1044 = vsel %vm451, %v1041, %v1043
      %v1045 = vrot.slane %v931, 1
      %v1046 = vrot.slane %v932, 1
      %v1047 = vsel %vm451, %v1045, %v1046
      %v1048 = vrot.slane %v933, 1
      %v1049 = vsel %vm451, %v1046, %v1048
      %v1050 = vrot.slane %v934, 1
      %v1051 = vrot.slane %v935, 1
      %v1052 = vsel %vm451, %v1050, %v1051
      %v1053 = vrot.slane %v936, 1
      %v1054 = vsel %vm451, %v1051, %v1053
      %v1055 = vrot.slane %v937, 1
      %v1056 = vrot.slane %v938, 1
      %v1057 = vsel %vm451, %v1055, %v1056
      %v1058 = vrot.slane %v939, 1
      %v1059 = vsel %vm451, %v1056, %v1058
      %v1060 = vrot.slane %v940, 1
      %v1061 = vrot.slane %v941, 1
      %v1062 = vsel %vm451, %v1060, %v1061
      %v1063 = vrot.slane %v942, 1
      %v1064 = vsel %vm451, %v1061, %v1063
      %v1065 = vrot.slane %v943, 1
      %v1066 = vrot.slane %v944, 1
      %v1067 = vsel %vm451, %v1065, %v1066
      %v1068 = vrot.slane %v945, 1
      %v1069 = vsel %vm451, %v1066, %v1068
      %v1070 = vrot.slane %v946, 1
      %v1071 = vrot.slane %v947, 1
      %v1072 = vsel %vm451, %v1070, %v1071
      %v1073 = vrot.slane %v948, 1
      %v1074 = vsel %vm451, %v1071, %v1073
      %v1075 = vrot.slane %v949, 1
      %v1076 = vrot.slane %v950, 1
      %v1077 = vsel %vm451, %v1075, %v1076
      %v1078 = vrot.slane %v951, 1
      %v1079 = vsel %vm451, %v1076, %v1078
      %v1112 = vadd.f32 %v871, %v1002
      %v1113 = vadd.f32 %v872, %v1004
      %v1114 = vadd.f32 %v873, %v1007
      %v1115 = vadd.f32 %v874, %v1009
      %v1116 = vadd.f32 %v875, %v1012
      %v1117 = vadd.f32 %v876, %v1014
      %v1118 = vadd.f32 %v877, %v1017
      %v1119 = vadd.f32 %v878, %v1019
      %v1120 = vadd.f32 %v879, %v1022
      %v1121 = vadd.f32 %v880, %v1024
      %v1122 = vadd.f32 %v881, %v1027
      %v1123 = vadd.f32 %v882, %v1029
      %v1124 = vadd.f32 %v883, %v1032
      %v1125 = vadd.f32 %v884, %v1034
      %v1126 = vadd.f32 %v885, %v1037
      %v1127 = vadd.f32 %v886, %v1039
      %v1128 = vadd.f32 %v887, %v1042
      %v1129 = vadd.f32 %v888, %v1044
      %v1130 = vadd.f32 %v889, %v1047
      %v1131 = vadd.f32 %v890, %v1049
      %v1132 = vadd.f32 %v891, %v1052
      %v1133 = vadd.f32 %v892, %v1054
      %v1134 = vadd.f32 %v893, %v1057
      %v1135 = vadd.f32 %v894, %v1059
      %v1136 = vadd.f32 %v895, %v1062
      %v1137 = vadd.f32 %v896, %v1064
      %v1138 = vadd.f32 %v897, %v1067
      %v1139 = vadd.f32 %v898, %v1069
      %v1140 = vadd.f32 %v899, %v1072
      %v1141 = vadd.f32 %v900, %v1074
      %v1142 = vadd.f32 %v901, %v1077
      %v1143 = vadd.f32 %v902, %v1079
      %v1144 = vperm.slane %v287, 5
      %v1145 = vmul.f32 %v236, %v1144
      %v1146 = vmul.f32 %v237, %v1144
      %v1147 = vmul.f32 %v238, %v1144
      %v1148 = vmul.f32 %v239, %v1144
      %v1149 = vmul.f32 %v240, %v1144
      %v1150 = vmul.f32 %v241, %v1144
      %v1151 = vmul.f32 %v242, %v1144
      %v1152 = vmul.f32 %v243, %v1144
      %v1153 = vmul.f32 %v244, %v1144
      %v1154 = vmul.f32 %v245, %v1144
      %v1155 = vmul.f32 %v246, %v1144
      %v1156 = vmul.f32 %v247, %v1144
      %v1157 = vmul.f32 %v248, %v1144
      %v1158 = vmul.f32 %v249, %v1144
      %v1159 = vmul.f32 %v250, %v1144
      %v1160 = vmul.f32 %v251, %v1144
      %v1161 = vmul.f32 %v252, %v1144
      %v1162 = vmul.f32 %v253, %v1144
      %v1163 = vmul.f32 %v254, %v1144
      %v1164 = vmul.f32 %v255, %v1144
      %v1165 = vmul.f32 %v256, %v1144
      %v1166 = vmul.f32 %v257, %v1144
      %v1167 = vmul.f32 %v258, %v1144
      %v1168 = vmul.f32 %v259, %v1144
      %v1169 = vmul.f32 %v260, %v1144
      %v1170 = vmul.f32 %v261, %v1144
      %v1171 = vmul.f32 %v262, %v1144
      %v1172 = vmul.f32 %v263, %v1144
      %v1173 = vmul.f32 %v264, %v1144
      %v1174 = vmul.f32 %v265, %v1144
      %v1175 = vmul.f32 %v266, %v1144
      %v1176 = vmul.f32 %v267, %v1144
      %v1177 = vmul.f32 %v268, %v1144
      %v1178 = vmul.f32 %v269, %v1144
      %v1179 = vmul.f32 %v270, %v1144
      %v1180 = vmul.f32 %v271, %v1144
      %v1181 = vmul.f32 %v272, %v1144
      %v1182 = vmul.f32 %v273, %v1144
      %v1183 = vmul.f32 %v274, %v1144
      %v1184 = vmul.f32 %v275, %v1144
      %v1185 = vmul.f32 %v276, %v1144
      %v1186 = vmul.f32 %v277, %v1144
      %v1187 = vmul.f32 %v278, %v1144
      %v1188 = vmul.f32 %v279, %v1144
      %v1189 = vmul.f32 %v280, %v1144
      %v1190 = vmul.f32 %v281, %v1144
      %v1191 = vmul.f32 %v282, %v1144
      %v1192 = vmul.f32 %v283, %v1144
      %v1241 = vrot.slane %v1145, 2
      %v1242 = vrot.slane %v1146, 2
      %v1243 = vsel %vm693, %v1241, %v1242
      %v1244 = vrot.slane %v1147, 2
      %v1245 = vsel %vm693, %v1242, %v1244
      %v1246 = vrot.slane %v1148, 2
      %v1247 = vrot.slane %v1149, 2
      %v1248 = vsel %vm693, %v1246, %v1247
      %v1249 = vrot.slane %v1150, 2
      %v1250 = vsel %vm693, %v1247, %v1249
      %v1251 = vrot.slane %v1151, 2
      %v1252 = vrot.slane %v1152, 2
      %v1253 = vsel %vm693, %v1251, %v1252
      %v1254 = vrot.slane %v1153, 2
      %v1255 = vsel %vm693, %v1252, %v1254
      %v1256 = vrot.slane %v1154, 2
      %v1257 = vrot.slane %v1155, 2
      %v1258 = vsel %vm693, %v1256, %v1257
      %v1259 = vrot.slane %v1156, 2
      %v1260 = vsel %vm693, %v1257, %v1259
      %v1261 = vrot.slane %v1157, 2
      %v1262 = vrot.slane %v1158, 2
      %v1263 = vsel %vm693, %v1261, %v1262
      %v1264 = vrot.slane %v1159, 2
      %v1265 = vsel %vm693, %v1262, %v1264
      %v1266 = vrot.slane %v1160, 2
      %v1267 = vrot.slane %v1161, 2
      %v1268 = vsel %vm693, %v1266, %v1267
      %v1269 = vrot.slane %v1162, 2
      %v1270 = vsel %vm693, %v1267, %v1269
      %v1271 = vrot.slane %v1163, 2
      %v1272 = vrot.slane %v1164, 2
      %v1273 = vsel %vm693, %v1271, %v1272
      %v1274 = vrot.slane %v1165, 2
      %v1275 = vsel %vm693, %v1272, %v1274
      %v1276 = vrot.slane %v1166, 2
      %v1277 = vrot.slane %v1167, 2
      %v1278 = vsel %vm693, %v1276, %v1277
      %v1279 = vrot.slane %v1168, 2
      %v1280 = vsel %vm693, %v1277, %v1279
      %v1281 = vrot.slane %v1169, 2
      %v1282 = vrot.slane %v1170, 2
      %v1283 = vsel %vm693, %v1281, %v1282
      %v1284 = vrot.slane %v1171, 2
      %v1285 = vsel %vm693, %v1282, %v1284
      %v1286 = vrot.slane %v1172, 2
      %v1287 = vrot.slane %v1173, 2
      %v1288 = vsel %vm693, %v1286, %v1287
      %v1289 = vrot.slane %v1174, 2
      %v1290 = vsel %vm693, %v1287, %v1289
      %v1291 = vrot.slane %v1175, 2
      %v1292 = vrot.slane %v1176, 2
      %v1293 = vsel %vm693, %v1291, %v1292
      %v1294 = vrot.slane %v1177, 2
      %v1295 = vsel %vm693, %v1292, %v1294
      %v1296 = vrot.slane %v1178, 2
      %v1297 = vrot.slane %v1179, 2
      %v1298 = vsel %vm693, %v1296, %v1297
      %v1299 = vrot.slane %v1180, 2
      %v1300 = vsel %vm693, %v1297, %v1299
      %v1301 = vrot.slane %v1181, 2
      %v1302 = vrot.slane %v1182, 2
      %v1303 = vsel %vm693, %v1301, %v1302
      %v1304 = vrot.slane %v1183, 2
      %v1305 = vsel %vm693, %v1302, %v1304
      %v1306 = vrot.slane %v1184, 2
      %v1307 = vrot.slane %v1185, 2
      %v1308 = vsel %vm693, %v1306, %v1307
      %v1309 = vrot.slane %v1186, 2
      %v1310 = vsel %vm693, %v1307, %v1309
      %v1311 = vrot.slane %v1187, 2
      %v1312 = vrot.slane %v1188, 2
      %v1313 = vsel %vm693, %v1311, %v1312
      %v1314 = vrot.slane %v1189, 2
      %v1315 = vsel %vm693, %v1312, %v1314
      %v1316 = vrot.slane %v1190, 2
      %v1317 = vrot.slane %v1191, 2
      %v1318 = vsel %vm693, %v1316, %v1317
      %v1319 = vrot.slane %v1192, 2
      %v1320 = vsel %vm693, %v1317, %v1319
      %v1353 = vadd.f32 %v1112, %v1243
      %v1354 = vadd.f32 %v1113, %v1245
      %v1355 = vadd.f32 %v1114, %v1248
      %v1356 = vadd.f32 %v1115, %v1250
      %v1357 = vadd.f32 %v1116, %v1253
      %v1358 = vadd.f32 %v1117, %v1255
      %v1359 = vadd.f32 %v1118, %v1258
      %v1360 = vadd.f32 %v1119, %v1260
      %v1361 = vadd.f32 %v1120, %v1263
      %v1362 = vadd.f32 %v1121, %v1265
      %v1363 = vadd.f32 %v1122, %v1268
      %v1364 = vadd.f32 %v1123, %v1270
      %v1365 = vadd.f32 %v1124, %v1273
      %v1366 = vadd.f32 %v1125, %v1275
      %v1367 = vadd.f32 %v1126, %v1278
      %v1368 = vadd.f32 %v1127, %v1280
      %v1369 = vadd.f32 %v1128, %v1283
      %v1370 = vadd.f32 %v1129, %v1285
      %v1371 = vadd.f32 %v1130, %v1288
      %v1372 = vadd.f32 %v1131, %v1290
      %v1373 = vadd.f32 %v1132, %v1293
      %v1374 = vadd.f32 %v1133, %v1295
      %v1375 = vadd.f32 %v1134, %v1298
      %v1376 = vadd.f32 %v1135, %v1300
      %v1377 = vadd.f32 %v1136, %v1303
      %v1378 = vadd.f32 %v1137, %v1305
      %v1379 = vadd.f32 %v1138, %v1308
      %v1380 = vadd.f32 %v1139, %v1310
      %v1381 = vadd.f32 %v1140, %v1313
      %v1382 = vadd.f32 %v1141, %v1315
      %v1383 = vadd.f32 %v1142, %v1318
      %v1384 = vadd.f32 %v1143, %v1320
      %v1385 = vperm.slane %v287, 6
      %v1386 = vmul.f32 %v239, %v1385
      %v1387 = vmul.f32 %v240, %v1385
      %v1388 = vmul.f32 %v242, %v1385
      %v1389 = vmul.f32 %v243, %v1385
      %v1390 = vmul.f32 %v245, %v1385
      %v1391 = vmul.f32 %v246, %v1385
      %v1392 = vmul.f32 %v248, %v1385
      %v1393 = vmul.f32 %v249, %v1385
      %v1394 = vmul.f32 %v251, %v1385
      %v1395 = vmul.f32 %v252, %v1385
      %v1396 = vmul.f32 %v254, %v1385
      %v1397 = vmul.f32 %v255, %v1385
      %v1398 = vmul.f32 %v257, %v1385
      %v1399 = vmul.f32 %v258, %v1385
      %v1400 = vmul.f32 %v260, %v1385
      %v1401 = vmul.f32 %v261, %v1385
      %v1402 = vmul.f32 %v263, %v1385
      %v1403 = vmul.f32 %v264, %v1385
      %v1404 = vmul.f32 %v266, %v1385
      %v1405 = vmul.f32 %v267, %v1385
      %v1406 = vmul.f32 %v269, %v1385
      %v1407 = vmul.f32 %v270, %v1385
      %v1408 = vmul.f32 %v272, %v1385
      %v1409 = vmul.f32 %v273, %v1385
      %v1410 = vmul.f32 %v275, %v1385
      %v1411 = vmul.f32 %v276, %v1385
      %v1412 = vmul.f32 %v278, %v1385
      %v1413 = vmul.f32 %v279, %v1385
      %v1414 = vmul.f32 %v281, %v1385
      %v1415 = vmul.f32 %v282, %v1385
      %v1416 = vmul.f32 %v284, %v1385
      %v1417 = vmul.f32 %v285, %v1385
      %v1418 = vadd.f32 %v1353, %v1386
      %v1419 = vadd.f32 %v1354, %v1387
      %v1420 = vadd.f32 %v1355, %v1388
      %v1421 = vadd.f32 %v1356, %v1389
      %v1422 = vadd.f32 %v1357, %v1390
      %v1423 = vadd.f32 %v1358, %v1391
      %v1424 = vadd.f32 %v1359, %v1392
      %v1425 = vadd.f32 %v1360, %v1393
      %v1426 = vadd.f32 %v1361, %v1394
      %v1427 = vadd.f32 %v1362, %v1395
      %v1428 = vadd.f32 %v1363, %v1396
      %v1429 = vadd.f32 %v1364, %v1397
      %v1430 = vadd.f32 %v1365, %v1398
      %v1431 = vadd.f32 %v1366, %v1399
      %v1432 = vadd.f32 %v1367, %v1400
      %v1433 = vadd.f32 %v1368, %v1401
      %v1434 = vadd.f32 %v1369, %v1402
      %v1435 = vadd.f32 %v1370, %v1403
      %v1436 = vadd.f32 %v1371, %v1404
      %v1437 = vadd.f32 %v1372, %v1405
      %v1438 = vadd.f32 %v1373, %v1406
      %v1439 = vadd.f32 %v1374, %v1407
      %v1440 = vadd.f32 %v1375, %v1408
      %v1441 = vadd.f32 %v1376, %v1409
      %v1442 = vadd.f32 %v1377, %v1410
      %v1443 = vadd.f32 %v1378, %v1411
      %v1444 = vadd.f32 %v1379, %v1412
      %v1445 = vadd.f32 %v1380, %v1413
      %v1446 = vadd.f32 %v1381, %v1414
      %v1447 = vadd.f32 %v1382, %v1415
      %v1448 = vadd.f32 %v1383, %v1416
      %v1449 = vadd.f32 %v1384, %v1417
      %v1450 = vperm.slane %v287, 7
      %v1451 = vmul.f32 %v239, %v1450
      %v1452 = vmul.f32 %v240, %v1450
      %v1453 = vmul.f32 %v241, %v1450
      %v1454 = vmul.f32 %v242, %v1450
      %v1455 = vmul.f32 %v243, %v1450
      %v1456 = vmul.f32 %v244, %v1450
      %v1457 = vmul.f32 %v245, %v1450
      %v1458 = vmul.f32 %v246, %v1450
      %v1459 = vmul.f32 %v247, %v1450
      %v1460 = vmul.f32 %v248, %v1450
      %v1461 = vmul.f32 %v249, %v1450
      %v1462 = vmul.f32 %v250, %v1450
      %v1463 = vmul.f32 %v251, %v1450
      %v1464 = vmul.f32 %v252, %v1450
      %v1465 = vmul.f32 %v253, %v1450
      %v1466 = vmul.f32 %v254, %v1450
      %v1467 = vmul.f32 %v255, %v1450
      %v1468 = vmul.f32 %v256, %v1450
      %v1469 = vmul.f32 %v257, %v1450
      %v1470 = vmul.f32 %v258, %v1450
      %v1471 = vmul.f32 %v259, %v1450
      %v1472 = vmul.f32 %v260, %v1450
      %v1473 = vmul.f32 %v261, %v1450
      %v1474 = vmul.f32 %v262, %v1450
      %v1475 = vmul.f32 %v263, %v1450
      %v1476 = vmul.f32 %v264, %v1450
      %v1477 = vmul.f32 %v265, %v1450
      %v1478 = vmul.f32 %v266, %v1450
      %v1479 = vmul.f32 %v267, %v1450
      %v1480 = vmul.f32 %v268, %v1450
      %v1481 = vmul.f32 %v269, %v1450
      %v1482 = vmul.f32 %v270, %v1450
      %v1483 = vmul.f32 %v271, %v1450
      %v1484 = vmul.f32 %v272, %v1450
      %v1485 = vmul.f32 %v273, %v1450
      %v1486 = vmul.f32 %v274, %v1450
      %v1487 = vmul.f32 %v275, %v1450
      %v1488 = vmul.f32 %v276, %v1450
      %v1489 = vmul.f32 %v277, %v1450
      %v1490 = vmul.f32 %v278, %v1450
      %v1491 = vmul.f32 %v279, %v1450
      %v1492 = vmul.f32 %v280, %v1450
      %v1493 = vmul.f32 %v281, %v1450
      %v1494 = vmul.f32 %v282, %v1450
      %v1495 = vmul.f32 %v283, %v1450
      %v1496 = vmul.f32 %v284, %v1450
      %v1497 = vmul.f32 %v285, %v1450
      %v1498 = vmul.f32 %v286, %v1450
      %v1547 = vrot.slane %v1451, 1
      %v1548 = vrot.slane %v1452, 1
      %v1549 = vsel %vm451, %v1547, %v1548
      %v1550 = vrot.slane %v1453, 1
      %v1551 = vsel %vm451, %v1548, %v1550
      %v1552 = vrot.slane %v1454, 1
      %v1553 = vrot.slane %v1455, 1
      %v1554 = vsel %vm451, %v1552, %v1553
      %v1555 = vrot.slane %v1456, 1
      %v1556 = vsel %vm451, %v1553, %v1555
      %v1557 = vrot.slane %v1457, 1
      %v1558 = vrot.slane %v1458, 1
      %v1559 = vsel %vm451, %v1557, %v1558
      %v1560 = vrot.slane %v1459, 1
      %v1561 = vsel %vm451, %v1558, %v1560
      %v1562 = vrot.slane %v1460, 1
      %v1563 = vrot.slane %v1461, 1
      %v1564 = vsel %vm451, %v1562, %v1563
      %v1565 = vrot.slane %v1462, 1
      %v1566 = vsel %vm451, %v1563, %v1565
      %v1567 = vrot.slane %v1463, 1
      %v1568 = vrot.slane %v1464, 1
      %v1569 = vsel %vm451, %v1567, %v1568
      %v1570 = vrot.slane %v1465, 1
      %v1571 = vsel %vm451, %v1568, %v1570
      %v1572 = vrot.slane %v1466, 1
      %v1573 = vrot.slane %v1467, 1
      %v1574 = vsel %vm451, %v1572, %v1573
      %v1575 = vrot.slane %v1468, 1
      %v1576 = vsel %vm451, %v1573, %v1575
      %v1577 = vrot.slane %v1469, 1
      %v1578 = vrot.slane %v1470, 1
      %v1579 = vsel %vm451, %v1577, %v1578
      %v1580 = vrot.slane %v1471, 1
      %v1581 = vsel %vm451, %v1578, %v1580
      %v1582 = vrot.slane %v1472, 1
      %v1583 = vrot.slane %v1473, 1
      %v1584 = vsel %vm451, %v1582, %v1583
      %v1585 = vrot.slane %v1474, 1
      %v1586 = vsel %vm451, %v1583, %v1585
      %v1587 = vrot.slane %v1475, 1
      %v1588 = vrot.slane %v1476, 1
      %v1589 = vsel %vm451, %v1587, %v1588
      %v1590 = vrot.slane %v1477, 1
      %v1591 = vsel %vm451, %v1588, %v1590
      %v1592 = vrot.slane %v1478, 1
      %v1593 = vrot.slane %v1479, 1
      %v1594 = vsel %vm451, %v1592, %v1593
      %v1595 = vrot.slane %v1480, 1
      %v1596 = vsel %vm451, %v1593, %v1595
      %v1597 = vrot.slane %v1481, 1
      %v1598 = vrot.slane %v1482, 1
      %v1599 = vsel %vm451, %v1597, %v1598
      %v1600 = vrot.slane %v1483, 1
      %v1601 = vsel %vm451, %v1598, %v1600
      %v1602 = vrot.slane %v1484, 1
      %v1603 = vrot.slane %v1485, 1
      %v1604 = vsel %vm451, %v1602, %v1603
      %v1605 = vrot.slane %v1486, 1
      %v1606 = vsel %vm451, %v1603, %v1605
      %v1607 = vrot.slane %v1487, 1
      %v1608 = vrot.slane %v1488, 1
      %v1609 = vsel %vm451, %v1607, %v1608
      %v1610 = vrot.slane %v1489, 1
      %v1611 = vsel %vm451, %v1608, %v1610
      %v1612 = vrot.slane %v1490, 1
      %v1613 = vrot.slane %v1491, 1
      %v1614 = vsel %vm451, %v1612, %v1613
      %v1615 = vrot.slane %v1492, 1
      %v1616 = vsel %vm451, %v1613, %v1615
      %v1617 = vrot.slane %v1493, 1
      %v1618 = vrot.slane %v1494, 1
      %v1619 = vsel %vm451, %v1617, %v1618
      %v1620 = vrot.slane %v1495, 1
      %v1621 = vsel %vm451, %v1618, %v1620
      %v1622 = vrot.slane %v1496, 1
      %v1623 = vrot.slane %v1497, 1
      %v1624 = vsel %vm451, %v1622, %v1623
      %v1625 = vrot.slane %v1498, 1
      %v1626 = vsel %vm451, %v1623, %v1625
      %v1659 = vadd.f32 %v1418, %v1549
      %v1660 = vadd.f32 %v1419, %v1551
      %v1661 = vadd.f32 %v1420, %v1554
      %v1662 = vadd.f32 %v1421, %v1556
      %v1663 = vadd.f32 %v1422, %v1559
      %v1664 = vadd.f32 %v1423, %v1561
      %v1665 = vadd.f32 %v1424, %v1564
      %v1666 = vadd.f32 %v1425, %v1566
      %v1667 = vadd.f32 %v1426, %v1569
      %v1668 = vadd.f32 %v1427, %v1571
      %v1669 = vadd.f32 %v1428, %v1574
      %v1670 = vadd.f32 %v1429, %v1576
      %v1671 = vadd.f32 %v1430, %v1579
      %v1672 = vadd.f32 %v1431, %v1581
      %v1673 = vadd.f32 %v1432, %v1584
      %v1674 = vadd.f32 %v1433, %v1586
      %v1675 = vadd.f32 %v1434, %v1589
      %v1676 = vadd.f32 %v1435, %v1591
      %v1677 = vadd.f32 %v1436, %v1594
      %v1678 = vadd.f32 %v1437, %v1596
      %v1679 = vadd.f32 %v1438, %v1599
      %v1680 = vadd.f32 %v1439, %v1601
      %v1681 = vadd.f32 %v1440, %v1604
      %v1682 = vadd.f32 %v1441, %v1606
      %v1683 = vadd.f32 %v1442, %v1609
      %v1684 = vadd.f32 %v1443, %v1611
      %v1685 = vadd.f32 %v1444, %v1614
      %v1686 = vadd.f32 %v1445, %v1616
      %v1687 = vadd.f32 %v1446, %v1619
      %v1688 = vadd.f32 %v1447, %v1621
      %v1689 = vadd.f32 %v1448, %v1624
      %v1690 = vadd.f32 %v1449, %v1626
      %v1691 = vperm.slane %v288, 0
      %v1692 = vmul.f32 %v239, %v1691
      %v1693 = vmul.f32 %v240, %v1691
      %v1694 = vmul.f32 %v241, %v1691
      %v1695 = vmul.f32 %v242, %v1691
      %v1696 = vmul.f32 %v243, %v1691
      %v1697 = vmul.f32 %v244, %v1691
      %v1698 = vmul.f32 %v245, %v1691
      %v1699 = vmul.f32 %v246, %v1691
      %v1700 = vmul.f32 %v247, %v1691
      %v1701 = vmul.f32 %v248, %v1691
      %v1702 = vmul.f32 %v249, %v1691
      %v1703 = vmul.f32 %v250, %v1691
      %v1704 = vmul.f32 %v251, %v1691
      %v1705 = vmul.f32 %v252, %v1691
      %v1706 = vmul.f32 %v253, %v1691
      %v1707 = vmul.f32 %v254, %v1691
      %v1708 = vmul.f32 %v255, %v1691
      %v1709 = vmul.f32 %v256, %v1691
      %v1710 = vmul.f32 %v257, %v1691
      %v1711 = vmul.f32 %v258, %v1691
      %v1712 = vmul.f32 %v259, %v1691
      %v1713 = vmul.f32 %v260, %v1691
      %v1714 = vmul.f32 %v261, %v1691
      %v1715 = vmul.f32 %v262, %v1691
      %v1716 = vmul.f32 %v263, %v1691
      %v1717 = vmul.f32 %v264, %v1691
      %v1718 = vmul.f32 %v265, %v1691
      %v1719 = vmul.f32 %v266, %v1691
      %v1720 = vmul.f32 %v267, %v1691
      %v1721 = vmul.f32 %v268, %v1691
      %v1722 = vmul.f32 %v269, %v1691
      %v1723 = vmul.f32 %v270, %v1691
      %v1724 = vmul.f32 %v271, %v1691
      %v1725 = vmul.f32 %v272, %v1691
      %v1726 = vmul.f32 %v273, %v1691
      %v1727 = vmul.f32 %v274, %v1691
      %v1728 = vmul.f32 %v275, %v1691
      %v1729 = vmul.f32 %v276, %v1691
      %v1730 = vmul.f32 %v277, %v1691
      %v1731 = vmul.f32 %v278, %v1691
      %v1732 = vmul.f32 %v279, %v1691
      %v1733 = vmul.f32 %v280, %v1691
      %v1734 = vmul.f32 %v281, %v1691
      %v1735 = vmul.f32 %v282, %v1691
      %v1736 = vmul.f32 %v283, %v1691
      %v1737 = vmul.f32 %v284, %v1691
      %v1738 = vmul.f32 %v285, %v1691
      %v1739 = vmul.f32 %v286, %v1691
      %v1788 = vrot.slane %v1692, 2
      %v1789 = vrot.slane %v1693, 2
      %v1790 = vsel %vm693, %v1788, %v1789
      %v1791 = vrot.slane %v1694, 2
      %v1792 = vsel %vm693, %v1789, %v1791
      %v1793 = vrot.slane %v1695, 2
      %v1794 = vrot.slane %v1696, 2
      %v1795 = vsel %vm693, %v1793, %v1794
      %v1796 = vrot.slane %v1697, 2
      %v1797 = vsel %vm693, %v1794, %v1796
      %v1798 = vrot.slane %v1698, 2
      %v1799 = vrot.slane %v1699, 2
      %v1800 = vsel %vm693, %v1798, %v1799
      %v1801 = vrot.slane %v1700, 2
      %v1802 = vsel %vm693, %v1799, %v1801
      %v1803 = vrot.slane %v1701, 2
      %v1804 = vrot.slane %v1702, 2
      %v1805 = vsel %vm693, %v1803, %v1804
      %v1806 = vrot.slane %v1703, 2
      %v1807 = vsel %vm693, %v1804, %v1806
      %v1808 = vrot.slane %v1704, 2
      %v1809 = vrot.slane %v1705, 2
      %v1810 = vsel %vm693, %v1808, %v1809
      %v1811 = vrot.slane %v1706, 2
      %v1812 = vsel %vm693, %v1809, %v1811
      %v1813 = vrot.slane %v1707, 2
      %v1814 = vrot.slane %v1708, 2
      %v1815 = vsel %vm693, %v1813, %v1814
      %v1816 = vrot.slane %v1709, 2
      %v1817 = vsel %vm693, %v1814, %v1816
      %v1818 = vrot.slane %v1710, 2
      %v1819 = vrot.slane %v1711, 2
      %v1820 = vsel %vm693, %v1818, %v1819
      %v1821 = vrot.slane %v1712, 2
      %v1822 = vsel %vm693, %v1819, %v1821
      %v1823 = vrot.slane %v1713, 2
      %v1824 = vrot.slane %v1714, 2
      %v1825 = vsel %vm693, %v1823, %v1824
      %v1826 = vrot.slane %v1715, 2
      %v1827 = vsel %vm693, %v1824, %v1826
      %v1828 = vrot.slane %v1716, 2
      %v1829 = vrot.slane %v1717, 2
      %v1830 = vsel %vm693, %v1828, %v1829
      %v1831 = vrot.slane %v1718, 2
      %v1832 = vsel %vm693, %v1829, %v1831
      %v1833 = vrot.slane %v1719, 2
      %v1834 = vrot.slane %v1720, 2
      %v1835 = vsel %vm693, %v1833, %v1834
      %v1836 = vrot.slane %v1721, 2
      %v1837 = vsel %vm693, %v1834, %v1836
      %v1838 = vrot.slane %v1722, 2
      %v1839 = vrot.slane %v1723, 2
      %v1840 = vsel %vm693, %v1838, %v1839
      %v1841 = vrot.slane %v1724, 2
      %v1842 = vsel %vm693, %v1839, %v1841
      %v1843 = vrot.slane %v1725, 2
      %v1844 = vrot.slane %v1726, 2
      %v1845 = vsel %vm693, %v1843, %v1844
      %v1846 = vrot.slane %v1727, 2
      %v1847 = vsel %vm693, %v1844, %v1846
      %v1848 = vrot.slane %v1728, 2
      %v1849 = vrot.slane %v1729, 2
      %v1850 = vsel %vm693, %v1848, %v1849
      %v1851 = vrot.slane %v1730, 2
      %v1852 = vsel %vm693, %v1849, %v1851
      %v1853 = vrot.slane %v1731, 2
      %v1854 = vrot.slane %v1732, 2
      %v1855 = vsel %vm693, %v1853, %v1854
      %v1856 = vrot.slane %v1733, 2
      %v1857 = vsel %vm693, %v1854, %v1856
      %v1858 = vrot.slane %v1734, 2
      %v1859 = vrot.slane %v1735, 2
      %v1860 = vsel %vm693, %v1858, %v1859
      %v1861 = vrot.slane %v1736, 2
      %v1862 = vsel %vm693, %v1859, %v1861
      %v1863 = vrot.slane %v1737, 2
      %v1864 = vrot.slane %v1738, 2
      %v1865 = vsel %vm693, %v1863, %v1864
      %v1866 = vrot.slane %v1739, 2
      %v1867 = vsel %vm693, %v1864, %v1866
      %v1900 = vadd.f32 %v1659, %v1790
      %v1901 = vadd.f32 %v1660, %v1792
      %v1902 = vadd.f32 %v1661, %v1795
      %v1903 = vadd.f32 %v1662, %v1797
      %v1904 = vadd.f32 %v1663, %v1800
      %v1905 = vadd.f32 %v1664, %v1802
      %v1906 = vadd.f32 %v1665, %v1805
      %v1907 = vadd.f32 %v1666, %v1807
      %v1908 = vadd.f32 %v1667, %v1810
      %v1909 = vadd.f32 %v1668, %v1812
      %v1910 = vadd.f32 %v1669, %v1815
      %v1911 = vadd.f32 %v1670, %v1817
      %v1912 = vadd.f32 %v1671, %v1820
      %v1913 = vadd.f32 %v1672, %v1822
      %v1914 = vadd.f32 %v1673, %v1825
      %v1915 = vadd.f32 %v1674, %v1827
      %v1916 = vadd.f32 %v1675, %v1830
      %v1917 = vadd.f32 %v1676, %v1832
      %v1918 = vadd.f32 %v1677, %v1835
      %v1919 = vadd.f32 %v1678, %v1837
      %v1920 = vadd.f32 %v1679, %v1840
      %v1921 = vadd.f32 %v1680, %v1842
      %v1922 = vadd.f32 %v1681, %v1845
      %v1923 = vadd.f32 %v1682, %v1847
      %v1924 = vadd.f32 %v1683, %v1850
      %v1925 = vadd.f32 %v1684, %v1852
      %v1926 = vadd.f32 %v1685, %v1855
      %v1927 = vadd.f32 %v1686, %v1857
      %v1928 = vadd.f32 %v1687, %v1860
      %v1929 = vadd.f32 %v1688, %v1862
      %v1930 = vadd.f32 %v1689, %v1865
      %v1931 = vadd.f32 %v1690, %v1867
      %v1932 = vld [vmem:[%s224] sm:$0x1]
      %v1934 = vperm.slane %v1932, 0
      %v1936 = vadd.f32 %v1900, %v1934
      %v1937 = vadd.f32 %v1901, %v1934
      %v1938 = vadd.f32 %v1902, %v1934
      %v1939 = vadd.f32 %v1903, %v1934
      %v1940 = vadd.f32 %v1904, %v1934
      %v1941 = vadd.f32 %v1905, %v1934
      %v1942 = vadd.f32 %v1906, %v1934
      %v1943 = vadd.f32 %v1907, %v1934
      %v1944 = vadd.f32 %v1908, %v1934
      %v1945 = vadd.f32 %v1909, %v1934
      %v1946 = vadd.f32 %v1910, %v1934
      %v1947 = vadd.f32 %v1911, %v1934
      %v1948 = vadd.f32 %v1912, %v1934
      %v1949 = vadd.f32 %v1913, %v1934
      %v1950 = vadd.f32 %v1914, %v1934
      %v1951 = vadd.f32 %v1915, %v1934
      %v1952 = vadd.f32 %v1916, %v1934
      %v1953 = vadd.f32 %v1917, %v1934
      %v1954 = vadd.f32 %v1918, %v1934
      %v1955 = vadd.f32 %v1919, %v1934
      %v1956 = vadd.f32 %v1920, %v1934
      %v1957 = vadd.f32 %v1921, %v1934
      %v1958 = vadd.f32 %v1922, %v1934
      %v1959 = vadd.f32 %v1923, %v1934
      %v1960 = vadd.f32 %v1924, %v1934
      %v1961 = vadd.f32 %v1925, %v1934
      %v1962 = vadd.f32 %v1926, %v1934
      %v1963 = vadd.f32 %v1927, %v1934
      %v1964 = vadd.f32 %v1928, %v1934
      %v1965 = vadd.f32 %v1929, %v1934
      %v1966 = vadd.f32 %v1930, %v1934
      %v1967 = vadd.f32 %v1931, %v1934
      %vm1968 = vcmask 31744
      %1969 = vst.msk [vmem:[%s232] sm:$0xff] %vm1968, %v1936
      %1970 = vst.msk [vmem:[%s232 + $0x8] sm:$0xff] %vm1968, %v1937
      %1971 = vst.msk [vmem:[%s232 + $0x10] sm:$0xff] %vm1968, %v1938
      %1972 = vst.msk [vmem:[%s232 + $0x18] sm:$0xff] %vm1968, %v1939
      %1973 = vst.msk [vmem:[%s232 + $0x20] sm:$0xff] %vm1968, %v1940
      %1974 = vst.msk [vmem:[%s232 + $0x28] sm:$0xff] %vm1968, %v1941
      %1975 = vst.msk [vmem:[%s232 + $0x30] sm:$0xff] %vm1968, %v1942
      %1976 = vst.msk [vmem:[%s232 + $0x38] sm:$0xff] %vm1968, %v1943
      %1977 = vst.msk [vmem:[%s232 + $0x40] sm:$0xff] %vm1968, %v1944
      %1978 = vst.msk [vmem:[%s232 + $0x48] sm:$0xff] %vm1968, %v1945
      %1979 = vst.msk [vmem:[%s232 + $0x50] sm:$0xff] %vm1968, %v1946
      %1980 = vst.msk [vmem:[%s232 + $0x58] sm:$0xff] %vm1968, %v1947
      %1981 = vst.msk [vmem:[%s232 + $0x60] sm:$0xff] %vm1968, %v1948
      %1982 = vst.msk [vmem:[%s232 + $0x68] sm:$0xff] %vm1968, %v1949
      %1983 = vst.msk [vmem:[%s232 + $0x70] sm:$0xff] %vm1968, %v1950
      %1984 = vst.msk [vmem:[%s232 + $0x78] sm:$0xff] %vm1968, %v1951
      %1985 = vst.msk [vmem:[%s232 + $0x80] sm:$0xff] %vm1968, %v1952
      %1986 = vst.msk [vmem:[%s232 + $0x88] sm:$0xff] %vm1968, %v1953
      %1987 = vst.msk [vmem:[%s232 + $0x90] sm:$0xff] %vm1968, %v1954
      %1988 = vst.msk [vmem:[%s232 + $0x98] sm:$0xff] %vm1968, %v1955
      %1989 = vst.msk [vmem:[%s232 + $0xa0] sm:$0xff] %vm1968, %v1956
      %1990 = vst.msk [vmem:[%s232 + $0xa8] sm:$0xff] %vm1968, %v1957
      %1991 = vst.msk [vmem:[%s232 + $0xb0] sm:$0xff] %vm1968, %v1958
      %1992 = vst.msk [vmem:[%s232 + $0xb8] sm:$0xff] %vm1968, %v1959
      %1993 = vst.msk [vmem:[%s232 + $0xc0] sm:$0xff] %vm1968, %v1960
      %1994 = vst.msk [vmem:[%s232 + $0xc8] sm:$0xff] %vm1968, %v1961
      %1995 = vst.msk [vmem:[%s232 + $0xd0] sm:$0xff] %vm1968, %v1962
      %1996 = vst.msk [vmem:[%s232 + $0xd8] sm:$0xff] %vm1968, %v1963
      %1997 = vst.msk [vmem:[%s232 + $0xe0] sm:$0xff] %vm1968, %v1964
      %1998 = vst.msk [vmem:[%s232 + $0xe8] sm:$0xff] %vm1968, %v1965
      %1999 = vst.msk [vmem:[%s232 + $0xf0] sm:$0xff] %vm1968, %v1966
      %2000 = vst.msk [vmem:[%s232 + $0xf8] sm:$0xff] %vm1968, %v1967
      %p2001 = scmp.lt.s32.totalorder %s18, 1
      %s2002 = scalar_select %p2001, %s18, 1
      %p2003 = scmp.lt.s32.totalorder %s19, 0
      %s2004 = scalar_select %p2003, %s19, 0
      %s2005 = smul.addr %s2002, 32
      %s2006 = sadd.s32 %s2004, %s2005
      %s2007 = smul.addr %s2006, 8
      %s2008 = scalar_lea.vmem %s3, %s2007
      // Predicated region
      $region33: #{residual_block_forward.10} parent=31 // pred_check
        %p2009 = pneg %p126
      $region34: #{residual_block_forward.10} parent=31 // pred_check_branch
        %2011 = sbr.rel (%p2009) target = $region36
      $region35: #{residual_block_forward.10} parent=31 // pred_region
        _
      $region36: #{residual_block_forward.10} parent=31 // pred_fallthru
        _
    $region32: #{residual_block_forward.10} parent=5 // pred_fallthru
      _
    %p2012 = scmp.le.s32.totalorder 2, %s9
    // Predicated region
    $region37: #{residual_block_forward.10} parent=5 // pred_check
      %p2013 = pneg %p2012
    $region38: #{residual_block_forward.10} parent=5 // pred_check_branch
      %2015 = sbr.rel (%p2013) target = $region40
    $region39: #{residual_block_forward.10} parent=5 // pred_region
      %s2016 = ssub.s32 %s9, 2
      // Predicated region
      $region41: #{residual_block_forward.10} parent=39 // pred_check
        %p2017 = pneg %p132
      $region42: #{residual_block_forward.10} parent=39 // pred_check_branch
        %2019 = sbr.rel (%p2017) target = $region44
      $region43: #{residual_block_forward.10} parent=39 // pred_region
        %p2020 = scmp.lt.s32.totalorder %s20, 1
        %s2021 = scalar_select %p2020, %s20, 1
        %p2022 = scmp.lt.s32.totalorder %s21, 0
        %s2023 = scalar_select %p2022, %s21, 0
        %s2024 = smul.addr %s2021, 32
        %s2025 = sadd.s32 %s2023, %s2024
        %s2026 = smul.addr %s2025, 8
        %s2027 = scalar_lea.vmem %s3, %s2026
      $region44: #{residual_block_forward.10} parent=39 // pred_fallthru
        _
    $region40: #{residual_block_forward.10} parent=5 // pred_fallthru
      _
  $region6: #{residual_block_forward.10} parent=0 // loop_footer
    %s13 = sadd.s32 1, %s9
  $region7: #{residual_block_forward.10} parent=0 // loop_footer_branch
    %8 = sbr.rel target = $region3
  $region8: #{residual_block_forward.10} parent=0 // loop_exit
    _

</llo_original>
